<compile_context>
chip_gen: v6e
topology: v6e:2x2x1
jax: 0.10.0
libtpu: 0.0.40
codegen_flags: <defaults>
</compile_context>

<pallas_src>
import jax
import jax.numpy as jnp
from jax import lax
from jax.experimental import pallas as pl
from jax.experimental.pallas import tpu as pltpu


# --------------------------------------------------------------------------
# Problem constants
# --------------------------------------------------------------------------
H_IN, W_IN, C_IN = 256, 256, 3
C_OUT, KH, KW = 32, 3, 3
STRIDE, PAD = 2, 1
H_OUT, W_OUT = H_IN // STRIDE, W_IN // STRIDE          # 128, 128
M = H_OUT * W_OUT                                      # 16384 output positions
K = C_IN * KH * KW                                     # 27
K_PAD = 32                                             # pad K; row/col 27 carries the bias
M_TILE = 4096                                          # 4 parallel M blocks

IMAGENET_MEAN = (0.485, 0.456, 0.406)
IMAGENET_STD = (0.229, 0.224, 0.225)

# Normalization as a single affine:  (x/255 - mean)/std == x * scale_c + shift_c
_S0, _S1, _S2 = (1.0 / (255.0 * s) for s in IMAGENET_STD)
_T0, _T1, _T2 = (-m / s for m, s in zip(IMAGENET_MEAN, IMAGENET_STD))


# --------------------------------------------------------------------------
# Fused kernel: norm (mul-add) + conv-as-matmul (bias folded in) + ReLU
# --------------------------------------------------------------------------
def _fused_norm_conv_kernel(p_ref, w_ref, o_ref):
    # p_ref: (K_PAD, M_TILE) raw-pixel patch tile (rows 0..26 = pixels, 27..31 = 0)
    # w_ref: (C_OUT, K_PAD) weights, column 27 = bias, columns 28..31 = 0
    # o_ref: (C_OUT, M_TILE) lane-dense output tile
    row = lax.broadcasted_iota(jnp.int32, (K_PAD, 1), 0)
    scale = jnp.where(row < 9, _S0,
            jnp.where(row < 18, _S1,
            jnp.where(row < K, _S2, 0.0)))
    shift = jnp.where(row < 9, _T0,
            jnp.where(row < 18, _T1,
            jnp.where(row < K, _T2,
            jnp.where(row == K, 1.0, 0.0))))          # row 27 -> 1.0 (bias row)
    pn = p_ref[...] * scale + shift                   # NormLayer, one FMA per element
    acc = jnp.dot(w_ref[...], pn, preferred_element_type=jnp.float32)  # (C_OUT, M_TILE)
    o_ref[...] = jnp.maximum(acc, 0.0)                # bias already inside the matmul


def fused_norm_conv(patches_raw, w_mat):
    return pl.pallas_call(
        _fused_norm_conv_kernel,
        out_shape=jax.ShapeDtypeStruct((C_OUT, M), jnp.float32),
        grid_spec=pltpu.PrefetchScalarGridSpec(
            num_scalar_prefetch=0,
            grid=(M // M_TILE,),
            in_specs=[
                pl.BlockSpec((K_PAD, M_TILE), lambda i: (0, i)),
                pl.BlockSpec((C_OUT, K_PAD), lambda i: (0, 0)),
            ],
            out_specs=pl.BlockSpec((C_OUT, M_TILE), lambda i: (0, i)),
        ),
        compiler_params=pltpu.CompilerParams(
            dimension_semantics=("parallel",)),
    )(patches_raw, w_mat)


# --------------------------------------------------------------------------
# Host glue (single XLA fusion): raw-pixel im2col in transposed (K_PAD, M) layout
# --------------------------------------------------------------------------
def _im2col_raw_transposed(x_chw):
    # Pad the RAW image with 255*mean_c so padded pixels normalize to ~0 inside the kernel.
    pad_val = jnp.array([255.0 * m for m in IMAGENET_MEAN], jnp.float32)
    x_pad = jnp.broadcast_to(pad_val[:, None, None],
                             (C_IN, H_IN + 2 * PAD, W_IN + 2 * PAD))
    x_pad = x_pad.at[:, PAD:PAD + H_IN, PAD:PAD + W_IN].set(x_chw)
    cols = []
    for kh in range(KH):
        for kw in range(KW):
            cols.append(x_pad[:, kh:kh + STRIDE * H_OUT:STRIDE,
                              kw:kw + STRIDE * W_OUT:STRIDE])   # (C_IN, H_OUT, W_OUT)
    p = jnp.stack(cols, axis=1)                # (C_IN, KH*KW, H_OUT, W_OUT)
    p = p.reshape(K, M)                        # row = c*9 + kh*3 + kw, col = i*128 + j
    return jnp.pad(p, ((0, K_PAD - K), (0, 0)))  # rows 27..31 = 0


# --------------------------------------------------------------------------
# Full forward
# --------------------------------------------------------------------------
@jax.jit
def ga_net_features_norm(x, w_oihw, bias):
    # x: any float array with 1*3*256*256 elements (the module reshapes it).
    x = x.reshape(1, C_IN, H_IN, W_IN).astype(jnp.float32)
    patches = _im2col_raw_transposed(x[0])                       # (32, 16384) raw pixels

    w_mat = jnp.zeros((C_OUT, K_PAD), jnp.float32)
    w_mat = w_mat.at[:, :K].set(w_oihw.reshape(C_OUT, K).astype(jnp.float32))
    w_mat = w_mat.at[:, K].set(bias.astype(jnp.float32))         # bias rides in column 27

    out = fused_norm_conv(patches, w_mat)                        # (32, 16384), lane-dense
    return out.reshape(C_OUT, H_OUT, W_OUT)[None]                # free reshape to NCHW


def _reference(x, w_oihw, bias):
    x = x.reshape(1, C_IN, H_IN, W_IN).astype(jnp.float32)
    mean = jnp.array(IMAGENET_MEAN, jnp.float32).reshape(1, C_IN, 1, 1)
    std = jnp.array(IMAGENET_STD, jnp.float32).reshape(1, C_IN, 1, 1)
    xn = ((x / 255.0) - mean) / std
    y = lax.conv_general_dilated(
        xn, w_oihw, window_strides=(STRIDE, STRIDE),
        padding=((PAD, PAD), (PAD, PAD)),
        dimension_numbers=("NCHW", "OIHW", "NCHW"))
    y = y + bias.reshape(1, C_OUT, 1, 1)
    return jnp.maximum(y, 0.0)


if __name__ == "__main__":
    key = jax.random.PRNGKey(0)
    kx, kw, kb = jax.random.split(key, 3)

    # Raw "image" in [0, 255] like the PyTorch input before NormLayer.
    x = jax.random.uniform(kx, (1, C_IN, H_IN, W_IN), jnp.float32, 0.0, 255.0)
    # Deterministic conv parameters (synthetic stand-in for the injected `cnn`).
    w = jax.random.normal(kw, (C_OUT, C_IN, KH, KW), jnp.float32) * 0.05
    b = jax.random.normal(kb, (C_OUT,), jnp.float32) * 0.1

    out = jax.block_until_ready(ga_net_features_norm(x, w, b))
    ref = jax.block_until_ready(_reference(x, w, b))

    assert out.shape == (1, C_OUT, H_OUT, W_OUT), out.shape
    assert jnp.allclose(out, ref, rtol=1e-4, atol=1e-4), float(jnp.max(jnp.abs(out - ref)))

    print("KERNEL_OK")
</pallas_src>

<mosaic_0001>
module attributes {stable_mosaic.version = 11 : i64} {
  func.func @_fused_norm_conv_kernel(%arg0: i32, %arg1: memref<32x4096xf32, #tpu.memory_space<vmem>>, %arg2: memref<32x32xf32, #tpu.memory_space<vmem>>, %arg3: memref<32x4096xf32, #tpu.memory_space<vmem>>) attributes {dimension_semantics = [#tpu.dimension_semantics<parallel>], iteration_bounds = array<i64: 4>, scalar_prefetch = 0 : i64, scratch_operands = 0 : i64, tpu.core_type = #tpu.core_type<tc>, window_params = [{transform_indices = @transform_0, window_bounds = array<i64: 32, 4096>}, {pipeline_mode = #tpu.pipeline_mode<synchronous>, transform_indices = @transform_1, window_bounds = array<i64: 32, 32>}, {transform_indices = @transform_2, window_bounds = array<i64: 32, 4096>}]} {
    %0 = tpu.iota {dimensions = array<i32: 0>} : vector<32x1xi32>
    %c9_i32 = arith.constant 9 : i32
    %1 = vector.broadcast %c9_i32 : i32 to vector<32x1xi32>
    %2 = arith.cmpi slt, %0, %1 : vector<32x1xi32>
    %c18_i32 = arith.constant 18 : i32
    %3 = vector.broadcast %c18_i32 : i32 to vector<32x1xi32>
    %4 = arith.cmpi slt, %0, %3 : vector<32x1xi32>
    %c27_i32 = arith.constant 27 : i32
    %5 = vector.broadcast %c27_i32 : i32 to vector<32x1xi32>
    %6 = arith.cmpi slt, %0, %5 : vector<32x1xi32>
    %cst = arith.constant 0.0174291935 : f32
    %cst_0 = arith.constant 0.000000e+00 : f32
    %7 = vector.broadcast %cst : f32 to vector<32x1xf32>
    %8 = vector.broadcast %cst_0 : f32 to vector<32x1xf32>
    %9 = arith.select %6, %7, %8 : vector<32x1xi1>, vector<32x1xf32>
    %cst_1 = arith.constant 0.0175070036 : f32
    %10 = vector.broadcast %cst_1 : f32 to vector<32x1xf32>
    %11 = arith.select %4, %10, %9 : vector<32x1xi1>, vector<32x1xf32>
    %cst_2 = arith.constant 0.0171247534 : f32
    %12 = vector.broadcast %cst_2 : f32 to vector<32x1xf32>
    %13 = arith.select %2, %12, %11 : vector<32x1xi1>, vector<32x1xf32>
    %c9_i32_3 = arith.constant 9 : i32
    %14 = vector.broadcast %c9_i32_3 : i32 to vector<32x1xi32>
    %15 = arith.cmpi slt, %0, %14 : vector<32x1xi32>
    %c18_i32_4 = arith.constant 18 : i32
    %16 = vector.broadcast %c18_i32_4 : i32 to vector<32x1xi32>
    %17 = arith.cmpi slt, %0, %16 : vector<32x1xi32>
    %c27_i32_5 = arith.constant 27 : i32
    %18 = vector.broadcast %c27_i32_5 : i32 to vector<32x1xi32>
    %19 = arith.cmpi slt, %0, %18 : vector<32x1xi32>
    %c27_i32_6 = arith.constant 27 : i32
    %20 = vector.broadcast %c27_i32_6 : i32 to vector<32x1xi32>
    %21 = arith.cmpi eq, %0, %20 : vector<32x1xi32>
    %cst_7 = arith.constant 1.000000e+00 : f32
    %cst_8 = arith.constant 0.000000e+00 : f32
    %22 = vector.broadcast %cst_7 : f32 to vector<32x1xf32>
    %23 = vector.broadcast %cst_8 : f32 to vector<32x1xf32>
    %24 = arith.select %21, %22, %23 : vector<32x1xi1>, vector<32x1xf32>
    %cst_9 = arith.constant -1.80444443 : f32
    %25 = vector.broadcast %cst_9 : f32 to vector<32x1xf32>
    %26 = arith.select %19, %25, %24 : vector<32x1xi1>, vector<32x1xf32>
    %cst_10 = arith.constant -2.03571439 : f32
    %27 = vector.broadcast %cst_10 : f32 to vector<32x1xf32>
    %28 = arith.select %17, %27, %26 : vector<32x1xi1>, vector<32x1xf32>
    %cst_11 = arith.constant -2.11790395 : f32
    %29 = vector.broadcast %cst_11 : f32 to vector<32x1xf32>
    %30 = arith.select %15, %29, %28 : vector<32x1xi1>, vector<32x1xf32>
    %c0 = arith.constant 0 : index
    %c0_12 = arith.constant 0 : index
    %31 = vector.load %arg1[%c0, %c0_12] : memref<32x4096xf32, #tpu.memory_space<vmem>>, vector<32x4096xf32>
    %32 = vector.broadcast %13 : vector<32x1xf32> to vector<32x4096xf32>
    %33 = arith.mulf %31, %32 : vector<32x4096xf32>
    %34 = vector.broadcast %30 : vector<32x1xf32> to vector<32x4096xf32>
    %35 = arith.addf %33, %34 : vector<32x4096xf32>
    %c0_13 = arith.constant 0 : index
    %c0_14 = arith.constant 0 : index
    %36 = vector.load %arg2[%c0_13, %c0_14] : memref<32x32xf32, #tpu.memory_space<vmem>>, vector<32x32xf32>
    %cst_15 = arith.constant dense<0.000000e+00> : vector<32x4096xf32>
    %37 = tpu.matmul %36, %35, %cst_15 {dimension_numbers = #tpu.dot_dimension_numbers<[1], [0], [0], [1], [0, 0, 1, 1], [], []>} : vector<32x32xf32>, vector<32x4096xf32>, vector<32x4096xf32> -> vector<32x4096xf32>
    %cst_16 = arith.constant 0.000000e+00 : f32
    %38 = vector.broadcast %cst_16 : f32 to vector<32x4096xf32>
    %39 = arith.maximumf %37, %38 : vector<32x4096xf32>
    %c0_17 = arith.constant 0 : index
    %c0_18 = arith.constant 0 : index
    %40 = vector.load %arg3[%c0_17, %c0_18] : memref<32x4096xf32, #tpu.memory_space<vmem>>, vector<32x4096xf32>
    tpu.vector_store %arg3[%c0_17, %c0_18], %39 {strides = array<i32>} : memref<32x4096xf32, #tpu.memory_space<vmem>>, vector<32x4096xf32>,
    return
  }
  func.func @transform_0(%arg0: i32) -> (i32, i32) {
    %c0_i32 = arith.constant 0 : i32
    %c0_i32_0 = arith.constant 0 : i32
    return %c0_i32, %arg0 : i32, i32
  }
  func.func @transform_1(%arg0: i32) -> (i32, i32) {
    %c0_i32 = arith.constant 0 : i32
    %c0_i32_0 = arith.constant 0 : i32
    %c0_i32_1 = arith.constant 0 : i32
    return %c0_i32, %c0_i32_0 : i32, i32
  }
  func.func @transform_2(%arg0: i32) -> (i32, i32) {
    %c0_i32 = arith.constant 0 : i32
    %c0_i32_0 = arith.constant 0 : i32
    return %c0_i32, %arg0 : i32, i32
  }
}

</mosaic_0001>

<llo_original>
// kernel: ga_net_features_norm.1
$region0: #{ga_net_features_norm.1}
  #allocation0 [shape = 'u32[]', space=smem, size = 0x4, offset = 0x4, fixed_abs, tag = 'smem constant byte address 0x4 - core index']
  #allocation1 [shape = 'u32[144,128]{1,0:T(1,128)}', space=vmem, size = 0x12000, scoped, tag = 'internal scratch']
  %s0 = inlined_call_operand.vmem [shape: f32[32,16384], index: 0, kind: input, shape index: {}]
  %s1 = inlined_call_operand.vmem [shape: f32[32,32], index: 1, kind: input, shape index: {}]
  %s2 = inlined_call_operand.vmem [shape: f32[32,16384], index: 2, kind: output, shape index: {}]
  %s3 = sld [smem:[#allocation0]]
  $region83: #{ga_net_features_norm.1} parent=0
    _
  %s5 = ssub.s32 1, %s3
  %s6 = scalar_select 0, %s5, %s3
  $region1: #{ga_net_features_norm.1} parent=0
    #allocation2 [shape = 'u8[1048576]{0}', space=vmem, size = 0x100000, scoped, tag = 'input window, operand 0']
    #allocation3 [shape = 'u8[1048576]{0}', space=vmem, size = 0x100000, scoped, tag = 'output window, operand 0']
    loop: start=0, step=1, limit=6
    $region2: #{ga_net_features_norm.1} parent=1 // loop_pre_header
      _
    $region3: #{ga_net_features_norm.1} parent=1 // loop_header
      %s8 = sphi 0, %s12
      %p9 = scmp.ge.s32.totalorder %s8, 6
      %s18 = sphi 0, %s20
      %s21 = sphi 0, %s18
      %s22 = sphi 0, %s21
      %s38 = sphi 0, %s22
      %s42 = sphi 0, %s42
      %s44 = sphi 0, %s42
      %s45 = sphi 0, %s44
      %s59 = sphi 0, %s45
      %s65 = sphi 0, %s67
      %s68 = sphi 0, %s65
      %s69 = sphi 0, %s68
      %s85 = sphi 0, %s69
    $region4: #{ga_net_features_norm.1} parent=1 // loop_header_branch
      %11 = sbr.rel (%p9) target = $region8
    $region5: #{ga_net_features_norm.1} parent=1 // loop_body
      %s13 = ssub.s32 %s8, 1
      %s14 = ssub.s32 %s8, 2
      %s15 = sadd.s32 %s8, 1
      %s16 = ssub.s32 %s8, %s15
      %p17 = scmp.eq.s32.totalorder %s16, 0
      %s19 = sadd.s32 %s18, 1
      %s20 = scalar_select %p17, %s18, %s19
      %p23 = pneg %p17
      %p24 = scmp.eq.s32.totalorder %s8, 3
      %p25 = por %p23, %p24
      %p26 = scmp.ne.s32.totalorder %s18, %s21
      %p27 = scmp.eq.s32.totalorder %s8, 0
      %p28 = por %p26, %p27
      %p29 = scmp.ne.s32.totalorder %s18, %s21
      %p30 = scmp.eq.s32.totalorder %s13, 3
      %p31 = por %p29, %p30
      %p32 = scmp.ne.s32.totalorder %s21, %s22
      %p33 = scmp.eq.s32.totalorder %s13, 0
      %p34 = por %p32, %p33
      %p35 = scmp.ne.s32.totalorder %s21, %s22
      %p36 = scmp.eq.s32.totalorder %s14, 3
      %p37 = por %p35, %p36
      %p39 = scmp.ne.s32.totalorder %s22, %s38
      %p40 = scmp.eq.s32.totalorder %s14, 0
      %p41 = por %p39, %p40
      %s43 = sadd.s32 %s42, 1
      %p46 = scmp.eq.s32.totalorder %s8, 3
      %p47 = scmp.ne.s32.totalorder %s42, %s44
      %p48 = scmp.eq.s32.totalorder %s8, 0
      %p49 = por %p47, %p48
      %p50 = scmp.ne.s32.totalorder %s42, %s44
      %p51 = scmp.eq.s32.totalorder %s13, 3
      %p52 = por %p50, %p51
      %p53 = scmp.ne.s32.totalorder %s44, %s45
      %p54 = scmp.eq.s32.totalorder %s13, 0
      %p55 = por %p53, %p54
      %p56 = scmp.ne.s32.totalorder %s44, %s45
      %p57 = scmp.eq.s32.totalorder %s14, 3
      %p58 = por %p56, %p57
      %p60 = scmp.ne.s32.totalorder %s45, %s59
      %p61 = scmp.eq.s32.totalorder %s14, 0
      %p62 = por %p60, %p61
      %s63 = ssub.s32 %s8, %s15
      %p64 = scmp.eq.s32.totalorder %s63, 0
      %s66 = sadd.s32 %s65, 1
      %s67 = scalar_select %p64, %s65, %s66
      %p70 = pneg %p64
      %p71 = scmp.eq.s32.totalorder %s8, 3
      %p72 = por %p70, %p71
      %p73 = scmp.ne.s32.totalorder %s65, %s68
      %p74 = scmp.eq.s32.totalorder %s8, 0
      %p75 = por %p73, %p74
      %p76 = scmp.ne.s32.totalorder %s65, %s68
      %p77 = scmp.eq.s32.totalorder %s13, 3
      %p78 = por %p76, %p77
      %p79 = scmp.ne.s32.totalorder %s68, %s69
      %p80 = scmp.eq.s32.totalorder %s13, 0
      %p81 = por %p79, %p80
      %p82 = scmp.ne.s32.totalorder %s68, %s69
      %p83 = scmp.eq.s32.totalorder %s14, 3
      %p84 = por %p82, %p83
      %p86 = scmp.ne.s32.totalorder %s69, %s85
      %p87 = scmp.eq.s32.totalorder %s14, 0
      %p88 = por %p86, %p87
      %p89 = scmp.le.s32.totalorder 1, %s8
      %p90 = scmp.lt.s32.totalorder %s8, 5
      %p91 = pnand %p89, %p90
      %p92 = pneg %p91
      // Predicated region
      $region9: #{ga_net_features_norm.1} parent=5 // pred_check
        _
      $region10: #{ga_net_features_norm.1} parent=5 // pred_check_branch
        %94 = sbr.rel (%p91) target = $region12
      $region11: #{ga_net_features_norm.1} parent=5 // pred_region
        %s95 = ssub.s32 %s8, 1
        // Predicated region
        $region13: #{ga_net_features_norm.1} parent=11 // pred_check
          %p96 = pneg %p55
        $region14: #{ga_net_features_norm.1} parent=11 // pred_check_branch
          %98 = sbr.rel (%p96) target = $region16
        $region15: #{ga_net_features_norm.1} parent=11 // pred_region
          _
        $region16: #{ga_net_features_norm.1} parent=11 // pred_fallthru
          _
      $region12: #{ga_net_features_norm.1} parent=5 // pred_fallthru
        _
      %p99 = scmp.lt.s32.totalorder %s8, 4
      // Predicated region
      $region17: #{ga_net_features_norm.1} parent=5 // pred_check
        %p100 = pneg %p99
      $region18: #{ga_net_features_norm.1} parent=5 // pred_check_branch
        %102 = sbr.rel (%p100) target = $region20
      $region19: #{ga_net_features_norm.1} parent=5 // pred_region
        // Predicated region
        $region21: #{ga_net_features_norm.1} parent=19 // pred_check
          %p103 = pneg %p28
        $region22: #{ga_net_features_norm.1} parent=19 // pred_check_branch
          %105 = sbr.rel (%p103) target = $region24
        $region23: #{ga_net_features_norm.1} parent=19 // pred_region
          %s106 = sand.u32 %s18, 1
          %s107 = sand.u32 %s18, 1
          %s108 = smul.addr %s107, 1024
          %s109 = scalar_lea.vmem [#allocation2], %s108
          %s110 = smul.u32 32, %s8
          %s111 = smul.addr %s110, 8
          %s112 = scalar_lea.vmem %s0, %s111
          // Predicated region
          $region25: #{ga_net_features_norm.1} parent=23 // pred_check
            _
          $region26: #{ga_net_features_norm.1} parent=23 // pred_check_branch
            %114 = sbr.rel (0) target = $region28
          $region27: #{ga_net_features_norm.1} parent=23 // pred_region
            // Predicated region
            $region29: #{ga_net_features_norm.1} parent=27 // pred_check
              _
            $region30: #{ga_net_features_norm.1} parent=27 // pred_check_branch
              %116 = sbr.rel (0) target = $region32
            $region31: #{ga_net_features_norm.1} parent=27 // pred_region
              loop: start=0, step=1, limit=1
              $region33: #{ga_net_features_norm.1} parent=31 // loop_pre_header
                _
              $region34: #{ga_net_features_norm.1} parent=31 // loop_header
                %s118 = sphi 0, %s122
                %p119 = scmp.ge.s32.totalorder %s118, 1
                %s123 = sphi %s112, %s112
                %s124 = sphi %s109, %s109
              $region35: #{ga_net_features_norm.1} parent=31 // loop_header_branch
                %121 = sbr.rel (%p119) target = $region39
              $region36: #{ga_net_features_norm.1} parent=31 // loop_body
                %v125 = vld [vmem:[%s123] sm:$0xff]
                %126 = vst [vmem:[%s124] sm:$0xff] %v125
                %v127 = vld [vmem:[%s123 + $0x8] sm:$0xff]
                %128 = vst [vmem:[%s124 + $0x8] sm:$0xff] %v127
                %v129 = vld [vmem:[%s123 + $0x10] sm:$0xff]
                %130 = vst [vmem:[%s124 + $0x10] sm:$0xff] %v129
                %v131 = vld [vmem:[%s123 + $0x18] sm:$0xff]
                %132 = vst [vmem:[%s124 + $0x18] sm:$0xff] %v131
                %v133 = vld [vmem:[%s123 + $0x20] sm:$0xff]
                %134 = vst [vmem:[%s124 + $0x20] sm:$0xff] %v133
                %v135 = vld [vmem:[%s123 + $0x28] sm:$0xff]
                %136 = vst [vmem:[%s124 + $0x28] sm:$0xff] %v135
                %v137 = vld [vmem:[%s123 + $0x30] sm:$0xff]
                %138 = vst [vmem:[%s124 + $0x30] sm:$0xff] %v137
                %v139 = vld [vmem:[%s123 + $0x38] sm:$0xff]
                %140 = vst [vmem:[%s124 + $0x38] sm:$0xff] %v139
                %v141 = vld [vmem:[%s123 + $0x40] sm:$0xff]
                %142 = vst [vmem:[%s124 + $0x40] sm:$0xff] %v141
                %v143 = vld [vmem:[%s123 + $0x48] sm:$0xff]
                %144 = vst [vmem:[%s124 + $0x48] sm:$0xff] %v143
                %v145 = vld [vmem:[%s123 + $0x50] sm:$0xff]
                %146 = vst [vmem:[%s124 + $0x50] sm:$0xff] %v145
                %v147 = vld [vmem:[%s123 + $0x58] sm:$0xff]
                %148 = vst [vmem:[%s124 + $0x58] sm:$0xff] %v147
                %v149 = vld [vmem:[%s123 + $0x60] sm:$0xff]
                %150 = vst [vmem:[%s124 + $0x60] sm:$0xff] %v149
                %v151 = vld [vmem:[%s123 + $0x68] sm:$0xff]
                %152 = vst [vmem:[%s124 + $0x68] sm:$0xff] %v151
                %v153 = vld [vmem:[%s123 + $0x70] sm:$0xff]
                %154 = vst [vmem:[%s124 + $0x70] sm:$0xff] %v153
                %v155 = vld [vmem:[%s123 + $0x78] sm:$0xff]
                %156 = vst [vmem:[%s124 + $0x78] sm:$0xff] %v155
                %v157 = vld [vmem:[%s123 + $0x80] sm:$0xff]
                %158 = vst [vmem:[%s124 + $0x80] sm:$0xff] %v157
                %v159 = vld [vmem:[%s123 + $0x88] sm:$0xff]
                %160 = vst [vmem:[%s124 + $0x88] sm:$0xff] %v159
                %v161 = vld [vmem:[%s123 + $0x90] sm:$0xff]
                %162 = vst [vmem:[%s124 + $0x90] sm:$0xff] %v161
                %v163 = vld [vmem:[%s123 + $0x98] sm:$0xff]
                %164 = vst [vmem:[%s124 + $0x98] sm:$0xff] %v163
                %v165 = vld [vmem:[%s123 + $0xa0] sm:$0xff]
                %166 = vst [vmem:[%s124 + $0xa0] sm:$0xff] %v165
                %v167 = vld [vmem:[%s123 + $0xa8] sm:$0xff]
                %168 = vst [vmem:[%s124 + $0xa8] sm:$0xff] %v167
                %v169 = vld [vmem:[%s123 + $0xb0] sm:$0xff]
                %170 = vst [vmem:[%s124 + $0xb0] sm:$0xff] %v169
                %v171 = vld [vmem:[%s123 + $0xb8] sm:$0xff]
                %172 = vst [vmem:[%s124 + $0xb8] sm:$0xff] %v171
                %v173 = vld [vmem:[%s123 + $0xc0] sm:$0xff]
                %174 = vst [vmem:[%s124 + $0xc0] sm:$0xff] %v173
                %v175 = vld [vmem:[%s123 + $0xc8] sm:$0xff]
                %176 = vst [vmem:[%s124 + $0xc8] sm:$0xff] %v175
                %v177 = vld [vmem:[%s123 + $0xd0] sm:$0xff]
                %178 = vst [vmem:[%s124 + $0xd0] sm:$0xff] %v177
                %v179 = vld [vmem:[%s123 + $0xd8] sm:$0xff]
                %180 = vst [vmem:[%s124 + $0xd8] sm:$0xff] %v179
                %v181 = vld [vmem:[%s123 + $0xe0] sm:$0xff]
                %182 = vst [vmem:[%s124 + $0xe0] sm:$0xff] %v181
                %v183 = vld [vmem:[%s123 + $0xe8] sm:$0xff]
                %184 = vst [vmem:[%s124 + $0xe8] sm:$0xff] %v183
                %v185 = vld [vmem:[%s123 + $0xf0] sm:$0xff]
                %186 = vst [vmem:[%s124 + $0xf0] sm:$0xff] %v185
                %v187 = vld [vmem:[%s123 + $0xf8] sm:$0xff]
                %188 = vst [vmem:[%s124 + $0xf8] sm:$0xff] %v187
                %v189 = vld [vmem:[%s123 + $0x400] sm:$0xff]
                %190 = vst [vmem:[%s124 + $0x100] sm:$0xff] %v189
                %v191 = vld [vmem:[%s123 + $0x408] sm:$0xff]
                %192 = vst [vmem:[%s124 + $0x108] sm:$0xff] %v191
                %v193 = vld [vmem:[%s123 + $0x410] sm:$0xff]
                %194 = vst [vmem:[%s124 + $0x110] sm:$0xff] %v193
                %v195 = vld [vmem:[%s123 + $0x418] sm:$0xff]
                %196 = vst [vmem:[%s124 + $0x118] sm:$0xff] %v195
                %v197 = vld [vmem:[%s123 + $0x420] sm:$0xff]
                %198 = vst [vmem:[%s124 + $0x120] sm:$0xff] %v197
                %v199 = vld [vmem:[%s123 + $0x428] sm:$0xff]
                %200 = vst [vmem:[%s124 + $0x128] sm:$0xff] %v199
                %v201 = vld [vmem:[%s123 + $0x430] sm:$0xff]
                %202 = vst [vmem:[%s124 + $0x130] sm:$0xff] %v201
                %v203 = vld [vmem:[%s123 + $0x438] sm:$0xff]
                %204 = vst [vmem:[%s124 + $0x138] sm:$0xff] %v203
                %v205 = vld [vmem:[%s123 + $0x440] sm:$0xff]
                %206 = vst [vmem:[%s124 + $0x140] sm:$0xff] %v205
                %v207 = vld [vmem:[%s123 + $0x448] sm:$0xff]
                %208 = vst [vmem:[%s124 + $0x148] sm:$0xff] %v207
                %v209 = vld [vmem:[%s123 + $0x450] sm:$0xff]
                %210 = vst [vmem:[%s124 + $0x150] sm:$0xff] %v209
                %v211 = vld [vmem:[%s123 + $0x458] sm:$0xff]
                %212 = vst [vmem:[%s124 + $0x158] sm:$0xff] %v211
                %v213 = vld [vmem:[%s123 + $0x460] sm:$0xff]
                %214 = vst [vmem:[%s124 + $0x160] sm:$0xff] %v213
                %v215 = vld [vmem:[%s123 + $0x468] sm:$0xff]
                %216 = vst [vmem:[%s124 + $0x168] sm:$0xff] %v215
                %v217 = vld [vmem:[%s123 + $0x470] sm:$0xff]
                %218 = vst [vmem:[%s124 + $0x170] sm:$0xff] %v217
                %v219 = vld [vmem:[%s123 + $0x478] sm:$0xff]
                %220 = vst [vmem:[%s124 + $0x178] sm:$0xff] %v219
                %v221 = vld [vmem:[%s123 + $0x480] sm:$0xff]
                %222 = vst [vmem:[%s124 + $0x180] sm:$0xff] %v221
                %v223 = vld [vmem:[%s123 + $0x488] sm:$0xff]
                %224 = vst [vmem:[%s124 + $0x188] sm:$0xff] %v223
                %v225 = vld [vmem:[%s123 + $0x490] sm:$0xff]
                %226 = vst [vmem:[%s124 + $0x190] sm:$0xff] %v225
                %v227 = vld [vmem:[%s123 + $0x498] sm:$0xff]
                %228 = vst [vmem:[%s124 + $0x198] sm:$0xff] %v227
                %v229 = vld [vmem:[%s123 + $0x4a0] sm:$0xff]
                %230 = vst [vmem:[%s124 + $0x1a0] sm:$0xff] %v229
                %v231 = vld [vmem:[%s123 + $0x4a8] sm:$0xff]
                %232 = vst [vmem:[%s124 + $0x1a8] sm:$0xff] %v231
                %v233 = vld [vmem:[%s123 + $0x4b0] sm:$0xff]
                %234 = vst [vmem:[%s124 + $0x1b0] sm:$0xff] %v233
                %v235 = vld [vmem:[%s123 + $0x4b8] sm:$0xff]
                %236 = vst [vmem:[%s124 + $0x1b8] sm:$0xff] %v235
                %v237 = vld [vmem:[%s123 + $0x4c0] sm:$0xff]
                %238 = vst [vmem:[%s124 + $0x1c0] sm:$0xff] %v237
                %v239 = vld [vmem:[%s123 + $0x4c8] sm:$0xff]
                %240 = vst [vmem:[%s124 + $0x1c8] sm:$0xff] %v239
                %v241 = vld [vmem:[%s123 + $0x4d0] sm:$0xff]
                %242 = vst [vmem:[%s124 + $0x1d0] sm:$0xff] %v241
                %v243 = vld [vmem:[%s123 + $0x4d8] sm:$0xff]
                %244 = vst [vmem:[%s124 + $0x1d8] sm:$0xff] %v243
                %v245 = vld [vmem:[%s123 + $0x4e0] sm:$0xff]
                %246 = vst [vmem:[%s124 + $0x1e0] sm:$0xff] %v245
                %v247 = vld [vmem:[%s123 + $0x4e8] sm:$0xff]
                %248 = vst [vmem:[%s124 + $0x1e8] sm:$0xff] %v247
                %v249 = vld [vmem:[%s123 + $0x4f0] sm:$0xff]
                %250 = vst [vmem:[%s124 + $0x1f0] sm:$0xff] %v249
                %v251 = vld [vmem:[%s123 + $0x4f8] sm:$0xff]
                %252 = vst [vmem:[%s124 + $0x1f8] sm:$0xff] %v251
                %v253 = vld [vmem:[%s123 + $0x800] sm:$0xff]
                %254 = vst [vmem:[%s124 + $0x200] sm:$0xff] %v253
                %v255 = vld [vmem:[%s123 + $0x808] sm:$0xff]
                %256 = vst [vmem:[%s124 + $0x208] sm:$0xff] %v255
                %v257 = vld [vmem:[%s123 + $0x810] sm:$0xff]
                %258 = vst [vmem:[%s124 + $0x210] sm:$0xff] %v257
                %v259 = vld [vmem:[%s123 + $0x818] sm:$0xff]
                %260 = vst [vmem:[%s124 + $0x218] sm:$0xff] %v259
                %v261 = vld [vmem:[%s123 + $0x820] sm:$0xff]
                %262 = vst [vmem:[%s124 + $0x220] sm:$0xff] %v261
                %v263 = vld [vmem:[%s123 + $0x828] sm:$0xff]
                %264 = vst [vmem:[%s124 + $0x228] sm:$0xff] %v263
                %v265 = vld [vmem:[%s123 + $0x830] sm:$0xff]
                %266 = vst [vmem:[%s124 + $0x230] sm:$0xff] %v265
                %v267 = vld [vmem:[%s123 + $0x838] sm:$0xff]
                %268 = vst [vmem:[%s124 + $0x238] sm:$0xff] %v267
                %v269 = vld [vmem:[%s123 + $0x840] sm:$0xff]
                %270 = vst [vmem:[%s124 + $0x240] sm:$0xff] %v269
                %v271 = vld [vmem:[%s123 + $0x848] sm:$0xff]
                %272 = vst [vmem:[%s124 + $0x248] sm:$0xff] %v271
                %v273 = vld [vmem:[%s123 + $0x850] sm:$0xff]
                %274 = vst [vmem:[%s124 + $0x250] sm:$0xff] %v273
                %v275 = vld [vmem:[%s123 + $0x858] sm:$0xff]
                %276 = vst [vmem:[%s124 + $0x258] sm:$0xff] %v275
                %v277 = vld [vmem:[%s123 + $0x860] sm:$0xff]
                %278 = vst [vmem:[%s124 + $0x260] sm:$0xff] %v277
                %v279 = vld [vmem:[%s123 + $0x868] sm:$0xff]
                %280 = vst [vmem:[%s124 + $0x268] sm:$0xff] %v279
                %v281 = vld [vmem:[%s123 + $0x870] sm:$0xff]
                %282 = vst [vmem:[%s124 + $0x270] sm:$0xff] %v281
                %v283 = vld [vmem:[%s123 + $0x878] sm:$0xff]
                %284 = vst [vmem:[%s124 + $0x278] sm:$0xff] %v283
                %v285 = vld [vmem:[%s123 + $0x880] sm:$0xff]
                %286 = vst [vmem:[%s124 + $0x280] sm:$0xff] %v285
                %v287 = vld [vmem:[%s123 + $0x888] sm:$0xff]
                %288 = vst [vmem:[%s124 + $0x288] sm:$0xff] %v287
                %v289 = vld [vmem:[%s123 + $0x890] sm:$0xff]
                %290 = vst [vmem:[%s124 + $0x290] sm:$0xff] %v289
                %v291 = vld [vmem:[%s123 + $0x898] sm:$0xff]
                %292 = vst [vmem:[%s124 + $0x298] sm:$0xff] %v291
                %v293 = vld [vmem:[%s123 + $0x8a0] sm:$0xff]
                %294 = vst [vmem:[%s124 + $0x2a0] sm:$0xff] %v293
                %v295 = vld [vmem:[%s123 + $0x8a8] sm:$0xff]
                %296 = vst [vmem:[%s124 + $0x2a8] sm:$0xff] %v295
                %v297 = vld [vmem:[%s123 + $0x8b0] sm:$0xff]
                %298 = vst [vmem:[%s124 + $0x2b0] sm:$0xff] %v297
                %v299 = vld [vmem:[%s123 + $0x8b8] sm:$0xff]
                %300 = vst [vmem:[%s124 + $0x2b8] sm:$0xff] %v299
                %v301 = vld [vmem:[%s123 + $0x8c0] sm:$0xff]
                %302 = vst [vmem:[%s124 + $0x2c0] sm:$0xff] %v301
                %v303 = vld [vmem:[%s123 + $0x8c8] sm:$0xff]
                %304 = vst [vmem:[%s124 + $0x2c8] sm:$0xff] %v303
                %v305 = vld [vmem:[%s123 + $0x8d0] sm:$0xff]
                %306 = vst [vmem:[%s124 + $0x2d0] sm:$0xff] %v305
                %v307 = vld [vmem:[%s123 + $0x8d8] sm:$0xff]
                %308 = vst [vmem:[%s124 + $0x2d8] sm:$0xff] %v307
                %v309 = vld [vmem:[%s123 + $0x8e0] sm:$0xff]
                %310 = vst [vmem:[%s124 + $0x2e0] sm:$0xff] %v309
                %v311 = vld [vmem:[%s123 + $0x8e8] sm:$0xff]
                %312 = vst [vmem:[%s124 + $0x2e8] sm:$0xff] %v311
                %v313 = vld [vmem:[%s123 + $0x8f0] sm:$0xff]
                %314 = vst [vmem:[%s124 + $0x2f0] sm:$0xff] %v313
                %v315 = vld [vmem:[%s123 + $0x8f8] sm:$0xff]
                %316 = vst [vmem:[%s124 + $0x2f8] sm:$0xff] %v315
                %v317 = vld [vmem:[%s123 + $0xc00] sm:$0xff]
                %318 = vst [vmem:[%s124 + $0x300] sm:$0xff] %v317
                %v319 = vld [vmem:[%s123 + $0xc08] sm:$0xff]
                %320 = vst [vmem:[%s124 + $0x308] sm:$0xff] %v319
                %v321 = vld [vmem:[%s123 + $0xc10] sm:$0xff]
                %322 = vst [vmem:[%s124 + $0x310] sm:$0xff] %v321
                %v323 = vld [vmem:[%s123 + $0xc18] sm:$0xff]
                %324 = vst [vmem:[%s124 + $0x318] sm:$0xff] %v323
                %v325 = vld [vmem:[%s123 + $0xc20] sm:$0xff]
                %326 = vst [vmem:[%s124 + $0x320] sm:$0xff] %v325
                %v327 = vld [vmem:[%s123 + $0xc28] sm:$0xff]
                %328 = vst [vmem:[%s124 + $0x328] sm:$0xff] %v327
                %v329 = vld [vmem:[%s123 + $0xc30] sm:$0xff]
                %330 = vst [vmem:[%s124 + $0x330] sm:$0xff] %v329
                %v331 = vld [vmem:[%s123 + $0xc38] sm:$0xff]
                %332 = vst [vmem:[%s124 + $0x338] sm:$0xff] %v331
                %v333 = vld [vmem:[%s123 + $0xc40] sm:$0xff]
                %334 = vst [vmem:[%s124 + $0x340] sm:$0xff] %v333
                %v335 = vld [vmem:[%s123 + $0xc48] sm:$0xff]
                %336 = vst [vmem:[%s124 + $0x348] sm:$0xff] %v335
                %v337 = vld [vmem:[%s123 + $0xc50] sm:$0xff]
                %338 = vst [vmem:[%s124 + $0x350] sm:$0xff] %v337
                %v339 = vld [vmem:[%s123 + $0xc58] sm:$0xff]
                %340 = vst [vmem:[%s124 + $0x358] sm:$0xff] %v339
                %v341 = vld [vmem:[%s123 + $0xc60] sm:$0xff]
                %342 = vst [vmem:[%s124 + $0x360] sm:$0xff] %v341
                %v343 = vld [vmem:[%s123 + $0xc68] sm:$0xff]
                %344 = vst [vmem:[%s124 + $0x368] sm:$0xff] %v343
                %v345 = vld [vmem:[%s123 + $0xc70] sm:$0xff]
                %346 = vst [vmem:[%s124 + $0x370] sm:$0xff] %v345
                %v347 = vld [vmem:[%s123 + $0xc78] sm:$0xff]
                %348 = vst [vmem:[%s124 + $0x378] sm:$0xff] %v347
                %v349 = vld [vmem:[%s123 + $0xc80] sm:$0xff]
                %350 = vst [vmem:[%s124 + $0x380] sm:$0xff] %v349
                %v351 = vld [vmem:[%s123 + $0xc88] sm:$0xff]
                %352 = vst [vmem:[%s124 + $0x388] sm:$0xff] %v351
                %v353 = vld [vmem:[%s123 + $0xc90] sm:$0xff]
                %354 = vst [vmem:[%s124 + $0x390] sm:$0xff] %v353
                %v355 = vld [vmem:[%s123 + $0xc98] sm:$0xff]
                %356 = vst [vmem:[%s124 + $0x398] sm:$0xff] %v355
                %v357 = vld [vmem:[%s123 + $0xca0] sm:$0xff]
                %358 = vst [vmem:[%s124 + $0x3a0] sm:$0xff] %v357
                %v359 = vld [vmem:[%s123 + $0xca8] sm:$0xff]
                %360 = vst [vmem:[%s124 + $0x3a8] sm:$0xff] %v359
                %v361 = vld [vmem:[%s123 + $0xcb0] sm:$0xff]
                %362 = vst [vmem:[%s124 + $0x3b0] sm:$0xff] %v361
                %v363 = vld [vmem:[%s123 + $0xcb8] sm:$0xff]
                %364 = vst [vmem:[%s124 + $0x3b8] sm:$0xff] %v363
                %v365 = vld [vmem:[%s123 + $0xcc0] sm:$0xff]
                %366 = vst [vmem:[%s124 + $0x3c0] sm:$0xff] %v365
                %v367 = vld [vmem:[%s123 + $0xcc8] sm:$0xff]
                %368 = vst [vmem:[%s124 + $0x3c8] sm:$0xff] %v367
                %v369 = vld [vmem:[%s123 + $0xcd0] sm:$0xff]
                %370 = vst [vmem:[%s124 + $0x3d0] sm:$0xff] %v369
                %v371 = vld [vmem:[%s123 + $0xcd8] sm:$0xff]
                %372 = vst [vmem:[%s124 + $0x3d8] sm:$0xff] %v371
                %v373 = vld [vmem:[%s123 + $0xce0] sm:$0xff]
                %374 = vst [vmem:[%s124 + $0x3e0] sm:$0xff] %v373
                %v375 = vld [vmem:[%s123 + $0xce8] sm:$0xff]
                %376 = vst [vmem:[%s124 + $0x3e8] sm:$0xff] %v375
                %v377 = vld [vmem:[%s123 + $0xcf0] sm:$0xff]
                %378 = vst [vmem:[%s124 + $0x3f0] sm:$0xff] %v377
                %v379 = vld [vmem:[%s123 + $0xcf8] sm:$0xff]
                %380 = vst [vmem:[%s124 + $0x3f8] sm:$0xff] %v379
              $region37: #{ga_net_features_norm.1} parent=31 // loop_footer
                %s122 = sadd.s32 1, %s118
              $region38: #{ga_net_features_norm.1} parent=31 // loop_footer_branch
                %117 = sbr.rel target = $region34
              $region39: #{ga_net_features_norm.1} parent=31 // loop_exit
                _
            $region32: #{ga_net_features_norm.1} parent=27 // pred_fallthru
              _
            // Predicated region
            $region40: #{ga_net_features_norm.1} parent=27 // pred_check
              _
            $region41: #{ga_net_features_norm.1} parent=27 // pred_check_branch
              %382 = sbr.rel target = $region43
            $region42: #{ga_net_features_norm.1} parent=27 // pred_region
              _
            $region43: #{ga_net_features_norm.1} parent=27 // pred_fallthru
              _
          $region28: #{ga_net_features_norm.1} parent=23 // pred_fallthru
            _
          %383 = vnop
        $region24: #{ga_net_features_norm.1} parent=19 // pred_fallthru
          _
      $region20: #{ga_net_features_norm.1} parent=5 // pred_fallthru
        _
      %p384 = scmp.le.s32.totalorder 1, %s8
      %p385 = scmp.lt.s32.totalorder %s8, 5
      %p386 = pnand %p384, %p385
      %p387 = pneg %p386
      // Predicated region
      $region44: #{ga_net_features_norm.1} parent=5 // pred_check
        _
      $region45: #{ga_net_features_norm.1} parent=5 // pred_check_branch
        %389 = sbr.rel (%p386) target = $region47
      $region46: #{ga_net_features_norm.1} parent=5 // pred_region
        %s390 = ssub.s32 %s8, 1
        %s391 = sand.u32 %s21, 1
        %s392 = sand.u32 %s21, 1
        %s393 = smul.addr %s392, 1024
        %s394 = scalar_lea.vmem [#allocation2], %s393
        // Predicated region
        $region48: #{ga_net_features_norm.1} parent=46 // pred_check
          %p395 = pneg %p34
        $region49: #{ga_net_features_norm.1} parent=46 // pred_check_branch
          %397 = sbr.rel (%p395) target = $region51
        $region50: #{ga_net_features_norm.1} parent=46 // pred_region
          _
        $region51: #{ga_net_features_norm.1} parent=46 // pred_fallthru
          _
        %s398 = sand.u32 %s21, 1
        %s399 = sand.u32 %s21, 1
        %s400 = smul.addr %s399, 1024
        %s401 = scalar_lea.vmem [#allocation2], %s400
        %p402 = pneg %p34
        %p403 = pneg %p31
        %p404 = pneg %p55
        %p405 = pneg %p52
        %p406 = pneg %p81
        %p407 = pneg %p78
        %s408 = sand.u32 %s68, 1
        %s409 = sand.u32 %s68, 1
        %s410 = smul.addr %s409, 1024
        %s411 = scalar_lea.vmem [#allocation3], %s410
        %s412 = smul.u32 32, %s13
        %s413 = smul.u32 32, %s13
        %v414 = vlaneseq
        %v415 = vshrl.u32 %v414, 7
        %v416 = vadd.s32 %v415, 8
        %v417 = vadd.s32 %v415, 16
        %v418 = vadd.s32 %v415, 24
        %vm419 = vcmp.lt.s32.totalorder %v415, 9
        %vm420 = vcmp.lt.s32.totalorder %v416, 9
        %vm421 = vcmp.lt.s32.totalorder %v417, 9
        %vm422 = vcmp.lt.s32.totalorder %v418, 9
        %vm423 = vcmp.lt.s32.totalorder %v415, 18
        %vm424 = vcmp.lt.s32.totalorder %v416, 18
        %vm425 = vcmp.lt.s32.totalorder %v417, 18
        %vm426 = vcmp.lt.s32.totalorder %v418, 18
        %vm427 = vcmp.lt.s32.totalorder %v415, 27
        %vm428 = vcmp.lt.s32.totalorder %v416, 27
        %vm429 = vcmp.lt.s32.totalorder %v417, 27
        %vm430 = vcmp.lt.s32.totalorder %v418, 27
        %v431 = vsel %vm427, 0.017429193, 0.0
        %v432 = vsel %vm428, 0.017429193, 0.0
        %v433 = vsel %vm429, 0.017429193, 0.0
        %v434 = vsel %vm430, 0.017429193, 0.0
        %v435 = vsel %vm423, 0.017507004, %v431
        %v436 = vsel %vm424, 0.017507004, %v432
        %v437 = vsel %vm425, 0.017507004, %v433
        %v438 = vsel %vm426, 0.017507004, %v434
        %v439 = vsel %vm419, 0.017124753, %v435
        %v440 = vsel %vm420, 0.017124753, %v436
        %v441 = vsel %vm421, 0.017124753, %v437
        %v442 = vsel %vm422, 0.017124753, %v438
        %vm443 = vcmp.eq.s32.totalorder %v415, 27
        %vm444 = vcmp.eq.s32.totalorder %v416, 27
        %vm445 = vcmp.eq.s32.totalorder %v417, 27
        %vm446 = vcmp.eq.s32.totalorder %v418, 27
        %v447 = vsel %vm443, 1.0, 0.0
        %v448 = vsel %vm444, 1.0, 0.0
        %v449 = vsel %vm445, 1.0, 0.0
        %v450 = vsel %vm446, 1.0, 0.0
        %v451 = vsel %vm427, -1.8044444, %v447
        %v452 = vsel %vm428, -1.8044444, %v448
        %v453 = vsel %vm429, -1.8044444, %v449
        %v454 = vsel %vm430, -1.8044444, %v450
        %v455 = vsel %vm423, -2.0357144, %v451
        %v456 = vsel %vm424, -2.0357144, %v452
        %v457 = vsel %vm425, -2.0357144, %v453
        %v458 = vsel %vm426, -2.0357144, %v454
        %v459 = vsel %vm419, -2.117904, %v455
        %v460 = vsel %vm420, -2.117904, %v456
        %v461 = vsel %vm421, -2.117904, %v457
        %v462 = vsel %vm422, -2.117904, %v458
        %v463 = vld [vmem:[%s394] sm:$0xff]
        %v464 = vld [vmem:[%s394 + $0x8] sm:$0xff]
        %v465 = vld [vmem:[%s394 + $0x10] sm:$0xff]
        %v466 = vld [vmem:[%s394 + $0x18] sm:$0xff]
        %v467 = vld [vmem:[%s394 + $0x20] sm:$0xff]
        %v468 = vld [vmem:[%s394 + $0x28] sm:$0xff]
        %v469 = vld [vmem:[%s394 + $0x30] sm:$0xff]
        %v470 = vld [vmem:[%s394 + $0x38] sm:$0xff]
        %v471 = vld [vmem:[%s394 + $0x40] sm:$0xff]
        %v472 = vld [vmem:[%s394 + $0x48] sm:$0xff]
        %v473 = vld [vmem:[%s394 + $0x50] sm:$0xff]
        %v474 = vld [vmem:[%s394 + $0x58] sm:$0xff]
        %v475 = vld [vmem:[%s394 + $0x60] sm:$0xff]
        %v476 = vld [vmem:[%s394 + $0x68] sm:$0xff]
        %v477 = vld [vmem:[%s394 + $0x70] sm:$0xff]
        %v478 = vld [vmem:[%s394 + $0x78] sm:$0xff]
        %v479 = vld [vmem:[%s394 + $0x80] sm:$0xff]
        %v480 = vld [vmem:[%s394 + $0x88] sm:$0xff]
        %v481 = vld [vmem:[%s394 + $0x90] sm:$0xff]
        %v482 = vld [vmem:[%s394 + $0x98] sm:$0xff]
        %v483 = vld [vmem:[%s394 + $0xa0] sm:$0xff]
        %v484 = vld [vmem:[%s394 + $0xa8] sm:$0xff]
        %v485 = vld [vmem:[%s394 + $0xb0] sm:$0xff]
        %v486 = vld [vmem:[%s394 + $0xb8] sm:$0xff]
        %v487 = vld [vmem:[%s394 + $0xc0] sm:$0xff]
        %v488 = vld [vmem:[%s394 + $0xc8] sm:$0xff]
        %v489 = vld [vmem:[%s394 + $0xd0] sm:$0xff]
        %v490 = vld [vmem:[%s394 + $0xd8] sm:$0xff]
        %v491 = vld [vmem:[%s394 + $0xe0] sm:$0xff]
        %v492 = vld [vmem:[%s394 + $0xe8] sm:$0xff]
        %v493 = vld [vmem:[%s394 + $0xf0] sm:$0xff]
        %v494 = vld [vmem:[%s394 + $0xf8] sm:$0xff]
        %v495 = vld [vmem:[%s394 + $0x100] sm:$0xff]
        %v496 = vld [vmem:[%s394 + $0x108] sm:$0xff]
        %v497 = vld [vmem:[%s394 + $0x110] sm:$0xff]
        %v498 = vld [vmem:[%s394 + $0x118] sm:$0xff]
        %v499 = vld [vmem:[%s394 + $0x120] sm:$0xff]
        %v500 = vld [vmem:[%s394 + $0x128] sm:$0xff]
        %v501 = vld [vmem:[%s394 + $0x130] sm:$0xff]
        %v502 = vld [vmem:[%s394 + $0x138] sm:$0xff]
        %v503 = vld [vmem:[%s394 + $0x140] sm:$0xff]
        %v504 = vld [vmem:[%s394 + $0x148] sm:$0xff]
        %v505 = vld [vmem:[%s394 + $0x150] sm:$0xff]
        %v506 = vld [vmem:[%s394 + $0x158] sm:$0xff]
        %v507 = vld [vmem:[%s394 + $0x160] sm:$0xff]
        %v508 = vld [vmem:[%s394 + $0x168] sm:$0xff]
        %v509 = vld [vmem:[%s394 + $0x170] sm:$0xff]
        %v510 = vld [vmem:[%s394 + $0x178] sm:$0xff]
        %v511 = vld [vmem:[%s394 + $0x180] sm:$0xff]
        %v512 = vld [vmem:[%s394 + $0x188] sm:$0xff]
        %v513 = vld [vmem:[%s394 + $0x190] sm:$0xff]
        %v514 = vld [vmem:[%s394 + $0x198] sm:$0xff]
        %v515 = vld [vmem:[%s394 + $0x1a0] sm:$0xff]
        %v516 = vld [vmem:[%s394 + $0x1a8] sm:$0xff]
        %v517 = vld [vmem:[%s394 + $0x1b0] sm:$0xff]
        %v518 = vld [vmem:[%s394 + $0x1b8] sm:$0xff]
        %v519 = vld [vmem:[%s394 + $0x1c0] sm:$0xff]
        %v520 = vld [vmem:[%s394 + $0x1c8] sm:$0xff]
        %v521 = vld [vmem:[%s394 + $0x1d0] sm:$0xff]
        %v522 = vld [vmem:[%s394 + $0x1d8] sm:$0xff]
        %v523 = vld [vmem:[%s394 + $0x1e0] sm:$0xff]
        %v524 = vld [vmem:[%s394 + $0x1e8] sm:$0xff]
        %v525 = vld [vmem:[%s394 + $0x1f0] sm:$0xff]
        %v526 = vld [vmem:[%s394 + $0x1f8] sm:$0xff]
        %v527 = vld [vmem:[%s394 + $0x200] sm:$0xff]
        %v528 = vld [vmem:[%s394 + $0x208] sm:$0xff]
        %v529 = vld [vmem:[%s394 + $0x210] sm:$0xff]
        %v530 = vld [vmem:[%s394 + $0x218] sm:$0xff]
        %v531 = vld [vmem:[%s394 + $0x220] sm:$0xff]
        %v532 = vld [vmem:[%s394 + $0x228] sm:$0xff]
        %v533 = vld [vmem:[%s394 + $0x230] sm:$0xff]
        %v534 = vld [vmem:[%s394 + $0x238] sm:$0xff]
        %v535 = vld [vmem:[%s394 + $0x240] sm:$0xff]
        %v536 = vld [vmem:[%s394 + $0x248] sm:$0xff]
        %v537 = vld [vmem:[%s394 + $0x250] sm:$0xff]
        %v538 = vld [vmem:[%s394 + $0x258] sm:$0xff]
        %v539 = vld [vmem:[%s394 + $0x260] sm:$0xff]
        %v540 = vld [vmem:[%s394 + $0x268] sm:$0xff]
        %v541 = vld [vmem:[%s394 + $0x270] sm:$0xff]
        %v542 = vld [vmem:[%s394 + $0x278] sm:$0xff]
        %v543 = vld [vmem:[%s394 + $0x280] sm:$0xff]
        %v544 = vld [vmem:[%s394 + $0x288] sm:$0xff]
        %v545 = vld [vmem:[%s394 + $0x290] sm:$0xff]
        %v546 = vld [vmem:[%s394 + $0x298] sm:$0xff]
        %v547 = vld [vmem:[%s394 + $0x2a0] sm:$0xff]
        %v548 = vld [vmem:[%s394 + $0x2a8] sm:$0xff]
        %v549 = vld [vmem:[%s394 + $0x2b0] sm:$0xff]
        %v550 = vld [vmem:[%s394 + $0x2b8] sm:$0xff]
        %v551 = vld [vmem:[%s394 + $0x2c0] sm:$0xff]
        %v552 = vld [vmem:[%s394 + $0x2c8] sm:$0xff]
        %v553 = vld [vmem:[%s394 + $0x2d0] sm:$0xff]
        %v554 = vld [vmem:[%s394 + $0x2d8] sm:$0xff]
        %v555 = vld [vmem:[%s394 + $0x2e0] sm:$0xff]
        %v556 = vld [vmem:[%s394 + $0x2e8] sm:$0xff]
        %v557 = vld [vmem:[%s394 + $0x2f0] sm:$0xff]
        %v558 = vld [vmem:[%s394 + $0x2f8] sm:$0xff]
        %v559 = vld [vmem:[%s394 + $0x300] sm:$0xff]
        %v560 = vld [vmem:[%s394 + $0x308] sm:$0xff]
        %v561 = vld [vmem:[%s394 + $0x310] sm:$0xff]
        %v562 = vld [vmem:[%s394 + $0x318] sm:$0xff]
        %v563 = vld [vmem:[%s394 + $0x320] sm:$0xff]
        %v564 = vld [vmem:[%s394 + $0x328] sm:$0xff]
        %v565 = vld [vmem:[%s394 + $0x330] sm:$0xff]
        %v566 = vld [vmem:[%s394 + $0x338] sm:$0xff]
        %v567 = vld [vmem:[%s394 + $0x340] sm:$0xff]
        %v568 = vld [vmem:[%s394 + $0x348] sm:$0xff]
        %v569 = vld [vmem:[%s394 + $0x350] sm:$0xff]
        %v570 = vld [vmem:[%s394 + $0x358] sm:$0xff]
        %v571 = vld [vmem:[%s394 + $0x360] sm:$0xff]
        %v572 = vld [vmem:[%s394 + $0x368] sm:$0xff]
        %v573 = vld [vmem:[%s394 + $0x370] sm:$0xff]
        %v574 = vld [vmem:[%s394 + $0x378] sm:$0xff]
        %v575 = vld [vmem:[%s394 + $0x380] sm:$0xff]
        %v576 = vld [vmem:[%s394 + $0x388] sm:$0xff]
        %v577 = vld [vmem:[%s394 + $0x390] sm:$0xff]
        %v578 = vld [vmem:[%s394 + $0x398] sm:$0xff]
        %v579 = vld [vmem:[%s394 + $0x3a0] sm:$0xff]
        %v580 = vld [vmem:[%s394 + $0x3a8] sm:$0xff]
        %v581 = vld [vmem:[%s394 + $0x3b0] sm:$0xff]
        %v582 = vld [vmem:[%s394 + $0x3b8] sm:$0xff]
        %v583 = vld [vmem:[%s394 + $0x3c0] sm:$0xff]
        %v584 = vld [vmem:[%s394 + $0x3c8] sm:$0xff]
        %v585 = vld [vmem:[%s394 + $0x3d0] sm:$0xff]
        %v586 = vld [vmem:[%s394 + $0x3d8] sm:$0xff]
        %v587 = vld [vmem:[%s394 + $0x3e0] sm:$0xff]
        %v588 = vld [vmem:[%s394 + $0x3e8] sm:$0xff]
        %v589 = vld [vmem:[%s394 + $0x3f0] sm:$0xff]
        %v590 = vld [vmem:[%s394 + $0x3f8] sm:$0xff]
        %v591 = vmul.f32 %v463, %v439
        %v592 = vmul.f32 %v464, %v439
        %v593 = vmul.f32 %v465, %v439
        %v594 = vmul.f32 %v466, %v439
        %v595 = vmul.f32 %v467, %v439
        %v596 = vmul.f32 %v468, %v439
        %v597 = vmul.f32 %v469, %v439
        %v598 = vmul.f32 %v470, %v439
        %v599 = vmul.f32 %v471, %v439
        %v600 = vmul.f32 %v472, %v439
        %v601 = vmul.f32 %v473, %v439
        %v602 = vmul.f32 %v474, %v439
        %v603 = vmul.f32 %v475, %v439
        %v604 = vmul.f32 %v476, %v439
        %v605 = vmul.f32 %v477, %v439
        %v606 = vmul.f32 %v478, %v439
        %v607 = vmul.f32 %v479, %v439
        %v608 = vmul.f32 %v480, %v439
        %v609 = vmul.f32 %v481, %v439
        %v610 = vmul.f32 %v482, %v439
        %v611 = vmul.f32 %v483, %v439
        %v612 = vmul.f32 %v484, %v439
        %v613 = vmul.f32 %v485, %v439
        %v614 = vmul.f32 %v486, %v439
        %v615 = vmul.f32 %v487, %v439
        %v616 = vmul.f32 %v488, %v439
        %v617 = vmul.f32 %v489, %v439
        %v618 = vmul.f32 %v490, %v439
        %v619 = vmul.f32 %v491, %v439
        %v620 = vmul.f32 %v492, %v439
        %v621 = vmul.f32 %v493, %v439
        %v622 = vmul.f32 %v494, %v439
        %v623 = vmul.f32 %v495, %v440
        %v624 = vmul.f32 %v496, %v440
        %v625 = vmul.f32 %v497, %v440
        %v626 = vmul.f32 %v498, %v440
        %v627 = vmul.f32 %v499, %v440
        %v628 = vmul.f32 %v500, %v440
        %v629 = vmul.f32 %v501, %v440
        %v630 = vmul.f32 %v502, %v440
        %v631 = vmul.f32 %v503, %v440
        %v632 = vmul.f32 %v504, %v440
        %v633 = vmul.f32 %v505, %v440
        %v634 = vmul.f32 %v506, %v440
        %v635 = vmul.f32 %v507, %v440
        %v636 = vmul.f32 %v508, %v440
        %v637 = vmul.f32 %v509, %v440
        %v638 = vmul.f32 %v510, %v440
        %v639 = vmul.f32 %v511, %v440
        %v640 = vmul.f32 %v512, %v440
        %v641 = vmul.f32 %v513, %v440
        %v642 = vmul.f32 %v514, %v440
        %v643 = vmul.f32 %v515, %v440
        %v644 = vmul.f32 %v516, %v440
        %v645 = vmul.f32 %v517, %v440
        %v646 = vmul.f32 %v518, %v440
        %v647 = vmul.f32 %v519, %v440
        %v648 = vmul.f32 %v520, %v440
        %v649 = vmul.f32 %v521, %v440
        %v650 = vmul.f32 %v522, %v440
        %v651 = vmul.f32 %v523, %v440
        %v652 = vmul.f32 %v524, %v440
        %v653 = vmul.f32 %v525, %v440
        %v654 = vmul.f32 %v526, %v440
        %v655 = vmul.f32 %v527, %v441
        %v656 = vmul.f32 %v528, %v441
        %v657 = vmul.f32 %v529, %v441
        %v658 = vmul.f32 %v530, %v441
        %v659 = vmul.f32 %v531, %v441
        %v660 = vmul.f32 %v532, %v441
        %v661 = vmul.f32 %v533, %v441
        %v662 = vmul.f32 %v534, %v441
        %v663 = vmul.f32 %v535, %v441
        %v664 = vmul.f32 %v536, %v441
        %v665 = vmul.f32 %v537, %v441
        %v666 = vmul.f32 %v538, %v441
        %v667 = vmul.f32 %v539, %v441
        %v668 = vmul.f32 %v540, %v441
        %v669 = vmul.f32 %v541, %v441
        %v670 = vmul.f32 %v542, %v441
        %v671 = vmul.f32 %v543, %v441
        %v672 = vmul.f32 %v544, %v441
        %v673 = vmul.f32 %v545, %v441
        %v674 = vmul.f32 %v546, %v441
        %v675 = vmul.f32 %v547, %v441
        %v676 = vmul.f32 %v548, %v441
        %v677 = vmul.f32 %v549, %v441
        %v678 = vmul.f32 %v550, %v441
        %v679 = vmul.f32 %v551, %v441
        %v680 = vmul.f32 %v552, %v441
        %v681 = vmul.f32 %v553, %v441
        %v682 = vmul.f32 %v554, %v441
        %v683 = vmul.f32 %v555, %v441
        %v684 = vmul.f32 %v556, %v441
        %v685 = vmul.f32 %v557, %v441
        %v686 = vmul.f32 %v558, %v441
        %v687 = vmul.f32 %v559, %v442
        %v688 = vmul.f32 %v560, %v442
        %v689 = vmul.f32 %v561, %v442
        %v690 = vmul.f32 %v562, %v442
        %v691 = vmul.f32 %v563, %v442
        %v692 = vmul.f32 %v564, %v442
        %v693 = vmul.f32 %v565, %v442
        %v694 = vmul.f32 %v566, %v442
        %v695 = vmul.f32 %v567, %v442
        %v696 = vmul.f32 %v568, %v442
        %v697 = vmul.f32 %v569, %v442
        %v698 = vmul.f32 %v570, %v442
        %v699 = vmul.f32 %v571, %v442
        %v700 = vmul.f32 %v572, %v442
        %v701 = vmul.f32 %v573, %v442
        %v702 = vmul.f32 %v574, %v442
        %v703 = vmul.f32 %v575, %v442
        %v704 = vmul.f32 %v576, %v442
        %v705 = vmul.f32 %v577, %v442
        %v706 = vmul.f32 %v578, %v442
        %v707 = vmul.f32 %v579, %v442
        %v708 = vmul.f32 %v580, %v442
        %v709 = vmul.f32 %v581, %v442
        %v710 = vmul.f32 %v582, %v442
        %v711 = vmul.f32 %v583, %v442
        %v712 = vmul.f32 %v584, %v442
        %v713 = vmul.f32 %v585, %v442
        %v714 = vmul.f32 %v586, %v442
        %v715 = vmul.f32 %v587, %v442
        %v716 = vmul.f32 %v588, %v442
        %v717 = vmul.f32 %v589, %v442
        %v718 = vmul.f32 %v590, %v442
        %v719 = vadd.f32 %v591, %v459
        %v720 = vadd.f32 %v592, %v459
        %v721 = vadd.f32 %v593, %v459
        %v722 = vadd.f32 %v594, %v459
        %v723 = vadd.f32 %v595, %v459
        %v724 = vadd.f32 %v596, %v459
        %v725 = vadd.f32 %v597, %v459
        %v726 = vadd.f32 %v598, %v459
        %v727 = vadd.f32 %v599, %v459
        %v728 = vadd.f32 %v600, %v459
        %v729 = vadd.f32 %v601, %v459
        %v730 = vadd.f32 %v602, %v459
        %v731 = vadd.f32 %v603, %v459
        %v732 = vadd.f32 %v604, %v459
        %v733 = vadd.f32 %v605, %v459
        %v734 = vadd.f32 %v606, %v459
        %v735 = vadd.f32 %v607, %v459
        %v736 = vadd.f32 %v608, %v459
        %v737 = vadd.f32 %v609, %v459
        %v738 = vadd.f32 %v610, %v459
        %v739 = vadd.f32 %v611, %v459
        %v740 = vadd.f32 %v612, %v459
        %v741 = vadd.f32 %v613, %v459
        %v742 = vadd.f32 %v614, %v459
        %v743 = vadd.f32 %v615, %v459
        %v744 = vadd.f32 %v616, %v459
        %v745 = vadd.f32 %v617, %v459
        %v746 = vadd.f32 %v618, %v459
        %v747 = vadd.f32 %v619, %v459
        %v748 = vadd.f32 %v620, %v459
        %v749 = vadd.f32 %v621, %v459
        %v750 = vadd.f32 %v622, %v459
        %v751 = vadd.f32 %v623, %v460
        %v752 = vadd.f32 %v624, %v460
        %v753 = vadd.f32 %v625, %v460
        %v754 = vadd.f32 %v626, %v460
        %v755 = vadd.f32 %v627, %v460
        %v756 = vadd.f32 %v628, %v460
        %v757 = vadd.f32 %v629, %v460
        %v758 = vadd.f32 %v630, %v460
        %v759 = vadd.f32 %v631, %v460
        %v760 = vadd.f32 %v632, %v460
        %v761 = vadd.f32 %v633, %v460
        %v762 = vadd.f32 %v634, %v460
        %v763 = vadd.f32 %v635, %v460
        %v764 = vadd.f32 %v636, %v460
        %v765 = vadd.f32 %v637, %v460
        %v766 = vadd.f32 %v638, %v460
        %v767 = vadd.f32 %v639, %v460
        %v768 = vadd.f32 %v640, %v460
        %v769 = vadd.f32 %v641, %v460
        %v770 = vadd.f32 %v642, %v460
        %v771 = vadd.f32 %v643, %v460
        %v772 = vadd.f32 %v644, %v460
        %v773 = vadd.f32 %v645, %v460
        %v774 = vadd.f32 %v646, %v460
        %v775 = vadd.f32 %v647, %v460
        %v776 = vadd.f32 %v648, %v460
        %v777 = vadd.f32 %v649, %v460
        %v778 = vadd.f32 %v650, %v460
        %v779 = vadd.f32 %v651, %v460
        %v780 = vadd.f32 %v652, %v460
        %v781 = vadd.f32 %v653, %v460
        %v782 = vadd.f32 %v654, %v460
        %v783 = vadd.f32 %v655, %v461
        %v784 = vadd.f32 %v656, %v461
        %v785 = vadd.f32 %v657, %v461
        %v786 = vadd.f32 %v658, %v461
        %v787 = vadd.f32 %v659, %v461
        %v788 = vadd.f32 %v660, %v461
        %v789 = vadd.f32 %v661, %v461
        %v790 = vadd.f32 %v662, %v461
        %v791 = vadd.f32 %v663, %v461
        %v792 = vadd.f32 %v664, %v461
        %v793 = vadd.f32 %v665, %v461
        %v794 = vadd.f32 %v666, %v461
        %v795 = vadd.f32 %v667, %v461
        %v796 = vadd.f32 %v668, %v461
        %v797 = vadd.f32 %v669, %v461
        %v798 = vadd.f32 %v670, %v461
        %v799 = vadd.f32 %v671, %v461
        %v800 = vadd.f32 %v672, %v461
        %v801 = vadd.f32 %v673, %v461
        %v802 = vadd.f32 %v674, %v461
        %v803 = vadd.f32 %v675, %v461
        %v804 = vadd.f32 %v676, %v461
        %v805 = vadd.f32 %v677, %v461
        %v806 = vadd.f32 %v678, %v461
        %v807 = vadd.f32 %v679, %v461
        %v808 = vadd.f32 %v680, %v461
        %v809 = vadd.f32 %v681, %v461
        %v810 = vadd.f32 %v682, %v461
        %v811 = vadd.f32 %v683, %v461
        %v812 = vadd.f32 %v684, %v461
        %v813 = vadd.f32 %v685, %v461
        %v814 = vadd.f32 %v686, %v461
        %v815 = vadd.f32 %v687, %v462
        %v816 = vadd.f32 %v688, %v462
        %v817 = vadd.f32 %v689, %v462
        %v818 = vadd.f32 %v690, %v462
        %v819 = vadd.f32 %v691, %v462
        %v820 = vadd.f32 %v692, %v462
        %v821 = vadd.f32 %v693, %v462
        %v822 = vadd.f32 %v694, %v462
        %v823 = vadd.f32 %v695, %v462
        %v824 = vadd.f32 %v696, %v462
        %v825 = vadd.f32 %v697, %v462
        %v826 = vadd.f32 %v698, %v462
        %v827 = vadd.f32 %v699, %v462
        %v828 = vadd.f32 %v700, %v462
        %v829 = vadd.f32 %v701, %v462
        %v830 = vadd.f32 %v702, %v462
        %v831 = vadd.f32 %v703, %v462
        %v832 = vadd.f32 %v704, %v462
        %v833 = vadd.f32 %v705, %v462
        %v834 = vadd.f32 %v706, %v462
        %v835 = vadd.f32 %v707, %v462
        %v836 = vadd.f32 %v708, %v462
        %v837 = vadd.f32 %v709, %v462
        %v838 = vadd.f32 %v710, %v462
        %v839 = vadd.f32 %v711, %v462
        %v840 = vadd.f32 %v712, %v462
        %v841 = vadd.f32 %v713, %v462
        %v842 = vadd.f32 %v714, %v462
        %v843 = vadd.f32 %v715, %v462
        %v844 = vadd.f32 %v716, %v462
        %v845 = vadd.f32 %v717, %v462
        %v846 = vadd.f32 %v718, %v462
        %v847 = vld [vmem:[%s1] sm:$0xff]
        %v848 = vld [vmem:[%s1 + $0x8] sm:$0xff]
        %v849 = vld [vmem:[%s1 + $0x10] sm:$0xff]
        %v850 = vld [vmem:[%s1 + $0x18] sm:$0xff]
        %vm851 = vcmask 261120
        %v853 = vsel %vm851, %v847, 0
        %v856 = vsel %vm851, %v848, 0
        %v859 = vsel %vm851, %v849, 0
        %v862 = vsel %vm851, %v850, 0
        %864 = vmatprep.subr.mxu0 0.0
        %865 = vmatpush1.msra.mxu0 0.0
        %866 = vmatprep.subr.mxu0 0.0
        %867 = vmatpush1.msra.mxu0 0.0
        %868 = vmatprep.subr.mxu0 0.0
        %869 = vmatpush1.msra.mxu0 0.0
        %870 = vmatprep.subr.mxu0 0.0
        %871 = vmatpush1.msra.mxu0 0.0
        %872 = vmatprep.subr.mxu0 0.0
        %873 = vmatpush1.msra.mxu0 0.0
        %874 = vmatprep.subr.mxu0 0.0
        %875 = vmatpush1.msra.mxu0 0.0
        %876 = vmatprep.subr.mxu0 0.0
        %877 = vmatpush1.msra.mxu0 0.0
        %878 = vmatprep.subr.mxu0 0.0
        %879 = vmatpush1.msra.mxu0 0.0
        %880 = vmatprep.subr.mxu0 0.0
        %881 = vmatpush1.msra.mxu0 0.0
        %882 = vmatprep.subr.mxu0 0.0
        %883 = vmatpush1.msra.mxu0 0.0
        %884 = vmatprep.subr.mxu0 0.0
        %885 = vmatpush1.msra.mxu0 0.0
        %886 = vmatprep.subr.mxu0 0.0
        %887 = vmatpush1.msra.mxu0 0.0
        %888 = vmatprep.subr.mxu0 %v816
        %889 = vmatpush1.msra.mxu0 %v815
        %890 = vmatprep.subr.mxu0 %v784
        %891 = vmatpush1.msra.mxu0 %v783
        %892 = vmatprep.subr.mxu0 %v752
        %893 = vmatpush1.msra.mxu0 %v751
        %894 = vmatprep.subr.mxu0 %v720
        %895 = vmatpush1.msra.mxu0 %v719
        %896 = vmatprep.subr.mxu0 0.0
        %897 = vmatpush2.msra.mxu0 0.0
        %898 = vmatprep.subr.mxu0 0.0
        %899 = vmatpush2.msra.mxu0 0.0
        %900 = vmatprep.subr.mxu0 0.0
        %901 = vmatpush2.msra.mxu0 0.0
        %902 = vmatprep.subr.mxu0 0.0
        %903 = vmatpush2.msra.mxu0 0.0
        %904 = vmatprep.subr.mxu0 0.0
        %905 = vmatpush2.msra.mxu0 0.0
        %906 = vmatprep.subr.mxu0 0.0
        %907 = vmatpush2.msra.mxu0 0.0
        %908 = vmatprep.subr.mxu0 0.0
        %909 = vmatpush2.msra.mxu0 0.0
        %910 = vmatprep.subr.mxu0 0.0
        %911 = vmatpush2.msra.mxu0 0.0
        %912 = vmatprep.subr.mxu0 0.0
        %913 = vmatpush2.msra.mxu0 0.0
        %914 = vmatprep.subr.mxu0 0.0
        %915 = vmatpush2.msra.mxu0 0.0
        %916 = vmatprep.subr.mxu0 0.0
        %917 = vmatpush2.msra.mxu0 0.0
        %918 = vmatprep.subr.mxu0 0.0
        %919 = vmatpush2.msra.mxu0 0.0
        %920 = vmatprep.subr.mxu0 0.0
        %921 = vmatpush2.msra.mxu0 0.0
        %922 = vmatprep.subr.mxu0 0.0
        %923 = vmatpush2.msra.mxu0 0.0
        %924 = vmatprep.subr.mxu0 0.0
        %925 = vmatpush2.msra.mxu0 0.0
        %926 = vmatprep.subr.mxu0 0.0
        %927 = vmatpush2.msra.mxu0 0.0
        %928 = vmatprep.mubr.f32.mxu0 0.0
        %929 = vmatmul.mubr.f32.gmra.mxu0 %v853
        %v930 = vpop.f32.mrf.mxu0
        %v931 = vadd.f32 0.0, %v930
        %v932 = vpop.f32.mrf.mxu0
        %v933 = vadd.f32 0.0, %v932
        %934 = vmatprep.mubr.f32.mxu0 0.0
        %935 = vmatmul.mubr.f32.gmra.mxu0 %v856
        %v936 = vpop.f32.mrf.mxu0
        %v937 = vadd.f32 0.0, %v936
        %v938 = vpop.f32.mrf.mxu0
        %v939 = vadd.f32 0.0, %v938
        %940 = vmatprep.mubr.f32.mxu0 0.0
        %941 = vmatmul.mubr.f32.gmra.mxu0 %v859
        %v942 = vpop.f32.mrf.mxu0
        %v943 = vadd.f32 0.0, %v942
        %v944 = vpop.f32.mrf.mxu0
        %v945 = vadd.f32 0.0, %v944
        %946 = vmatprep.mubr.f32.mxu0 0.0
        %947 = vmatmul.mubr.f32.gmra.mxu0 %v862
        %v948 = vpop.f32.mrf.mxu0
        %v949 = vadd.f32 0.0, %v948
        %v950 = vpop.f32.mrf.mxu0
        %v951 = vadd.f32 0.0, %v950
        %952 = vdwg.mxu0
        %953 = vmatprep.subr.mxu0 0.0
        %954 = vmatpush1.msra.mxu0 0.0
        %955 = vmatprep.subr.mxu0 0.0
        %956 = vmatpush1.msra.mxu0 0.0
        %957 = vmatprep.subr.mxu0 0.0
        %958 = vmatpush1.msra.mxu0 0.0
        %959 = vmatprep.subr.mxu0 0.0
        %960 = vmatpush1.msra.mxu0 0.0
        %961 = vmatprep.subr.mxu0 0.0
        %962 = vmatpush1.msra.mxu0 0.0
        %963 = vmatprep.subr.mxu0 0.0
        %964 = vmatpush1.msra.mxu0 0.0
        %965 = vmatprep.subr.mxu0 0.0
        %966 = vmatpush1.msra.mxu0 0.0
        %967 = vmatprep.subr.mxu0 0.0
        %968 = vmatpush1.msra.mxu0 0.0
        %969 = vmatprep.subr.mxu0 0.0
        %970 = vmatpush1.msra.mxu0 0.0
        %971 = vmatprep.subr.mxu0 0.0
        %972 = vmatpush1.msra.mxu0 0.0
        %973 = vmatprep.subr.mxu0 0.0
        %974 = vmatpush1.msra.mxu0 0.0
        %975 = vmatprep.subr.mxu0 0.0
        %976 = vmatpush1.msra.mxu0 0.0
        %977 = vmatprep.subr.mxu0 %v818
        %978 = vmatpush1.msra.mxu0 %v817
        %979 = vmatprep.subr.mxu0 %v786
        %980 = vmatpush1.msra.mxu0 %v785
        %981 = vmatprep.subr.mxu0 %v754
        %982 = vmatpush1.msra.mxu0 %v753
        %983 = vmatprep.subr.mxu0 %v722
        %984 = vmatpush1.msra.mxu0 %v721
        %985 = vmatprep.subr.mxu0 0.0
        %986 = vmatpush2.msra.mxu0 0.0
        %987 = vmatprep.subr.mxu0 0.0
        %988 = vmatpush2.msra.mxu0 0.0
        %989 = vmatprep.subr.mxu0 0.0
        %990 = vmatpush2.msra.mxu0 0.0
        %991 = vmatprep.subr.mxu0 0.0
        %992 = vmatpush2.msra.mxu0 0.0
        %993 = vmatprep.subr.mxu0 0.0
        %994 = vmatpush2.msra.mxu0 0.0
        %995 = vmatprep.subr.mxu0 0.0
        %996 = vmatpush2.msra.mxu0 0.0
        %997 = vmatprep.subr.mxu0 0.0
        %998 = vmatpush2.msra.mxu0 0.0
        %999 = vmatprep.subr.mxu0 0.0
        %1000 = vmatpush2.msra.mxu0 0.0
        %1001 = vmatprep.subr.mxu0 0.0
        %1002 = vmatpush2.msra.mxu0 0.0
        %1003 = vmatprep.subr.mxu0 0.0
        %1004 = vmatpush2.msra.mxu0 0.0
        %1005 = vmatprep.subr.mxu0 0.0
        %1006 = vmatpush2.msra.mxu0 0.0
        %1007 = vmatprep.subr.mxu0 0.0
        %1008 = vmatpush2.msra.mxu0 0.0
        %1009 = vmatprep.subr.mxu0 0.0
        %1010 = vmatpush2.msra.mxu0 0.0
        %1011 = vmatprep.subr.mxu0 0.0
        %1012 = vmatpush2.msra.mxu0 0.0
        %1013 = vmatprep.subr.mxu0 0.0
        %1014 = vmatpush2.msra.mxu0 0.0
        %1015 = vmatprep.subr.mxu0 0.0
        %1016 = vmatpush2.msra.mxu0 0.0
        %1017 = vmatprep.mubr.f32.mxu0 0.0
        %1018 = vmatmul.mubr.f32.gmra.mxu0 %v853
        %v1019 = vpop.f32.mrf.mxu0
        %v1020 = vadd.f32 0.0, %v1019
        %v1021 = vpop.f32.mrf.mxu0
        %v1022 = vadd.f32 0.0, %v1021
        %1023 = vmatprep.mubr.f32.mxu0 0.0
        %1024 = vmatmul.mubr.f32.gmra.mxu0 %v856
        %v1025 = vpop.f32.mrf.mxu0
        %v1026 = vadd.f32 0.0, %v1025
        %v1027 = vpop.f32.mrf.mxu0
        %v1028 = vadd.f32 0.0, %v1027
        %1029 = vmatprep.mubr.f32.mxu0 0.0
        %1030 = vmatmul.mubr.f32.gmra.mxu0 %v859
        %v1031 = vpop.f32.mrf.mxu0
        %v1032 = vadd.f32 0.0, %v1031
        %v1033 = vpop.f32.mrf.mxu0
        %v1034 = vadd.f32 0.0, %v1033
        %1035 = vmatprep.mubr.f32.mxu0 0.0
        %1036 = vmatmul.mubr.f32.gmra.mxu0 %v862
        %v1037 = vpop.f32.mrf.mxu0
        %v1038 = vadd.f32 0.0, %v1037
        %v1039 = vpop.f32.mrf.mxu0
        %v1040 = vadd.f32 0.0, %v1039
        %1041 = vdwg.mxu0
        %1042 = vmatprep.subr.mxu0 0.0
        %1043 = vmatpush1.msra.mxu0 0.0
        %1044 = vmatprep.subr.mxu0 0.0
        %1045 = vmatpush1.msra.mxu0 0.0
        %1046 = vmatprep.subr.mxu0 0.0
        %1047 = vmatpush1.msra.mxu0 0.0
        %1048 = vmatprep.subr.mxu0 0.0
        %1049 = vmatpush1.msra.mxu0 0.0
        %1050 = vmatprep.subr.mxu0 0.0
        %1051 = vmatpush1.msra.mxu0 0.0
        %1052 = vmatprep.subr.mxu0 0.0
        %1053 = vmatpush1.msra.mxu0 0.0
        %1054 = vmatprep.subr.mxu0 0.0
        %1055 = vmatpush1.msra.mxu0 0.0
        %1056 = vmatprep.subr.mxu0 0.0
        %1057 = vmatpush1.msra.mxu0 0.0
        %1058 = vmatprep.subr.mxu0 0.0
        %1059 = vmatpush1.msra.mxu0 0.0
        %1060 = vmatprep.subr.mxu0 0.0
        %1061 = vmatpush1.msra.mxu0 0.0
        %1062 = vmatprep.subr.mxu0 0.0
        %1063 = vmatpush1.msra.mxu0 0.0
        %1064 = vmatprep.subr.mxu0 0.0
        %1065 = vmatpush1.msra.mxu0 0.0
        %1066 = vmatprep.subr.mxu0 %v820
        %1067 = vmatpush1.msra.mxu0 %v819
        %1068 = vmatprep.subr.mxu0 %v788
        %1069 = vmatpush1.msra.mxu0 %v787
        %1070 = vmatprep.subr.mxu0 %v756
        %1071 = vmatpush1.msra.mxu0 %v755
        %1072 = vmatprep.subr.mxu0 %v724
        %1073 = vmatpush1.msra.mxu0 %v723
        %1074 = vmatprep.subr.mxu0 0.0
        %1075 = vmatpush2.msra.mxu0 0.0
        %1076 = vmatprep.subr.mxu0 0.0
        %1077 = vmatpush2.msra.mxu0 0.0
        %1078 = vmatprep.subr.mxu0 0.0
        %1079 = vmatpush2.msra.mxu0 0.0
        %1080 = vmatprep.subr.mxu0 0.0
        %1081 = vmatpush2.msra.mxu0 0.0
        %1082 = vmatprep.subr.mxu0 0.0
        %1083 = vmatpush2.msra.mxu0 0.0
        %1084 = vmatprep.subr.mxu0 0.0
        %1085 = vmatpush2.msra.mxu0 0.0
        %1086 = vmatprep.subr.mxu0 0.0
        %1087 = vmatpush2.msra.mxu0 0.0
        %1088 = vmatprep.subr.mxu0 0.0
        %1089 = vmatpush2.msra.mxu0 0.0
        %1090 = vmatprep.subr.mxu0 0.0
        %1091 = vmatpush2.msra.mxu0 0.0
        %1092 = vmatprep.subr.mxu0 0.0
        %1093 = vmatpush2.msra.mxu0 0.0
        %1094 = vmatprep.subr.mxu0 0.0
        %1095 = vmatpush2.msra.mxu0 0.0
        %1096 = vmatprep.subr.mxu0 0.0
        %1097 = vmatpush2.msra.mxu0 0.0
        %1098 = vmatprep.subr.mxu0 0.0
        %1099 = vmatpush2.msra.mxu0 0.0
        %1100 = vmatprep.subr.mxu0 0.0
        %1101 = vmatpush2.msra.mxu0 0.0
        %1102 = vmatprep.subr.mxu0 0.0
        %1103 = vmatpush2.msra.mxu0 0.0
        %1104 = vmatprep.subr.mxu0 0.0
        %1105 = vmatpush2.msra.mxu0 0.0
        %1106 = vmatprep.mubr.f32.mxu0 0.0
        %1107 = vmatmul.mubr.f32.gmra.mxu0 %v853
        %v1108 = vpop.f32.mrf.mxu0
        %v1109 = vadd.f32 0.0, %v1108
        %v1110 = vpop.f32.mrf.mxu0
        %v1111 = vadd.f32 0.0, %v1110
        %1112 = vmatprep.mubr.f32.mxu0 0.0
        %1113 = vmatmul.mubr.f32.gmra.mxu0 %v856
        %v1114 = vpop.f32.mrf.mxu0
        %v1115 = vadd.f32 0.0, %v1114
        %v1116 = vpop.f32.mrf.mxu0
        %v1117 = vadd.f32 0.0, %v1116
        %1118 = vmatprep.mubr.f32.mxu0 0.0
        %1119 = vmatmul.mubr.f32.gmra.mxu0 %v859
        %v1120 = vpop.f32.mrf.mxu0
        %v1121 = vadd.f32 0.0, %v1120
        %v1122 = vpop.f32.mrf.mxu0
        %v1123 = vadd.f32 0.0, %v1122
        %1124 = vmatprep.mubr.f32.mxu0 0.0
        %1125 = vmatmul.mubr.f32.gmra.mxu0 %v862
        %v1126 = vpop.f32.mrf.mxu0
        %v1127 = vadd.f32 0.0, %v1126
        %v1128 = vpop.f32.mrf.mxu0
        %v1129 = vadd.f32 0.0, %v1128
        %1130 = vdwg.mxu0
        %1131 = vmatprep.subr.mxu0 0.0
        %1132 = vmatpush1.msra.mxu0 0.0
        %1133 = vmatprep.subr.mxu0 0.0
        %1134 = vmatpush1.msra.mxu0 0.0
        %1135 = vmatprep.subr.mxu0 0.0
        %1136 = vmatpush1.msra.mxu0 0.0
        %1137 = vmatprep.subr.mxu0 0.0
        %1138 = vmatpush1.msra.mxu0 0.0
        %1139 = vmatprep.subr.mxu0 0.0
        %1140 = vmatpush1.msra.mxu0 0.0
        %1141 = vmatprep.subr.mxu0 0.0
        %1142 = vmatpush1.msra.mxu0 0.0
        %1143 = vmatprep.subr.mxu0 0.0
        %1144 = vmatpush1.msra.mxu0 0.0
        %1145 = vmatprep.subr.mxu0 0.0
        %1146 = vmatpush1.msra.mxu0 0.0
        %1147 = vmatprep.subr.mxu0 0.0
        %1148 = vmatpush1.msra.mxu0 0.0
        %1149 = vmatprep.subr.mxu0 0.0
        %1150 = vmatpush1.msra.mxu0 0.0
        %1151 = vmatprep.subr.mxu0 0.0
        %1152 = vmatpush1.msra.mxu0 0.0
        %1153 = vmatprep.subr.mxu0 0.0
        %1154 = vmatpush1.msra.mxu0 0.0
        %1155 = vmatprep.subr.mxu0 %v822
        %1156 = vmatpush1.msra.mxu0 %v821
        %1157 = vmatprep.subr.mxu0 %v790
        %1158 = vmatpush1.msra.mxu0 %v789
        %1159 = vmatprep.subr.mxu0 %v758
        %1160 = vmatpush1.msra.mxu0 %v757
        %1161 = vmatprep.subr.mxu0 %v726
        %1162 = vmatpush1.msra.mxu0 %v725
        %1163 = vmatprep.subr.mxu0 0.0
        %1164 = vmatpush2.msra.mxu0 0.0
        %1165 = vmatprep.subr.mxu0 0.0
        %1166 = vmatpush2.msra.mxu0 0.0
        %1167 = vmatprep.subr.mxu0 0.0
        %1168 = vmatpush2.msra.mxu0 0.0
        %1169 = vmatprep.subr.mxu0 0.0
        %1170 = vmatpush2.msra.mxu0 0.0
        %1171 = vmatprep.subr.mxu0 0.0
        %1172 = vmatpush2.msra.mxu0 0.0
        %1173 = vmatprep.subr.mxu0 0.0
        %1174 = vmatpush2.msra.mxu0 0.0
        %1175 = vmatprep.subr.mxu0 0.0
        %1176 = vmatpush2.msra.mxu0 0.0
        %1177 = vmatprep.subr.mxu0 0.0
        %1178 = vmatpush2.msra.mxu0 0.0
        %1179 = vmatprep.subr.mxu0 0.0
        %1180 = vmatpush2.msra.mxu0 0.0
        %1181 = vmatprep.subr.mxu0 0.0
        %1182 = vmatpush2.msra.mxu0 0.0
        %1183 = vmatprep.subr.mxu0 0.0
        %1184 = vmatpush2.msra.mxu0 0.0
        %1185 = vmatprep.subr.mxu0 0.0
        %1186 = vmatpush2.msra.mxu0 0.0
        %1187 = vmatprep.subr.mxu0 0.0
        %1188 = vmatpush2.msra.mxu0 0.0
        %1189 = vmatprep.subr.mxu0 0.0
        %1190 = vmatpush2.msra.mxu0 0.0
        %1191 = vmatprep.subr.mxu0 0.0
        %1192 = vmatpush2.msra.mxu0 0.0
        %1193 = vmatprep.subr.mxu0 0.0
        %1194 = vmatpush2.msra.mxu0 0.0
        %1195 = vmatprep.mubr.f32.mxu0 0.0
        %1196 = vmatmul.mubr.f32.gmra.mxu0 %v853
        %v1197 = vpop.f32.mrf.mxu0
        %v1198 = vadd.f32 0.0, %v1197
        %v1199 = vpop.f32.mrf.mxu0
        %v1200 = vadd.f32 0.0, %v1199
        %1201 = vmatprep.mubr.f32.mxu0 0.0
        %1202 = vmatmul.mubr.f32.gmra.mxu0 %v856
        %v1203 = vpop.f32.mrf.mxu0
        %v1204 = vadd.f32 0.0, %v1203
        %v1205 = vpop.f32.mrf.mxu0
        %v1206 = vadd.f32 0.0, %v1205
        %1207 = vmatprep.mubr.f32.mxu0 0.0
        %1208 = vmatmul.mubr.f32.gmra.mxu0 %v859
        %v1209 = vpop.f32.mrf.mxu0
        %v1210 = vadd.f32 0.0, %v1209
        %v1211 = vpop.f32.mrf.mxu0
        %v1212 = vadd.f32 0.0, %v1211
        %1213 = vmatprep.mubr.f32.mxu0 0.0
        %1214 = vmatmul.mubr.f32.gmra.mxu0 %v862
        %v1215 = vpop.f32.mrf.mxu0
        %v1216 = vadd.f32 0.0, %v1215
        %v1217 = vpop.f32.mrf.mxu0
        %v1218 = vadd.f32 0.0, %v1217
        %1219 = vdwg.mxu0
        %1220 = vmatprep.subr.mxu0 0.0
        %1221 = vmatpush1.msra.mxu0 0.0
        %1222 = vmatprep.subr.mxu0 0.0
        %1223 = vmatpush1.msra.mxu0 0.0
        %1224 = vmatprep.subr.mxu0 0.0
        %1225 = vmatpush1.msra.mxu0 0.0
        %1226 = vmatprep.subr.mxu0 0.0
        %1227 = vmatpush1.msra.mxu0 0.0
        %1228 = vmatprep.subr.mxu0 0.0
        %1229 = vmatpush1.msra.mxu0 0.0
        %1230 = vmatprep.subr.mxu0 0.0
        %1231 = vmatpush1.msra.mxu0 0.0
        %1232 = vmatprep.subr.mxu0 0.0
        %1233 = vmatpush1.msra.mxu0 0.0
        %1234 = vmatprep.subr.mxu0 0.0
        %1235 = vmatpush1.msra.mxu0 0.0
        %1236 = vmatprep.subr.mxu0 0.0
        %1237 = vmatpush1.msra.mxu0 0.0
        %1238 = vmatprep.subr.mxu0 0.0
        %1239 = vmatpush1.msra.mxu0 0.0
        %1240 = vmatprep.subr.mxu0 0.0
        %1241 = vmatpush1.msra.mxu0 0.0
        %1242 = vmatprep.subr.mxu0 0.0
        %1243 = vmatpush1.msra.mxu0 0.0
        %1244 = vmatprep.subr.mxu0 %v824
        %1245 = vmatpush1.msra.mxu0 %v823
        %1246 = vmatprep.subr.mxu0 %v792
        %1247 = vmatpush1.msra.mxu0 %v791
        %1248 = vmatprep.subr.mxu0 %v760
        %1249 = vmatpush1.msra.mxu0 %v759
        %1250 = vmatprep.subr.mxu0 %v728
        %1251 = vmatpush1.msra.mxu0 %v727
        %1252 = vmatprep.subr.mxu0 0.0
        %1253 = vmatpush2.msra.mxu0 0.0
        %1254 = vmatprep.subr.mxu0 0.0
        %1255 = vmatpush2.msra.mxu0 0.0
        %1256 = vmatprep.subr.mxu0 0.0
        %1257 = vmatpush2.msra.mxu0 0.0
        %1258 = vmatprep.subr.mxu0 0.0
        %1259 = vmatpush2.msra.mxu0 0.0
        %1260 = vmatprep.subr.mxu0 0.0
        %1261 = vmatpush2.msra.mxu0 0.0
        %1262 = vmatprep.subr.mxu0 0.0
        %1263 = vmatpush2.msra.mxu0 0.0
        %1264 = vmatprep.subr.mxu0 0.0
        %1265 = vmatpush2.msra.mxu0 0.0
        %1266 = vmatprep.subr.mxu0 0.0
        %1267 = vmatpush2.msra.mxu0 0.0
        %1268 = vmatprep.subr.mxu0 0.0
        %1269 = vmatpush2.msra.mxu0 0.0
        %1270 = vmatprep.subr.mxu0 0.0
        %1271 = vmatpush2.msra.mxu0 0.0
        %1272 = vmatprep.subr.mxu0 0.0
        %1273 = vmatpush2.msra.mxu0 0.0
        %1274 = vmatprep.subr.mxu0 0.0
        %1275 = vmatpush2.msra.mxu0 0.0
        %1276 = vmatprep.subr.mxu0 0.0
        %1277 = vmatpush2.msra.mxu0 0.0
        %1278 = vmatprep.subr.mxu0 0.0
        %1279 = vmatpush2.msra.mxu0 0.0
        %1280 = vmatprep.subr.mxu0 0.0
        %1281 = vmatpush2.msra.mxu0 0.0
        %1282 = vmatprep.subr.mxu0 0.0
        %1283 = vmatpush2.msra.mxu0 0.0
        %1284 = vmatprep.mubr.f32.mxu0 0.0
        %1285 = vmatmul.mubr.f32.gmra.mxu0 %v853
        %v1286 = vpop.f32.mrf.mxu0
        %v1287 = vadd.f32 0.0, %v1286
        %v1288 = vpop.f32.mrf.mxu0
        %v1289 = vadd.f32 0.0, %v1288
        %1290 = vmatprep.mubr.f32.mxu0 0.0
        %1291 = vmatmul.mubr.f32.gmra.mxu0 %v856
        %v1292 = vpop.f32.mrf.mxu0
        %v1293 = vadd.f32 0.0, %v1292
        %v1294 = vpop.f32.mrf.mxu0
        %v1295 = vadd.f32 0.0, %v1294
        %1296 = vmatprep.mubr.f32.mxu0 0.0
        %1297 = vmatmul.mubr.f32.gmra.mxu0 %v859
        %v1298 = vpop.f32.mrf.mxu0
        %v1299 = vadd.f32 0.0, %v1298
        %v1300 = vpop.f32.mrf.mxu0
        %v1301 = vadd.f32 0.0, %v1300
        %1302 = vmatprep.mubr.f32.mxu0 0.0
        %1303 = vmatmul.mubr.f32.gmra.mxu0 %v862
        %v1304 = vpop.f32.mrf.mxu0
        %v1305 = vadd.f32 0.0, %v1304
        %v1306 = vpop.f32.mrf.mxu0
        %v1307 = vadd.f32 0.0, %v1306
        %1308 = vdwg.mxu0
        %1309 = vmatprep.subr.mxu0 0.0
        %1310 = vmatpush1.msra.mxu0 0.0
        %1311 = vmatprep.subr.mxu0 0.0
        %1312 = vmatpush1.msra.mxu0 0.0
        %1313 = vmatprep.subr.mxu0 0.0
        %1314 = vmatpush1.msra.mxu0 0.0
        %1315 = vmatprep.subr.mxu0 0.0
        %1316 = vmatpush1.msra.mxu0 0.0
        %1317 = vmatprep.subr.mxu0 0.0
        %1318 = vmatpush1.msra.mxu0 0.0
        %1319 = vmatprep.subr.mxu0 0.0
        %1320 = vmatpush1.msra.mxu0 0.0
        %1321 = vmatprep.subr.mxu0 0.0
        %1322 = vmatpush1.msra.mxu0 0.0
        %1323 = vmatprep.subr.mxu0 0.0
        %1324 = vmatpush1.msra.mxu0 0.0
        %1325 = vmatprep.subr.mxu0 0.0
        %1326 = vmatpush1.msra.mxu0 0.0
        %1327 = vmatprep.subr.mxu0 0.0
        %1328 = vmatpush1.msra.mxu0 0.0
        %1329 = vmatprep.subr.mxu0 0.0
        %1330 = vmatpush1.msra.mxu0 0.0
        %1331 = vmatprep.subr.mxu0 0.0
        %1332 = vmatpush1.msra.mxu0 0.0
        %1333 = vmatprep.subr.mxu0 %v826
        %1334 = vmatpush1.msra.mxu0 %v825
        %1335 = vmatprep.subr.mxu0 %v794
        %1336 = vmatpush1.msra.mxu0 %v793
        %1337 = vmatprep.subr.mxu0 %v762
        %1338 = vmatpush1.msra.mxu0 %v761
        %1339 = vmatprep.subr.mxu0 %v730
        %1340 = vmatpush1.msra.mxu0 %v729
        %1341 = vmatprep.subr.mxu0 0.0
        %1342 = vmatpush2.msra.mxu0 0.0
        %1343 = vmatprep.subr.mxu0 0.0
        %1344 = vmatpush2.msra.mxu0 0.0
        %1345 = vmatprep.subr.mxu0 0.0
        %1346 = vmatpush2.msra.mxu0 0.0
        %1347 = vmatprep.subr.mxu0 0.0
        %1348 = vmatpush2.msra.mxu0 0.0
        %1349 = vmatprep.subr.mxu0 0.0
        %1350 = vmatpush2.msra.mxu0 0.0
        %1351 = vmatprep.subr.mxu0 0.0
        %1352 = vmatpush2.msra.mxu0 0.0
        %1353 = vmatprep.subr.mxu0 0.0
        %1354 = vmatpush2.msra.mxu0 0.0
        %1355 = vmatprep.subr.mxu0 0.0
        %1356 = vmatpush2.msra.mxu0 0.0
        %1357 = vmatprep.subr.mxu0 0.0
        %1358 = vmatpush2.msra.mxu0 0.0
        %1359 = vmatprep.subr.mxu0 0.0
        %1360 = vmatpush2.msra.mxu0 0.0
        %1361 = vmatprep.subr.mxu0 0.0
        %1362 = vmatpush2.msra.mxu0 0.0
        %1363 = vmatprep.subr.mxu0 0.0
        %1364 = vmatpush2.msra.mxu0 0.0
        %1365 = vmatprep.subr.mxu0 0.0
        %1366 = vmatpush2.msra.mxu0 0.0
        %1367 = vmatprep.subr.mxu0 0.0
        %1368 = vmatpush2.msra.mxu0 0.0
        %1369 = vmatprep.subr.mxu0 0.0
        %1370 = vmatpush2.msra.mxu0 0.0
        %1371 = vmatprep.subr.mxu0 0.0
        %1372 = vmatpush2.msra.mxu0 0.0
        %1373 = vmatprep.mubr.f32.mxu0 0.0
        %1374 = vmatmul.mubr.f32.gmra.mxu0 %v853
        %v1375 = vpop.f32.mrf.mxu0
        %v1376 = vadd.f32 0.0, %v1375
        %v1377 = vpop.f32.mrf.mxu0
        %v1378 = vadd.f32 0.0, %v1377
        %1379 = vmatprep.mubr.f32.mxu0 0.0
        %1380 = vmatmul.mubr.f32.gmra.mxu0 %v856
        %v1381 = vpop.f32.mrf.mxu0
        %v1382 = vadd.f32 0.0, %v1381
        %v1383 = vpop.f32.mrf.mxu0
        %v1384 = vadd.f32 0.0, %v1383
        %1385 = vmatprep.mubr.f32.mxu0 0.0
        %1386 = vmatmul.mubr.f32.gmra.mxu0 %v859
        %v1387 = vpop.f32.mrf.mxu0
        %v1388 = vadd.f32 0.0, %v1387
        %v1389 = vpop.f32.mrf.mxu0
        %v1390 = vadd.f32 0.0, %v1389
        %1391 = vmatprep.mubr.f32.mxu0 0.0
        %1392 = vmatmul.mubr.f32.gmra.mxu0 %v862
        %v1393 = vpop.f32.mrf.mxu0
        %v1394 = vadd.f32 0.0, %v1393
        %v1395 = vpop.f32.mrf.mxu0
        %v1396 = vadd.f32 0.0, %v1395
        %1397 = vdwg.mxu0
        %1398 = vmatprep.subr.mxu0 0.0
        %1399 = vmatpush1.msra.mxu0 0.0
        %1400 = vmatprep.subr.mxu0 0.0
        %1401 = vmatpush1.msra.mxu0 0.0
        %1402 = vmatprep.subr.mxu0 0.0
        %1403 = vmatpush1.msra.mxu0 0.0
        %1404 = vmatprep.subr.mxu0 0.0
        %1405 = vmatpush1.msra.mxu0 0.0
        %1406 = vmatprep.subr.mxu0 0.0
        %1407 = vmatpush1.msra.mxu0 0.0
        %1408 = vmatprep.subr.mxu0 0.0
        %1409 = vmatpush1.msra.mxu0 0.0
        %1410 = vmatprep.subr.mxu0 0.0
        %1411 = vmatpush1.msra.mxu0 0.0
        %1412 = vmatprep.subr.mxu0 0.0
        %1413 = vmatpush1.msra.mxu0 0.0
        %1414 = vmatprep.subr.mxu0 0.0
        %1415 = vmatpush1.msra.mxu0 0.0
        %1416 = vmatprep.subr.mxu0 0.0
        %1417 = vmatpush1.msra.mxu0 0.0
        %1418 = vmatprep.subr.mxu0 0.0
        %1419 = vmatpush1.msra.mxu0 0.0
        %1420 = vmatprep.subr.mxu0 0.0
        %1421 = vmatpush1.msra.mxu0 0.0
        %1422 = vmatprep.subr.mxu0 %v828
        %1423 = vmatpush1.msra.mxu0 %v827
        %1424 = vmatprep.subr.mxu0 %v796
        %1425 = vmatpush1.msra.mxu0 %v795
        %1426 = vmatprep.subr.mxu0 %v764
        %1427 = vmatpush1.msra.mxu0 %v763
        %1428 = vmatprep.subr.mxu0 %v732
        %1429 = vmatpush1.msra.mxu0 %v731
        %1430 = vmatprep.subr.mxu0 0.0
        %1431 = vmatpush2.msra.mxu0 0.0
        %1432 = vmatprep.subr.mxu0 0.0
        %1433 = vmatpush2.msra.mxu0 0.0
        %1434 = vmatprep.subr.mxu0 0.0
        %1435 = vmatpush2.msra.mxu0 0.0
        %1436 = vmatprep.subr.mxu0 0.0
        %1437 = vmatpush2.msra.mxu0 0.0
        %1438 = vmatprep.subr.mxu0 0.0
        %1439 = vmatpush2.msra.mxu0 0.0
        %1440 = vmatprep.subr.mxu0 0.0
        %1441 = vmatpush2.msra.mxu0 0.0
        %1442 = vmatprep.subr.mxu0 0.0
        %1443 = vmatpush2.msra.mxu0 0.0
        %1444 = vmatprep.subr.mxu0 0.0
        %1445 = vmatpush2.msra.mxu0 0.0
        %1446 = vmatprep.subr.mxu0 0.0
        %1447 = vmatpush2.msra.mxu0 0.0
        %1448 = vmatprep.subr.mxu0 0.0
        %1449 = vmatpush2.msra.mxu0 0.0
        %1450 = vmatprep.subr.mxu0 0.0
        %1451 = vmatpush2.msra.mxu0 0.0
        %1452 = vmatprep.subr.mxu0 0.0
        %1453 = vmatpush2.msra.mxu0 0.0
        %1454 = vmatprep.subr.mxu0 0.0
        %1455 = vmatpush2.msra.mxu0 0.0
        %1456 = vmatprep.subr.mxu0 0.0
        %1457 = vmatpush2.msra.mxu0 0.0
        %1458 = vmatprep.subr.mxu0 0.0
        %1459 = vmatpush2.msra.mxu0 0.0
        %1460 = vmatprep.subr.mxu0 0.0
        %1461 = vmatpush2.msra.mxu0 0.0
        %1462 = vmatprep.mubr.f32.mxu0 0.0
        %1463 = vmatmul.mubr.f32.gmra.mxu0 %v853
        %v1464 = vpop.f32.mrf.mxu0
        %v1465 = vadd.f32 0.0, %v1464
        %v1466 = vpop.f32.mrf.mxu0
        %v1467 = vadd.f32 0.0, %v1466
        %1468 = vmatprep.mubr.f32.mxu0 0.0
        %1469 = vmatmul.mubr.f32.gmra.mxu0 %v856
        %v1470 = vpop.f32.mrf.mxu0
        %v1471 = vadd.f32 0.0, %v1470
        %v1472 = vpop.f32.mrf.mxu0
        %v1473 = vadd.f32 0.0, %v1472
        %1474 = vmatprep.mubr.f32.mxu0 0.0
        %1475 = vmatmul.mubr.f32.gmra.mxu0 %v859
        %v1476 = vpop.f32.mrf.mxu0
        %v1477 = vadd.f32 0.0, %v1476
        %v1478 = vpop.f32.mrf.mxu0
        %v1479 = vadd.f32 0.0, %v1478
        %1480 = vmatprep.mubr.f32.mxu0 0.0
        %1481 = vmatmul.mubr.f32.gmra.mxu0 %v862
        %v1482 = vpop.f32.mrf.mxu0
        %v1483 = vadd.f32 0.0, %v1482
        %v1484 = vpop.f32.mrf.mxu0
        %v1485 = vadd.f32 0.0, %v1484
        %1486 = vdwg.mxu0
        %1487 = vmatprep.subr.mxu0 0.0
        %1488 = vmatpush1.msra.mxu0 0.0
        %1489 = vmatprep.subr.mxu0 0.0
        %1490 = vmatpush1.msra.mxu0 0.0
        %1491 = vmatprep.subr.mxu0 0.0
        %1492 = vmatpush1.msra.mxu0 0.0
        %1493 = vmatprep.subr.mxu0 0.0
        %1494 = vmatpush1.msra.mxu0 0.0
        %1495 = vmatprep.subr.mxu0 0.0
        %1496 = vmatpush1.msra.mxu0 0.0
        %1497 = vmatprep.subr.mxu0 0.0
        %1498 = vmatpush1.msra.mxu0 0.0
        %1499 = vmatprep.subr.mxu0 0.0
        %1500 = vmatpush1.msra.mxu0 0.0
        %1501 = vmatprep.subr.mxu0 0.0
        %1502 = vmatpush1.msra.mxu0 0.0
        %1503 = vmatprep.subr.mxu0 0.0
        %1504 = vmatpush1.msra.mxu0 0.0
        %1505 = vmatprep.subr.mxu0 0.0
        %1506 = vmatpush1.msra.mxu0 0.0
        %1507 = vmatprep.subr.mxu0 0.0
        %1508 = vmatpush1.msra.mxu0 0.0
        %1509 = vmatprep.subr.mxu0 0.0
        %1510 = vmatpush1.msra.mxu0 0.0
        %1511 = vmatprep.subr.mxu0 %v830
        %1512 = vmatpush1.msra.mxu0 %v829
        %1513 = vmatprep.subr.mxu0 %v798
        %1514 = vmatpush1.msra.mxu0 %v797
        %1515 = vmatprep.subr.mxu0 %v766
        %1516 = vmatpush1.msra.mxu0 %v765
        %1517 = vmatprep.subr.mxu0 %v734
        %1518 = vmatpush1.msra.mxu0 %v733
        %1519 = vmatprep.subr.mxu0 0.0
        %1520 = vmatpush2.msra.mxu0 0.0
        %1521 = vmatprep.subr.mxu0 0.0
        %1522 = vmatpush2.msra.mxu0 0.0
        %1523 = vmatprep.subr.mxu0 0.0
        %1524 = vmatpush2.msra.mxu0 0.0
        %1525 = vmatprep.subr.mxu0 0.0
        %1526 = vmatpush2.msra.mxu0 0.0
        %1527 = vmatprep.subr.mxu0 0.0
        %1528 = vmatpush2.msra.mxu0 0.0
        %1529 = vmatprep.subr.mxu0 0.0
        %1530 = vmatpush2.msra.mxu0 0.0
        %1531 = vmatprep.subr.mxu0 0.0
        %1532 = vmatpush2.msra.mxu0 0.0
        %1533 = vmatprep.subr.mxu0 0.0
        %1534 = vmatpush2.msra.mxu0 0.0
        %1535 = vmatprep.subr.mxu0 0.0
        %1536 = vmatpush2.msra.mxu0 0.0
        %1537 = vmatprep.subr.mxu0 0.0
        %1538 = vmatpush2.msra.mxu0 0.0
        %1539 = vmatprep.subr.mxu0 0.0
        %1540 = vmatpush2.msra.mxu0 0.0
        %1541 = vmatprep.subr.mxu0 0.0
        %1542 = vmatpush2.msra.mxu0 0.0
        %1543 = vmatprep.subr.mxu0 0.0
        %1544 = vmatpush2.msra.mxu0 0.0
        %1545 = vmatprep.subr.mxu0 0.0
        %1546 = vmatpush2.msra.mxu0 0.0
        %1547 = vmatprep.subr.mxu0 0.0
        %1548 = vmatpush2.msra.mxu0 0.0
        %1549 = vmatprep.subr.mxu0 0.0
        %1550 = vmatpush2.msra.mxu0 0.0
        %1551 = vmatprep.mubr.f32.mxu0 0.0
        %1552 = vmatmul.mubr.f32.gmra.mxu0 %v853
        %v1553 = vpop.f32.mrf.mxu0
        %v1554 = vadd.f32 0.0, %v1553
        %v1555 = vpop.f32.mrf.mxu0
        %v1556 = vadd.f32 0.0, %v1555
        %1557 = vmatprep.mubr.f32.mxu0 0.0
        %1558 = vmatmul.mubr.f32.gmra.mxu0 %v856
        %v1559 = vpop.f32.mrf.mxu0
        %v1560 = vadd.f32 0.0, %v1559
        %v1561 = vpop.f32.mrf.mxu0
        %v1562 = vadd.f32 0.0, %v1561
        %1563 = vmatprep.mubr.f32.mxu0 0.0
        %1564 = vmatmul.mubr.f32.gmra.mxu0 %v859
        %v1565 = vpop.f32.mrf.mxu0
        %v1566 = vadd.f32 0.0, %v1565
        %v1567 = vpop.f32.mrf.mxu0
        %v1568 = vadd.f32 0.0, %v1567
        %1569 = vmatprep.mubr.f32.mxu0 0.0
        %1570 = vmatmul.mubr.f32.gmra.mxu0 %v862
        %v1571 = vpop.f32.mrf.mxu0
        %v1572 = vadd.f32 0.0, %v1571
        %v1573 = vpop.f32.mrf.mxu0
        %v1574 = vadd.f32 0.0, %v1573
        %1575 = vdwg.mxu0
        %1576 = vmatprep.subr.mxu0 0.0
        %1577 = vmatpush1.msra.mxu0 0.0
        %1578 = vmatprep.subr.mxu0 0.0
        %1579 = vmatpush1.msra.mxu0 0.0
        %1580 = vmatprep.subr.mxu0 0.0
        %1581 = vmatpush1.msra.mxu0 0.0
        %1582 = vmatprep.subr.mxu0 0.0
        %1583 = vmatpush1.msra.mxu0 0.0
        %1584 = vmatprep.subr.mxu0 0.0
        %1585 = vmatpush1.msra.mxu0 0.0
        %1586 = vmatprep.subr.mxu0 0.0
        %1587 = vmatpush1.msra.mxu0 0.0
        %1588 = vmatprep.subr.mxu0 0.0
        %1589 = vmatpush1.msra.mxu0 0.0
        %1590 = vmatprep.subr.mxu0 0.0
        %1591 = vmatpush1.msra.mxu0 0.0
        %1592 = vmatprep.subr.mxu0 0.0
        %1593 = vmatpush1.msra.mxu0 0.0
        %1594 = vmatprep.subr.mxu0 0.0
        %1595 = vmatpush1.msra.mxu0 0.0
        %1596 = vmatprep.subr.mxu0 0.0
        %1597 = vmatpush1.msra.mxu0 0.0
        %1598 = vmatprep.subr.mxu0 0.0
        %1599 = vmatpush1.msra.mxu0 0.0
        %1600 = vmatprep.subr.mxu0 %v832
        %1601 = vmatpush1.msra.mxu0 %v831
        %1602 = vmatprep.subr.mxu0 %v800
        %1603 = vmatpush1.msra.mxu0 %v799
        %1604 = vmatprep.subr.mxu0 %v768
        %1605 = vmatpush1.msra.mxu0 %v767
        %1606 = vmatprep.subr.mxu0 %v736
        %1607 = vmatpush1.msra.mxu0 %v735
        %1608 = vmatprep.subr.mxu0 0.0
        %1609 = vmatpush2.msra.mxu0 0.0
        %1610 = vmatprep.subr.mxu0 0.0
        %1611 = vmatpush2.msra.mxu0 0.0
        %1612 = vmatprep.subr.mxu0 0.0
        %1613 = vmatpush2.msra.mxu0 0.0
        %1614 = vmatprep.subr.mxu0 0.0
        %1615 = vmatpush2.msra.mxu0 0.0
        %1616 = vmatprep.subr.mxu0 0.0
        %1617 = vmatpush2.msra.mxu0 0.0
        %1618 = vmatprep.subr.mxu0 0.0
        %1619 = vmatpush2.msra.mxu0 0.0
        %1620 = vmatprep.subr.mxu0 0.0
        %1621 = vmatpush2.msra.mxu0 0.0
        %1622 = vmatprep.subr.mxu0 0.0
        %1623 = vmatpush2.msra.mxu0 0.0
        %1624 = vmatprep.subr.mxu0 0.0
        %1625 = vmatpush2.msra.mxu0 0.0
        %1626 = vmatprep.subr.mxu0 0.0
        %1627 = vmatpush2.msra.mxu0 0.0
        %1628 = vmatprep.subr.mxu0 0.0
        %1629 = vmatpush2.msra.mxu0 0.0
        %1630 = vmatprep.subr.mxu0 0.0
        %1631 = vmatpush2.msra.mxu0 0.0
        %1632 = vmatprep.subr.mxu0 0.0
        %1633 = vmatpush2.msra.mxu0 0.0
        %1634 = vmatprep.subr.mxu0 0.0
        %1635 = vmatpush2.msra.mxu0 0.0
        %1636 = vmatprep.subr.mxu0 0.0
        %1637 = vmatpush2.msra.mxu0 0.0
        %1638 = vmatprep.subr.mxu0 0.0
        %1639 = vmatpush2.msra.mxu0 0.0
        %1640 = vmatprep.mubr.f32.mxu0 0.0
        %1641 = vmatmul.mubr.f32.gmra.mxu0 %v853
        %v1642 = vpop.f32.mrf.mxu0
        %v1643 = vadd.f32 0.0, %v1642
        %v1644 = vpop.f32.mrf.mxu0
        %v1645 = vadd.f32 0.0, %v1644
        %1646 = vmatprep.mubr.f32.mxu0 0.0
        %1647 = vmatmul.mubr.f32.gmra.mxu0 %v856
        %v1648 = vpop.f32.mrf.mxu0
        %v1649 = vadd.f32 0.0, %v1648
        %v1650 = vpop.f32.mrf.mxu0
        %v1651 = vadd.f32 0.0, %v1650
        %1652 = vmatprep.mubr.f32.mxu0 0.0
        %1653 = vmatmul.mubr.f32.gmra.mxu0 %v859
        %v1654 = vpop.f32.mrf.mxu0
        %v1655 = vadd.f32 0.0, %v1654
        %v1656 = vpop.f32.mrf.mxu0
        %v1657 = vadd.f32 0.0, %v1656
        %1658 = vmatprep.mubr.f32.mxu0 0.0
        %1659 = vmatmul.mubr.f32.gmra.mxu0 %v862
        %v1660 = vpop.f32.mrf.mxu0
        %v1661 = vadd.f32 0.0, %v1660
        %v1662 = vpop.f32.mrf.mxu0
        %v1663 = vadd.f32 0.0, %v1662
        %1664 = vdwg.mxu0
        %1665 = vmatprep.subr.mxu0 0.0
        %1666 = vmatpush1.msra.mxu0 0.0
        %1667 = vmatprep.subr.mxu0 0.0
        %1668 = vmatpush1.msra.mxu0 0.0
        %1669 = vmatprep.subr.mxu0 0.0
        %1670 = vmatpush1.msra.mxu0 0.0
        %1671 = vmatprep.subr.mxu0 0.0
        %1672 = vmatpush1.msra.mxu0 0.0
        %1673 = vmatprep.subr.mxu0 0.0
        %1674 = vmatpush1.msra.mxu0 0.0
        %1675 = vmatprep.subr.mxu0 0.0
        %1676 = vmatpush1.msra.mxu0 0.0
        %1677 = vmatprep.subr.mxu0 0.0
        %1678 = vmatpush1.msra.mxu0 0.0
        %1679 = vmatprep.subr.mxu0 0.0
        %1680 = vmatpush1.msra.mxu0 0.0
        %1681 = vmatprep.subr.mxu0 0.0
        %1682 = vmatpush1.msra.mxu0 0.0
        %1683 = vmatprep.subr.mxu0 0.0
        %1684 = vmatpush1.msra.mxu0 0.0
        %1685 = vmatprep.subr.mxu0 0.0
        %1686 = vmatpush1.msra.mxu0 0.0
        %1687 = vmatprep.subr.mxu0 0.0
        %1688 = vmatpush1.msra.mxu0 0.0
        %1689 = vmatprep.subr.mxu0 %v834
        %1690 = vmatpush1.msra.mxu0 %v833
        %1691 = vmatprep.subr.mxu0 %v802
        %1692 = vmatpush1.msra.mxu0 %v801
        %1693 = vmatprep.subr.mxu0 %v770
        %1694 = vmatpush1.msra.mxu0 %v769
        %1695 = vmatprep.subr.mxu0 %v738
        %1696 = vmatpush1.msra.mxu0 %v737
        %1697 = vmatprep.subr.mxu0 0.0
        %1698 = vmatpush2.msra.mxu0 0.0
        %1699 = vmatprep.subr.mxu0 0.0
        %1700 = vmatpush2.msra.mxu0 0.0
        %1701 = vmatprep.subr.mxu0 0.0
        %1702 = vmatpush2.msra.mxu0 0.0
        %1703 = vmatprep.subr.mxu0 0.0
        %1704 = vmatpush2.msra.mxu0 0.0
        %1705 = vmatprep.subr.mxu0 0.0
        %1706 = vmatpush2.msra.mxu0 0.0
        %1707 = vmatprep.subr.mxu0 0.0
        %1708 = vmatpush2.msra.mxu0 0.0
        %1709 = vmatprep.subr.mxu0 0.0
        %1710 = vmatpush2.msra.mxu0 0.0
        %1711 = vmatprep.subr.mxu0 0.0
        %1712 = vmatpush2.msra.mxu0 0.0
        %1713 = vmatprep.subr.mxu0 0.0
        %1714 = vmatpush2.msra.mxu0 0.0
        %1715 = vmatprep.subr.mxu0 0.0
        %1716 = vmatpush2.msra.mxu0 0.0
        %1717 = vmatprep.subr.mxu0 0.0
        %1718 = vmatpush2.msra.mxu0 0.0
        %1719 = vmatprep.subr.mxu0 0.0
        %1720 = vmatpush2.msra.mxu0 0.0
        %1721 = vmatprep.subr.mxu0 0.0
        %1722 = vmatpush2.msra.mxu0 0.0
        %1723 = vmatprep.subr.mxu0 0.0
        %1724 = vmatpush2.msra.mxu0 0.0
        %1725 = vmatprep.subr.mxu0 0.0
        %1726 = vmatpush2.msra.mxu0 0.0
        %1727 = vmatprep.subr.mxu0 0.0
        %1728 = vmatpush2.msra.mxu0 0.0
        %1729 = vmatprep.mubr.f32.mxu0 0.0
        %1730 = vmatmul.mubr.f32.gmra.mxu0 %v853
        %v1731 = vpop.f32.mrf.mxu0
        %v1732 = vadd.f32 0.0, %v1731
        %v1733 = vpop.f32.mrf.mxu0
        %v1734 = vadd.f32 0.0, %v1733
        %1735 = vmatprep.mubr.f32.mxu0 0.0
        %1736 = vmatmul.mubr.f32.gmra.mxu0 %v856
        %v1737 = vpop.f32.mrf.mxu0
        %v1738 = vadd.f32 0.0, %v1737
        %v1739 = vpop.f32.mrf.mxu0
        %v1740 = vadd.f32 0.0, %v1739
        %1741 = vmatprep.mubr.f32.mxu0 0.0
        %1742 = vmatmul.mubr.f32.gmra.mxu0 %v859
        %v1743 = vpop.f32.mrf.mxu0
        %v1744 = vadd.f32 0.0, %v1743
        %v1745 = vpop.f32.mrf.mxu0
        %v1746 = vadd.f32 0.0, %v1745
        %1747 = vmatprep.mubr.f32.mxu0 0.0
        %1748 = vmatmul.mubr.f32.gmra.mxu0 %v862
        %v1749 = vpop.f32.mrf.mxu0
        %v1750 = vadd.f32 0.0, %v1749
        %v1751 = vpop.f32.mrf.mxu0
        %v1752 = vadd.f32 0.0, %v1751
        %1753 = vdwg.mxu0
        %1754 = vmatprep.subr.mxu0 0.0
        %1755 = vmatpush1.msra.mxu0 0.0
        %1756 = vmatprep.subr.mxu0 0.0
        %1757 = vmatpush1.msra.mxu0 0.0
        %1758 = vmatprep.subr.mxu0 0.0
        %1759 = vmatpush1.msra.mxu0 0.0
        %1760 = vmatprep.subr.mxu0 0.0
        %1761 = vmatpush1.msra.mxu0 0.0
        %1762 = vmatprep.subr.mxu0 0.0
        %1763 = vmatpush1.msra.mxu0 0.0
        %1764 = vmatprep.subr.mxu0 0.0
        %1765 = vmatpush1.msra.mxu0 0.0
        %1766 = vmatprep.subr.mxu0 0.0
        %1767 = vmatpush1.msra.mxu0 0.0
        %1768 = vmatprep.subr.mxu0 0.0
        %1769 = vmatpush1.msra.mxu0 0.0
        %1770 = vmatprep.subr.mxu0 0.0
        %1771 = vmatpush1.msra.mxu0 0.0
        %1772 = vmatprep.subr.mxu0 0.0
        %1773 = vmatpush1.msra.mxu0 0.0
        %1774 = vmatprep.subr.mxu0 0.0
        %1775 = vmatpush1.msra.mxu0 0.0
        %1776 = vmatprep.subr.mxu0 0.0
        %1777 = vmatpush1.msra.mxu0 0.0
        %1778 = vmatprep.subr.mxu0 %v836
        %1779 = vmatpush1.msra.mxu0 %v835
        %1780 = vmatprep.subr.mxu0 %v804
        %1781 = vmatpush1.msra.mxu0 %v803
        %1782 = vmatprep.subr.mxu0 %v772
        %1783 = vmatpush1.msra.mxu0 %v771
        %1784 = vmatprep.subr.mxu0 %v740
        %1785 = vmatpush1.msra.mxu0 %v739
        %1786 = vmatprep.subr.mxu0 0.0
        %1787 = vmatpush2.msra.mxu0 0.0
        %1788 = vmatprep.subr.mxu0 0.0
        %1789 = vmatpush2.msra.mxu0 0.0
        %1790 = vmatprep.subr.mxu0 0.0
        %1791 = vmatpush2.msra.mxu0 0.0
        %1792 = vmatprep.subr.mxu0 0.0
        %1793 = vmatpush2.msra.mxu0 0.0
        %1794 = vmatprep.subr.mxu0 0.0
        %1795 = vmatpush2.msra.mxu0 0.0
        %1796 = vmatprep.subr.mxu0 0.0
        %1797 = vmatpush2.msra.mxu0 0.0
        %1798 = vmatprep.subr.mxu0 0.0
        %1799 = vmatpush2.msra.mxu0 0.0
        %1800 = vmatprep.subr.mxu0 0.0
        %1801 = vmatpush2.msra.mxu0 0.0
        %1802 = vmatprep.subr.mxu0 0.0
        %1803 = vmatpush2.msra.mxu0 0.0
        %1804 = vmatprep.subr.mxu0 0.0
        %1805 = vmatpush2.msra.mxu0 0.0
        %1806 = vmatprep.subr.mxu0 0.0
        %1807 = vmatpush2.msra.mxu0 0.0
        %1808 = vmatprep.subr.mxu0 0.0
        %1809 = vmatpush2.msra.mxu0 0.0
        %1810 = vmatprep.subr.mxu0 0.0
        %1811 = vmatpush2.msra.mxu0 0.0
        %1812 = vmatprep.subr.mxu0 0.0
        %1813 = vmatpush2.msra.mxu0 0.0
        %1814 = vmatprep.subr.mxu0 0.0
        %1815 = vmatpush2.msra.mxu0 0.0
        %1816 = vmatprep.subr.mxu0 0.0
        %1817 = vmatpush2.msra.mxu0 0.0
        %1818 = vmatprep.mubr.f32.mxu0 0.0
        %1819 = vmatmul.mubr.f32.gmra.mxu0 %v853
        %v1820 = vpop.f32.mrf.mxu0
        %v1821 = vadd.f32 0.0, %v1820
        %v1822 = vpop.f32.mrf.mxu0
        %v1823 = vadd.f32 0.0, %v1822
        %1824 = vmatprep.mubr.f32.mxu0 0.0
        %1825 = vmatmul.mubr.f32.gmra.mxu0 %v856
        %v1826 = vpop.f32.mrf.mxu0
        %v1827 = vadd.f32 0.0, %v1826
        %v1828 = vpop.f32.mrf.mxu0
        %v1829 = vadd.f32 0.0, %v1828
        %1830 = vmatprep.mubr.f32.mxu0 0.0
        %1831 = vmatmul.mubr.f32.gmra.mxu0 %v859
        %v1832 = vpop.f32.mrf.mxu0
        %v1833 = vadd.f32 0.0, %v1832
        %v1834 = vpop.f32.mrf.mxu0
        %v1835 = vadd.f32 0.0, %v1834
        %1836 = vmatprep.mubr.f32.mxu0 0.0
        %1837 = vmatmul.mubr.f32.gmra.mxu0 %v862
        %v1838 = vpop.f32.mrf.mxu0
        %v1839 = vadd.f32 0.0, %v1838
        %v1840 = vpop.f32.mrf.mxu0
        %v1841 = vadd.f32 0.0, %v1840
        %1842 = vdwg.mxu0
        %1843 = vmatprep.subr.mxu0 0.0
        %1844 = vmatpush1.msra.mxu0 0.0
        %1845 = vmatprep.subr.mxu0 0.0
        %1846 = vmatpush1.msra.mxu0 0.0
        %1847 = vmatprep.subr.mxu0 0.0
        %1848 = vmatpush1.msra.mxu0 0.0
        %1849 = vmatprep.subr.mxu0 0.0
        %1850 = vmatpush1.msra.mxu0 0.0
        %1851 = vmatprep.subr.mxu0 0.0
        %1852 = vmatpush1.msra.mxu0 0.0
        %1853 = vmatprep.subr.mxu0 0.0
        %1854 = vmatpush1.msra.mxu0 0.0
        %1855 = vmatprep.subr.mxu0 0.0
        %1856 = vmatpush1.msra.mxu0 0.0
        %1857 = vmatprep.subr.mxu0 0.0
        %1858 = vmatpush1.msra.mxu0 0.0
        %1859 = vmatprep.subr.mxu0 0.0
        %1860 = vmatpush1.msra.mxu0 0.0
        %1861 = vmatprep.subr.mxu0 0.0
        %1862 = vmatpush1.msra.mxu0 0.0
        %1863 = vmatprep.subr.mxu0 0.0
        %1864 = vmatpush1.msra.mxu0 0.0
        %1865 = vmatprep.subr.mxu0 0.0
        %1866 = vmatpush1.msra.mxu0 0.0
        %1867 = vmatprep.subr.mxu0 %v838
        %1868 = vmatpush1.msra.mxu0 %v837
        %1869 = vmatprep.subr.mxu0 %v806
        %1870 = vmatpush1.msra.mxu0 %v805
        %1871 = vmatprep.subr.mxu0 %v774
        %1872 = vmatpush1.msra.mxu0 %v773
        %1873 = vmatprep.subr.mxu0 %v742
        %1874 = vmatpush1.msra.mxu0 %v741
        %1875 = vmatprep.subr.mxu0 0.0
        %1876 = vmatpush2.msra.mxu0 0.0
        %1877 = vmatprep.subr.mxu0 0.0
        %1878 = vmatpush2.msra.mxu0 0.0
        %1879 = vmatprep.subr.mxu0 0.0
        %1880 = vmatpush2.msra.mxu0 0.0
        %1881 = vmatprep.subr.mxu0 0.0
        %1882 = vmatpush2.msra.mxu0 0.0
        %1883 = vmatprep.subr.mxu0 0.0
        %1884 = vmatpush2.msra.mxu0 0.0
        %1885 = vmatprep.subr.mxu0 0.0
        %1886 = vmatpush2.msra.mxu0 0.0
        %1887 = vmatprep.subr.mxu0 0.0
        %1888 = vmatpush2.msra.mxu0 0.0
        %1889 = vmatprep.subr.mxu0 0.0
        %1890 = vmatpush2.msra.mxu0 0.0
        %1891 = vmatprep.subr.mxu0 0.0
        %1892 = vmatpush2.msra.mxu0 0.0
        %1893 = vmatprep.subr.mxu0 0.0
        %1894 = vmatpush2.msra.mxu0 0.0
        %1895 = vmatprep.subr.mxu0 0.0
        %1896 = vmatpush2.msra.mxu0 0.0
        %1897 = vmatprep.subr.mxu0 0.0
        %1898 = vmatpush2.msra.mxu0 0.0
        %1899 = vmatprep.subr.mxu0 0.0
        %1900 = vmatpush2.msra.mxu0 0.0
        %1901 = vmatprep.subr.mxu0 0.0
        %1902 = vmatpush2.msra.mxu0 0.0
        %1903 = vmatprep.subr.mxu0 0.0
        %1904 = vmatpush2.msra.mxu0 0.0
        %1905 = vmatprep.subr.mxu0 0.0
        %1906 = vmatpush2.msra.mxu0 0.0
        %1907 = vmatprep.mubr.f32.mxu0 0.0
        %1908 = vmatmul.mubr.f32.gmra.mxu0 %v853
        %v1909 = vpop.f32.mrf.mxu0
        %v1910 = vadd.f32 0.0, %v1909
        %v1911 = vpop.f32.mrf.mxu0
        %v1912 = vadd.f32 0.0, %v1911
        %1913 = vmatprep.mubr.f32.mxu0 0.0
        %1914 = vmatmul.mubr.f32.gmra.mxu0 %v856
        %v1915 = vpop.f32.mrf.mxu0
        %v1916 = vadd.f32 0.0, %v1915
        %v1917 = vpop.f32.mrf.mxu0
        %v1918 = vadd.f32 0.0, %v1917
        %1919 = vmatprep.mubr.f32.mxu0 0.0
        %1920 = vmatmul.mubr.f32.gmra.mxu0 %v859
        %v1921 = vpop.f32.mrf.mxu0
        %v1922 = vadd.f32 0.0, %v1921
        %v1923 = vpop.f32.mrf.mxu0
        %v1924 = vadd.f32 0.0, %v1923
        %1925 = vmatprep.mubr.f32.mxu0 0.0
        %1926 = vmatmul.mubr.f32.gmra.mxu0 %v862
        %v1927 = vpop.f32.mrf.mxu0
        %v1928 = vadd.f32 0.0, %v1927
        %v1929 = vpop.f32.mrf.mxu0
        %v1930 = vadd.f32 0.0, %v1929
        %1931 = vdwg.mxu0
        %1932 = vmatprep.subr.mxu0 0.0
        %1933 = vmatpush1.msra.mxu0 0.0
        %1934 = vmatprep.subr.mxu0 0.0
        %1935 = vmatpush1.msra.mxu0 0.0
        %1936 = vmatprep.subr.mxu0 0.0
        %1937 = vmatpush1.msra.mxu0 0.0
        %1938 = vmatprep.subr.mxu0 0.0
        %1939 = vmatpush1.msra.mxu0 0.0
        %1940 = vmatprep.subr.mxu0 0.0
        %1941 = vmatpush1.msra.mxu0 0.0
        %1942 = vmatprep.subr.mxu0 0.0
        %1943 = vmatpush1.msra.mxu0 0.0
        %1944 = vmatprep.subr.mxu0 0.0
        %1945 = vmatpush1.msra.mxu0 0.0
        %1946 = vmatprep.subr.mxu0 0.0
        %1947 = vmatpush1.msra.mxu0 0.0
        %1948 = vmatprep.subr.mxu0 0.0
        %1949 = vmatpush1.msra.mxu0 0.0
        %1950 = vmatprep.subr.mxu0 0.0
        %1951 = vmatpush1.msra.mxu0 0.0
        %1952 = vmatprep.subr.mxu0 0.0
        %1953 = vmatpush1.msra.mxu0 0.0
        %1954 = vmatprep.subr.mxu0 0.0
        %1955 = vmatpush1.msra.mxu0 0.0
        %1956 = vmatprep.subr.mxu0 %v840
        %1957 = vmatpush1.msra.mxu0 %v839
        %1958 = vmatprep.subr.mxu0 %v808
        %1959 = vmatpush1.msra.mxu0 %v807
        %1960 = vmatprep.subr.mxu0 %v776
        %1961 = vmatpush1.msra.mxu0 %v775
        %1962 = vmatprep.subr.mxu0 %v744
        %1963 = vmatpush1.msra.mxu0 %v743
        %1964 = vmatprep.subr.mxu0 0.0
        %1965 = vmatpush2.msra.mxu0 0.0
        %1966 = vmatprep.subr.mxu0 0.0
        %1967 = vmatpush2.msra.mxu0 0.0
        %1968 = vmatprep.subr.mxu0 0.0
        %1969 = vmatpush2.msra.mxu0 0.0
        %1970 = vmatprep.subr.mxu0 0.0
        %1971 = vmatpush2.msra.mxu0 0.0
        %1972 = vmatprep.subr.mxu0 0.0
        %1973 = vmatpush2.msra.mxu0 0.0
        %1974 = vmatprep.subr.mxu0 0.0
        %1975 = vmatpush2.msra.mxu0 0.0
        %1976 = vmatprep.subr.mxu0 0.0
        %1977 = vmatpush2.msra.mxu0 0.0
        %1978 = vmatprep.subr.mxu0 0.0
        %1979 = vmatpush2.msra.mxu0 0.0
        %1980 = vmatprep.subr.mxu0 0.0
        %1981 = vmatpush2.msra.mxu0 0.0
        %1982 = vmatprep.subr.mxu0 0.0
        %1983 = vmatpush2.msra.mxu0 0.0
        %1984 = vmatprep.subr.mxu0 0.0
        %1985 = vmatpush2.msra.mxu0 0.0
        %1986 = vmatprep.subr.mxu0 0.0
        %1987 = vmatpush2.msra.mxu0 0.0
        %1988 = vmatprep.subr.mxu0 0.0
        %1989 = vmatpush2.msra.mxu0 0.0
        %1990 = vmatprep.subr.mxu0 0.0
        %1991 = vmatpush2.msra.mxu0 0.0
        %1992 = vmatprep.subr.mxu0 0.0
        %1993 = vmatpush2.msra.mxu0 0.0
        %1994 = vmatprep.subr.mxu0 0.0
        %1995 = vmatpush2.msra.mxu0 0.0
        %1996 = vmatprep.mubr.f32.mxu0 0.0
        %1997 = vmatmul.mubr.f32.gmra.mxu0 %v853
        %v1998 = vpop.f32.mrf.mxu0
        %v1999 = vadd.f32 0.0, %v1998
        %v2000 = vpop.f32.mrf.mxu0
        %v2001 = vadd.f32 0.0, %v2000
        %2002 = vmatprep.mubr.f32.mxu0 0.0
        %2003 = vmatmul.mubr.f32.gmra.mxu0 %v856
        %v2004 = vpop.f32.mrf.mxu0
        %v2005 = vadd.f32 0.0, %v2004
        %v2006 = vpop.f32.mrf.mxu0
        %v2007 = vadd.f32 0.0, %v2006
        %2008 = vmatprep.mubr.f32.mxu0 0.0
        %2009 = vmatmul.mubr.f32.gmra.mxu0 %v859
        %v2010 = vpop.f32.mrf.mxu0
        %v2011 = vadd.f32 0.0, %v2010
        %v2012 = vpop.f32.mrf.mxu0
        %v2013 = vadd.f32 0.0, %v2012
        %2014 = vmatprep.mubr.f32.mxu0 0.0
        %2015 = vmatmul.mubr.f32.gmra.mxu0 %v862
        %v2016 = vpop.f32.mrf.mxu0
        %v2017 = vadd.f32 0.0, %v2016
        %v2018 = vpop.f32.mrf.mxu0
        %v2019 = vadd.f32 0.0, %v2018
        %2020 = vdwg.mxu0
        %2021 = vmatprep.subr.mxu0 0.0
        %2022 = vmatpush1.msra.mxu0 0.0
        %2023 = vmatprep.subr.mxu0 0.0
        %2024 = vmatpush1.msra.mxu0 0.0
        %2025 = vmatprep.subr.mxu0 0.0
        %2026 = vmatpush1.msra.mxu0 0.0
        %2027 = vmatprep.subr.mxu0 0.0
        %2028 = vmatpush1.msra.mxu0 0.0
        %2029 = vmatprep.subr.mxu0 0.0
        %2030 = vmatpush1.msra.mxu0 0.0
        %2031 = vmatprep.subr.mxu0 0.0
        %2032 = vmatpush1.msra.mxu0 0.0
        %2033 = vmatprep.subr.mxu0 0.0
        %2034 = vmatpush1.msra.mxu0 0.0
        %2035 = vmatprep.subr.mxu0 0.0
        %2036 = vmatpush1.msra.mxu0 0.0
        %2037 = vmatprep.subr.mxu0 0.0
        %2038 = vmatpush1.msra.mxu0 0.0
        %2039 = vmatprep.subr.mxu0 0.0
        %2040 = vmatpush1.msra.mxu0 0.0
        %2041 = vmatprep.subr.mxu0 0.0
        %2042 = vmatpush1.msra.mxu0 0.0
        %2043 = vmatprep.subr.mxu0 0.0
        %2044 = vmatpush1.msra.mxu0 0.0
        %2045 = vmatprep.subr.mxu0 %v842
        %2046 = vmatpush1.msra.mxu0 %v841
        %2047 = vmatprep.subr.mxu0 %v810
        %2048 = vmatpush1.msra.mxu0 %v809
        %2049 = vmatprep.subr.mxu0 %v778
        %2050 = vmatpush1.msra.mxu0 %v777
        %2051 = vmatprep.subr.mxu0 %v746
        %2052 = vmatpush1.msra.mxu0 %v745
        %2053 = vmatprep.subr.mxu0 0.0
        %2054 = vmatpush2.msra.mxu0 0.0
        %2055 = vmatprep.subr.mxu0 0.0
        %2056 = vmatpush2.msra.mxu0 0.0
        %2057 = vmatprep.subr.mxu0 0.0
        %2058 = vmatpush2.msra.mxu0 0.0
        %2059 = vmatprep.subr.mxu0 0.0
        %2060 = vmatpush2.msra.mxu0 0.0
        %2061 = vmatprep.subr.mxu0 0.0
        %2062 = vmatpush2.msra.mxu0 0.0
        %2063 = vmatprep.subr.mxu0 0.0
        %2064 = vmatpush2.msra.mxu0 0.0
        %2065 = vmatprep.subr.mxu0 0.0
        %2066 = vmatpush2.msra.mxu0 0.0
        %2067 = vmatprep.subr.mxu0 0.0
        %2068 = vmatpush2.msra.mxu0 0.0
        %2069 = vmatprep.subr.mxu0 0.0
        %2070 = vmatpush2.msra.mxu0 0.0
        %2071 = vmatprep.subr.mxu0 0.0
        %2072 = vmatpush2.msra.mxu0 0.0
        %2073 = vmatprep.subr.mxu0 0.0
        %2074 = vmatpush2.msra.mxu0 0.0
        %2075 = vmatprep.subr.mxu0 0.0
        %2076 = vmatpush2.msra.mxu0 0.0
        %2077 = vmatprep.subr.mxu0 0.0
        %2078 = vmatpush2.msra.mxu0 0.0
        %2079 = vmatprep.subr.mxu0 0.0
        %2080 = vmatpush2.msra.mxu0 0.0
        %2081 = vmatprep.subr.mxu0 0.0
        %2082 = vmatpush2.msra.mxu0 0.0
        %2083 = vmatprep.subr.mxu0 0.0
        %2084 = vmatpush2.msra.mxu0 0.0
        %2085 = vmatprep.mubr.f32.mxu0 0.0
        %2086 = vmatmul.mubr.f32.gmra.mxu0 %v853
        %v2087 = vpop.f32.mrf.mxu0
        %v2088 = vadd.f32 0.0, %v2087
        %v2089 = vpop.f32.mrf.mxu0
        %v2090 = vadd.f32 0.0, %v2089
        %2091 = vmatprep.mubr.f32.mxu0 0.0
        %2092 = vmatmul.mubr.f32.gmra.mxu0 %v856
        %v2093 = vpop.f32.mrf.mxu0
        %v2094 = vadd.f32 0.0, %v2093
        %v2095 = vpop.f32.mrf.mxu0
        %v2096 = vadd.f32 0.0, %v2095
        %2097 = vmatprep.mubr.f32.mxu0 0.0
        %2098 = vmatmul.mubr.f32.gmra.mxu0 %v859
        %v2099 = vpop.f32.mrf.mxu0
        %v2100 = vadd.f32 0.0, %v2099
        %v2101 = vpop.f32.mrf.mxu0
        %v2102 = vadd.f32 0.0, %v2101
        %2103 = vmatprep.mubr.f32.mxu0 0.0
        %2104 = vmatmul.mubr.f32.gmra.mxu0 %v862
        %v2105 = vpop.f32.mrf.mxu0
        %v2106 = vadd.f32 0.0, %v2105
        %v2107 = vpop.f32.mrf.mxu0
        %v2108 = vadd.f32 0.0, %v2107
        %2109 = vdwg.mxu0
        %2110 = vmatprep.subr.mxu0 0.0
        %2111 = vmatpush1.msra.mxu0 0.0
        %2112 = vmatprep.subr.mxu0 0.0
        %2113 = vmatpush1.msra.mxu0 0.0
        %2114 = vmatprep.subr.mxu0 0.0
        %2115 = vmatpush1.msra.mxu0 0.0
        %2116 = vmatprep.subr.mxu0 0.0
        %2117 = vmatpush1.msra.mxu0 0.0
        %2118 = vmatprep.subr.mxu0 0.0
        %2119 = vmatpush1.msra.mxu0 0.0
        %2120 = vmatprep.subr.mxu0 0.0
        %2121 = vmatpush1.msra.mxu0 0.0
        %2122 = vmatprep.subr.mxu0 0.0
        %2123 = vmatpush1.msra.mxu0 0.0
        %2124 = vmatprep.subr.mxu0 0.0
        %2125 = vmatpush1.msra.mxu0 0.0
        %2126 = vmatprep.subr.mxu0 0.0
        %2127 = vmatpush1.msra.mxu0 0.0
        %2128 = vmatprep.subr.mxu0 0.0
        %2129 = vmatpush1.msra.mxu0 0.0
        %2130 = vmatprep.subr.mxu0 0.0
        %2131 = vmatpush1.msra.mxu0 0.0
        %2132 = vmatprep.subr.mxu0 0.0
        %2133 = vmatpush1.msra.mxu0 0.0
        %2134 = vmatprep.subr.mxu0 %v844
        %2135 = vmatpush1.msra.mxu0 %v843
        %2136 = vmatprep.subr.mxu0 %v812
        %2137 = vmatpush1.msra.mxu0 %v811
        %2138 = vmatprep.subr.mxu0 %v780
        %2139 = vmatpush1.msra.mxu0 %v779
        %2140 = vmatprep.subr.mxu0 %v748
        %2141 = vmatpush1.msra.mxu0 %v747
        %2142 = vmatprep.subr.mxu0 0.0
        %2143 = vmatpush2.msra.mxu0 0.0
        %2144 = vmatprep.subr.mxu0 0.0
        %2145 = vmatpush2.msra.mxu0 0.0
        %2146 = vmatprep.subr.mxu0 0.0
        %2147 = vmatpush2.msra.mxu0 0.0
        %2148 = vmatprep.subr.mxu0 0.0
        %2149 = vmatpush2.msra.mxu0 0.0
        %2150 = vmatprep.subr.mxu0 0.0
        %2151 = vmatpush2.msra.mxu0 0.0
        %2152 = vmatprep.subr.mxu0 0.0
        %2153 = vmatpush2.msra.mxu0 0.0
        %2154 = vmatprep.subr.mxu0 0.0
        %2155 = vmatpush2.msra.mxu0 0.0
        %2156 = vmatprep.subr.mxu0 0.0
        %2157 = vmatpush2.msra.mxu0 0.0
        %2158 = vmatprep.subr.mxu0 0.0
        %2159 = vmatpush2.msra.mxu0 0.0
        %2160 = vmatprep.subr.mxu0 0.0
        %2161 = vmatpush2.msra.mxu0 0.0
        %2162 = vmatprep.subr.mxu0 0.0
        %2163 = vmatpush2.msra.mxu0 0.0
        %2164 = vmatprep.subr.mxu0 0.0
        %2165 = vmatpush2.msra.mxu0 0.0
        %2166 = vmatprep.subr.mxu0 0.0
        %2167 = vmatpush2.msra.mxu0 0.0
        %2168 = vmatprep.subr.mxu0 0.0
        %2169 = vmatpush2.msra.mxu0 0.0
        %2170 = vmatprep.subr.mxu0 0.0
        %2171 = vmatpush2.msra.mxu0 0.0
        %2172 = vmatprep.subr.mxu0 0.0
        %2173 = vmatpush2.msra.mxu0 0.0
        %2174 = vmatprep.mubr.f32.mxu0 0.0
        %2175 = vmatmul.mubr.f32.gmra.mxu0 %v853
        %v2176 = vpop.f32.mrf.mxu0
        %v2177 = vadd.f32 0.0, %v2176
        %v2178 = vpop.f32.mrf.mxu0
        %v2179 = vadd.f32 0.0, %v2178
        %2180 = vmatprep.mubr.f32.mxu0 0.0
        %2181 = vmatmul.mubr.f32.gmra.mxu0 %v856
        %v2182 = vpop.f32.mrf.mxu0
        %v2183 = vadd.f32 0.0, %v2182
        %v2184 = vpop.f32.mrf.mxu0
        %v2185 = vadd.f32 0.0, %v2184
        %2186 = vmatprep.mubr.f32.mxu0 0.0
        %2187 = vmatmul.mubr.f32.gmra.mxu0 %v859
        %v2188 = vpop.f32.mrf.mxu0
        %v2189 = vadd.f32 0.0, %v2188
        %v2190 = vpop.f32.mrf.mxu0
        %v2191 = vadd.f32 0.0, %v2190
        %2192 = vmatprep.mubr.f32.mxu0 0.0
        %2193 = vmatmul.mubr.f32.gmra.mxu0 %v862
        %v2194 = vpop.f32.mrf.mxu0
        %v2195 = vadd.f32 0.0, %v2194
        %v2196 = vpop.f32.mrf.mxu0
        %v2197 = vadd.f32 0.0, %v2196
        %2198 = vdwg.mxu0
        %2199 = vmatprep.subr.mxu0 0.0
        %2200 = vmatpush1.msra.mxu0 0.0
        %2201 = vmatprep.subr.mxu0 0.0
        %2202 = vmatpush1.msra.mxu0 0.0
        %2203 = vmatprep.subr.mxu0 0.0
        %2204 = vmatpush1.msra.mxu0 0.0
        %2205 = vmatprep.subr.mxu0 0.0
        %2206 = vmatpush1.msra.mxu0 0.0
        %2207 = vmatprep.subr.mxu0 0.0
        %2208 = vmatpush1.msra.mxu0 0.0
        %2209 = vmatprep.subr.mxu0 0.0
        %2210 = vmatpush1.msra.mxu0 0.0
        %2211 = vmatprep.subr.mxu0 0.0
        %2212 = vmatpush1.msra.mxu0 0.0
        %2213 = vmatprep.subr.mxu0 0.0
        %2214 = vmatpush1.msra.mxu0 0.0
        %2215 = vmatprep.subr.mxu0 0.0
        %2216 = vmatpush1.msra.mxu0 0.0
        %2217 = vmatprep.subr.mxu0 0.0
        %2218 = vmatpush1.msra.mxu0 0.0
        %2219 = vmatprep.subr.mxu0 0.0
        %2220 = vmatpush1.msra.mxu0 0.0
        %2221 = vmatprep.subr.mxu0 0.0
        %2222 = vmatpush1.msra.mxu0 0.0
        %2223 = vmatprep.subr.mxu0 %v846
        %2224 = vmatpush1.msra.mxu0 %v845
        %2225 = vmatprep.subr.mxu0 %v814
        %2226 = vmatpush1.msra.mxu0 %v813
        %2227 = vmatprep.subr.mxu0 %v782
        %2228 = vmatpush1.msra.mxu0 %v781
        %2229 = vmatprep.subr.mxu0 %v750
        %2230 = vmatpush1.msra.mxu0 %v749
        %2231 = vmatprep.subr.mxu0 0.0
        %2232 = vmatpush2.msra.mxu0 0.0
        %2233 = vmatprep.subr.mxu0 0.0
        %2234 = vmatpush2.msra.mxu0 0.0
        %2235 = vmatprep.subr.mxu0 0.0
        %2236 = vmatpush2.msra.mxu0 0.0
        %2237 = vmatprep.subr.mxu0 0.0
        %2238 = vmatpush2.msra.mxu0 0.0
        %2239 = vmatprep.subr.mxu0 0.0
        %2240 = vmatpush2.msra.mxu0 0.0
        %2241 = vmatprep.subr.mxu0 0.0
        %2242 = vmatpush2.msra.mxu0 0.0
        %2243 = vmatprep.subr.mxu0 0.0
        %2244 = vmatpush2.msra.mxu0 0.0
        %2245 = vmatprep.subr.mxu0 0.0
        %2246 = vmatpush2.msra.mxu0 0.0
        %2247 = vmatprep.subr.mxu0 0.0
        %2248 = vmatpush2.msra.mxu0 0.0
        %2249 = vmatprep.subr.mxu0 0.0
        %2250 = vmatpush2.msra.mxu0 0.0
        %2251 = vmatprep.subr.mxu0 0.0
        %2252 = vmatpush2.msra.mxu0 0.0
        %2253 = vmatprep.subr.mxu0 0.0
        %2254 = vmatpush2.msra.mxu0 0.0
        %2255 = vmatprep.subr.mxu0 0.0
        %2256 = vmatpush2.msra.mxu0 0.0
        %2257 = vmatprep.subr.mxu0 0.0
        %2258 = vmatpush2.msra.mxu0 0.0
        %2259 = vmatprep.subr.mxu0 0.0
        %2260 = vmatpush2.msra.mxu0 0.0
        %2261 = vmatprep.subr.mxu0 0.0
        %2262 = vmatpush2.msra.mxu0 0.0
        %2263 = vmatprep.mubr.f32.mxu0 0.0
        %2264 = vmatmul.mubr.f32.gmra.mxu0 %v853
        %v2265 = vpop.f32.mrf.mxu0
        %v2266 = vadd.f32 0.0, %v2265
        %v2267 = vpop.f32.mrf.mxu0
        %v2268 = vadd.f32 0.0, %v2267
        %2269 = vmatprep.mubr.f32.mxu0 0.0
        %2270 = vmatmul.mubr.f32.gmra.mxu0 %v856
        %v2271 = vpop.f32.mrf.mxu0
        %v2272 = vadd.f32 0.0, %v2271
        %v2273 = vpop.f32.mrf.mxu0
        %v2274 = vadd.f32 0.0, %v2273
        %2275 = vmatprep.mubr.f32.mxu0 0.0
        %2276 = vmatmul.mubr.f32.gmra.mxu0 %v859
        %v2277 = vpop.f32.mrf.mxu0
        %v2278 = vadd.f32 0.0, %v2277
        %v2279 = vpop.f32.mrf.mxu0
        %v2280 = vadd.f32 0.0, %v2279
        %2281 = vmatprep.mubr.f32.mxu0 0.0
        %2282 = vmatmul.mubr.f32.gmra.mxu0 %v862
        %v2283 = vpop.f32.mrf.mxu0
        %v2284 = vadd.f32 0.0, %v2283
        %v2285 = vpop.f32.mrf.mxu0
        %v2286 = vadd.f32 0.0, %v2285
        %2287 = vdwg.mxu0
        %v2288 = vmax.f32 %v931, 0.0
        %v2289 = vmax.f32 %v933, 0.0
        %v2290 = vmax.f32 %v1020, 0.0
        %v2291 = vmax.f32 %v1022, 0.0
        %v2292 = vmax.f32 %v1109, 0.0
        %v2293 = vmax.f32 %v1111, 0.0
        %v2294 = vmax.f32 %v1198, 0.0
        %v2295 = vmax.f32 %v1200, 0.0
        %v2296 = vmax.f32 %v1287, 0.0
        %v2297 = vmax.f32 %v1289, 0.0
        %v2298 = vmax.f32 %v1376, 0.0
        %v2299 = vmax.f32 %v1378, 0.0
        %v2300 = vmax.f32 %v1465, 0.0
        %v2301 = vmax.f32 %v1467, 0.0
        %v2302 = vmax.f32 %v1554, 0.0
        %v2303 = vmax.f32 %v1556, 0.0
        %v2304 = vmax.f32 %v1643, 0.0
        %v2305 = vmax.f32 %v1645, 0.0
        %v2306 = vmax.f32 %v1732, 0.0
        %v2307 = vmax.f32 %v1734, 0.0
        %v2308 = vmax.f32 %v1821, 0.0
        %v2309 = vmax.f32 %v1823, 0.0
        %v2310 = vmax.f32 %v1910, 0.0
        %v2311 = vmax.f32 %v1912, 0.0
        %v2312 = vmax.f32 %v1999, 0.0
        %v2313 = vmax.f32 %v2001, 0.0
        %v2314 = vmax.f32 %v2088, 0.0
        %v2315 = vmax.f32 %v2090, 0.0
        %v2316 = vmax.f32 %v2177, 0.0
        %v2317 = vmax.f32 %v2179, 0.0
        %v2318 = vmax.f32 %v2266, 0.0
        %v2319 = vmax.f32 %v2268, 0.0
        %v2320 = vmax.f32 %v937, 0.0
        %v2321 = vmax.f32 %v939, 0.0
        %v2322 = vmax.f32 %v1026, 0.0
        %v2323 = vmax.f32 %v1028, 0.0
        %v2324 = vmax.f32 %v1115, 0.0
        %v2325 = vmax.f32 %v1117, 0.0
        %v2326 = vmax.f32 %v1204, 0.0
        %v2327 = vmax.f32 %v1206, 0.0
        %v2328 = vmax.f32 %v1293, 0.0
        %v2329 = vmax.f32 %v1295, 0.0
        %v2330 = vmax.f32 %v1382, 0.0
        %v2331 = vmax.f32 %v1384, 0.0
        %v2332 = vmax.f32 %v1471, 0.0
        %v2333 = vmax.f32 %v1473, 0.0
        %v2334 = vmax.f32 %v1560, 0.0
        %v2335 = vmax.f32 %v1562, 0.0
        %v2336 = vmax.f32 %v1649, 0.0
        %v2337 = vmax.f32 %v1651, 0.0
        %v2338 = vmax.f32 %v1738, 0.0
        %v2339 = vmax.f32 %v1740, 0.0
        %v2340 = vmax.f32 %v1827, 0.0
        %v2341 = vmax.f32 %v1829, 0.0
        %v2342 = vmax.f32 %v1916, 0.0
        %v2343 = vmax.f32 %v1918, 0.0
        %v2344 = vmax.f32 %v2005, 0.0
        %v2345 = vmax.f32 %v2007, 0.0
        %v2346 = vmax.f32 %v2094, 0.0
        %v2347 = vmax.f32 %v2096, 0.0
        %v2348 = vmax.f32 %v2183, 0.0
        %v2349 = vmax.f32 %v2185, 0.0
        %v2350 = vmax.f32 %v2272, 0.0
        %v2351 = vmax.f32 %v2274, 0.0
        %v2352 = vmax.f32 %v943, 0.0
        %v2353 = vmax.f32 %v945, 0.0
        %v2354 = vmax.f32 %v1032, 0.0
        %v2355 = vmax.f32 %v1034, 0.0
        %v2356 = vmax.f32 %v1121, 0.0
        %v2357 = vmax.f32 %v1123, 0.0
        %v2358 = vmax.f32 %v1210, 0.0
        %v2359 = vmax.f32 %v1212, 0.0
        %v2360 = vmax.f32 %v1299, 0.0
        %v2361 = vmax.f32 %v1301, 0.0
        %v2362 = vmax.f32 %v1388, 0.0
        %v2363 = vmax.f32 %v1390, 0.0
        %v2364 = vmax.f32 %v1477, 0.0
        %v2365 = vmax.f32 %v1479, 0.0
        %v2366 = vmax.f32 %v1566, 0.0
        %v2367 = vmax.f32 %v1568, 0.0
        %v2368 = vmax.f32 %v1655, 0.0
        %v2369 = vmax.f32 %v1657, 0.0
        %v2370 = vmax.f32 %v1744, 0.0
        %v2371 = vmax.f32 %v1746, 0.0
        %v2372 = vmax.f32 %v1833, 0.0
        %v2373 = vmax.f32 %v1835, 0.0
        %v2374 = vmax.f32 %v1922, 0.0
        %v2375 = vmax.f32 %v1924, 0.0
        %v2376 = vmax.f32 %v2011, 0.0
        %v2377 = vmax.f32 %v2013, 0.0
        %v2378 = vmax.f32 %v2100, 0.0
        %v2379 = vmax.f32 %v2102, 0.0
        %v2380 = vmax.f32 %v2189, 0.0
        %v2381 = vmax.f32 %v2191, 0.0
        %v2382 = vmax.f32 %v2278, 0.0
        %v2383 = vmax.f32 %v2280, 0.0
        %v2384 = vmax.f32 %v949, 0.0
        %v2385 = vmax.f32 %v951, 0.0
        %v2386 = vmax.f32 %v1038, 0.0
        %v2387 = vmax.f32 %v1040, 0.0
        %v2388 = vmax.f32 %v1127, 0.0
        %v2389 = vmax.f32 %v1129, 0.0
        %v2390 = vmax.f32 %v1216, 0.0
        %v2391 = vmax.f32 %v1218, 0.0
        %v2392 = vmax.f32 %v1305, 0.0
        %v2393 = vmax.f32 %v1307, 0.0
        %v2394 = vmax.f32 %v1394, 0.0
        %v2395 = vmax.f32 %v1396, 0.0
        %v2396 = vmax.f32 %v1483, 0.0
        %v2397 = vmax.f32 %v1485, 0.0
        %v2398 = vmax.f32 %v1572, 0.0
        %v2399 = vmax.f32 %v1574, 0.0
        %v2400 = vmax.f32 %v1661, 0.0
        %v2401 = vmax.f32 %v1663, 0.0
        %v2402 = vmax.f32 %v1750, 0.0
        %v2403 = vmax.f32 %v1752, 0.0
        %v2404 = vmax.f32 %v1839, 0.0
        %v2405 = vmax.f32 %v1841, 0.0
        %v2406 = vmax.f32 %v1928, 0.0
        %v2407 = vmax.f32 %v1930, 0.0
        %v2408 = vmax.f32 %v2017, 0.0
        %v2409 = vmax.f32 %v2019, 0.0
        %v2410 = vmax.f32 %v2106, 0.0
        %v2411 = vmax.f32 %v2108, 0.0
        %v2412 = vmax.f32 %v2195, 0.0
        %v2413 = vmax.f32 %v2197, 0.0
        %v2414 = vmax.f32 %v2284, 0.0
        %v2415 = vmax.f32 %v2286, 0.0
        %2416 = vst [vmem:[%s411] sm:$0xff] %v2288
        %2417 = vst [vmem:[%s411 + $0x8] sm:$0xff] %v2289
        %2418 = vst [vmem:[%s411 + $0x10] sm:$0xff] %v2290
        %2419 = vst [vmem:[%s411 + $0x18] sm:$0xff] %v2291
        %2420 = vst [vmem:[%s411 + $0x20] sm:$0xff] %v2292
        %2421 = vst [vmem:[%s411 + $0x28] sm:$0xff] %v2293
        %2422 = vst [vmem:[%s411 + $0x30] sm:$0xff] %v2294
        %2423 = vst [vmem:[%s411 + $0x38] sm:$0xff] %v2295
        %2424 = vst [vmem:[%s411 + $0x40] sm:$0xff] %v2296
        %2425 = vst [vmem:[%s411 + $0x48] sm:$0xff] %v2297
        %2426 = vst [vmem:[%s411 + $0x50] sm:$0xff] %v2298
        %2427 = vst [vmem:[%s411 + $0x58] sm:$0xff] %v2299
        %2428 = vst [vmem:[%s411 + $0x60] sm:$0xff] %v2300
        %2429 = vst [vmem:[%s411 + $0x68] sm:$0xff] %v2301
        %2430 = vst [vmem:[%s411 + $0x70] sm:$0xff] %v2302
        %2431 = vst [vmem:[%s411 + $0x78] sm:$0xff] %v2303
        %2432 = vst [vmem:[%s411 + $0x80] sm:$0xff] %v2304
        %2433 = vst [vmem:[%s411 + $0x88] sm:$0xff] %v2305
        %2434 = vst [vmem:[%s411 + $0x90] sm:$0xff] %v2306
        %2435 = vst [vmem:[%s411 + $0x98] sm:$0xff] %v2307
        %2436 = vst [vmem:[%s411 + $0xa0] sm:$0xff] %v2308
        %2437 = vst [vmem:[%s411 + $0xa8] sm:$0xff] %v2309
        %2438 = vst [vmem:[%s411 + $0xb0] sm:$0xff] %v2310
        %2439 = vst [vmem:[%s411 + $0xb8] sm:$0xff] %v2311
        %2440 = vst [vmem:[%s411 + $0xc0] sm:$0xff] %v2312
        %2441 = vst [vmem:[%s411 + $0xc8] sm:$0xff] %v2313
        %2442 = vst [vmem:[%s411 + $0xd0] sm:$0xff] %v2314
        %2443 = vst [vmem:[%s411 + $0xd8] sm:$0xff] %v2315
        %2444 = vst [vmem:[%s411 + $0xe0] sm:$0xff] %v2316
        %2445 = vst [vmem:[%s411 + $0xe8] sm:$0xff] %v2317
        %2446 = vst [vmem:[%s411 + $0xf0] sm:$0xff] %v2318
        %2447 = vst [vmem:[%s411 + $0xf8] sm:$0xff] %v2319
        %2448 = vst [vmem:[%s411 + $0x100] sm:$0xff] %v2320
        %2449 = vst [vmem:[%s411 + $0x108] sm:$0xff] %v2321
        %2450 = vst [vmem:[%s411 + $0x110] sm:$0xff] %v2322
        %2451 = vst [vmem:[%s411 + $0x118] sm:$0xff] %v2323
        %2452 = vst [vmem:[%s411 + $0x120] sm:$0xff] %v2324
        %2453 = vst [vmem:[%s411 + $0x128] sm:$0xff] %v2325
        %2454 = vst [vmem:[%s411 + $0x130] sm:$0xff] %v2326
        %2455 = vst [vmem:[%s411 + $0x138] sm:$0xff] %v2327
        %2456 = vst [vmem:[%s411 + $0x140] sm:$0xff] %v2328
        %2457 = vst [vmem:[%s411 + $0x148] sm:$0xff] %v2329
        %2458 = vst [vmem:[%s411 + $0x150] sm:$0xff] %v2330
        %2459 = vst [vmem:[%s411 + $0x158] sm:$0xff] %v2331
        %2460 = vst [vmem:[%s411 + $0x160] sm:$0xff] %v2332
        %2461 = vst [vmem:[%s411 + $0x168] sm:$0xff] %v2333
        %2462 = vst [vmem:[%s411 + $0x170] sm:$0xff] %v2334
        %2463 = vst [vmem:[%s411 + $0x178] sm:$0xff] %v2335
        %2464 = vst [vmem:[%s411 + $0x180] sm:$0xff] %v2336
        %2465 = vst [vmem:[%s411 + $0x188] sm:$0xff] %v2337
        %2466 = vst [vmem:[%s411 + $0x190] sm:$0xff] %v2338
        %2467 = vst [vmem:[%s411 + $0x198] sm:$0xff] %v2339
        %2468 = vst [vmem:[%s411 + $0x1a0] sm:$0xff] %v2340
        %2469 = vst [vmem:[%s411 + $0x1a8] sm:$0xff] %v2341
        %2470 = vst [vmem:[%s411 + $0x1b0] sm:$0xff] %v2342
        %2471 = vst [vmem:[%s411 + $0x1b8] sm:$0xff] %v2343
        %2472 = vst [vmem:[%s411 + $0x1c0] sm:$0xff] %v2344
        %2473 = vst [vmem:[%s411 + $0x1c8] sm:$0xff] %v2345
        %2474 = vst [vmem:[%s411 + $0x1d0] sm:$0xff] %v2346
        %2475 = vst [vmem:[%s411 + $0x1d8] sm:$0xff] %v2347
        %2476 = vst [vmem:[%s411 + $0x1e0] sm:$0xff] %v2348
        %2477 = vst [vmem:[%s411 + $0x1e8] sm:$0xff] %v2349
        %2478 = vst [vmem:[%s411 + $0x1f0] sm:$0xff] %v2350
        %2479 = vst [vmem:[%s411 + $0x1f8] sm:$0xff] %v2351
        %2480 = vst [vmem:[%s411 + $0x200] sm:$0xff] %v2352
        %2481 = vst [vmem:[%s411 + $0x208] sm:$0xff] %v2353
        %2482 = vst [vmem:[%s411 + $0x210] sm:$0xff] %v2354
        %2483 = vst [vmem:[%s411 + $0x218] sm:$0xff] %v2355
        %2484 = vst [vmem:[%s411 + $0x220] sm:$0xff] %v2356
        %2485 = vst [vmem:[%s411 + $0x228] sm:$0xff] %v2357
        %2486 = vst [vmem:[%s411 + $0x230] sm:$0xff] %v2358
        %2487 = vst [vmem:[%s411 + $0x238] sm:$0xff] %v2359
        %2488 = vst [vmem:[%s411 + $0x240] sm:$0xff] %v2360
        %2489 = vst [vmem:[%s411 + $0x248] sm:$0xff] %v2361
        %2490 = vst [vmem:[%s411 + $0x250] sm:$0xff] %v2362
        %2491 = vst [vmem:[%s411 + $0x258] sm:$0xff] %v2363
        %2492 = vst [vmem:[%s411 + $0x260] sm:$0xff] %v2364
        %2493 = vst [vmem:[%s411 + $0x268] sm:$0xff] %v2365
        %2494 = vst [vmem:[%s411 + $0x270] sm:$0xff] %v2366
        %2495 = vst [vmem:[%s411 + $0x278] sm:$0xff] %v2367
        %2496 = vst [vmem:[%s411 + $0x280] sm:$0xff] %v2368
        %2497 = vst [vmem:[%s411 + $0x288] sm:$0xff] %v2369
        %2498 = vst [vmem:[%s411 + $0x290] sm:$0xff] %v2370
        %2499 = vst [vmem:[%s411 + $0x298] sm:$0xff] %v2371
        %2500 = vst [vmem:[%s411 + $0x2a0] sm:$0xff] %v2372
        %2501 = vst [vmem:[%s411 + $0x2a8] sm:$0xff] %v2373
        %2502 = vst [vmem:[%s411 + $0x2b0] sm:$0xff] %v2374
        %2503 = vst [vmem:[%s411 + $0x2b8] sm:$0xff] %v2375
        %2504 = vst [vmem:[%s411 + $0x2c0] sm:$0xff] %v2376
        %2505 = vst [vmem:[%s411 + $0x2c8] sm:$0xff] %v2377
        %2506 = vst [vmem:[%s411 + $0x2d0] sm:$0xff] %v2378
        %2507 = vst [vmem:[%s411 + $0x2d8] sm:$0xff] %v2379
        %2508 = vst [vmem:[%s411 + $0x2e0] sm:$0xff] %v2380
        %2509 = vst [vmem:[%s411 + $0x2e8] sm:$0xff] %v2381
        %2510 = vst [vmem:[%s411 + $0x2f0] sm:$0xff] %v2382
        %2511 = vst [vmem:[%s411 + $0x2f8] sm:$0xff] %v2383
        %2512 = vst [vmem:[%s411 + $0x300] sm:$0xff] %v2384
        %2513 = vst [vmem:[%s411 + $0x308] sm:$0xff] %v2385
        %2514 = vst [vmem:[%s411 + $0x310] sm:$0xff] %v2386
        %2515 = vst [vmem:[%s411 + $0x318] sm:$0xff] %v2387
        %2516 = vst [vmem:[%s411 + $0x320] sm:$0xff] %v2388
        %2517 = vst [vmem:[%s411 + $0x328] sm:$0xff] %v2389
        %2518 = vst [vmem:[%s411 + $0x330] sm:$0xff] %v2390
        %2519 = vst [vmem:[%s411 + $0x338] sm:$0xff] %v2391
        %2520 = vst [vmem:[%s411 + $0x340] sm:$0xff] %v2392
        %2521 = vst [vmem:[%s411 + $0x348] sm:$0xff] %v2393
        %2522 = vst [vmem:[%s411 + $0x350] sm:$0xff] %v2394
        %2523 = vst [vmem:[%s411 + $0x358] sm:$0xff] %v2395
        %2524 = vst [vmem:[%s411 + $0x360] sm:$0xff] %v2396
        %2525 = vst [vmem:[%s411 + $0x368] sm:$0xff] %v2397
        %2526 = vst [vmem:[%s411 + $0x370] sm:$0xff] %v2398
        %2527 = vst [vmem:[%s411 + $0x378] sm:$0xff] %v2399
        %2528 = vst [vmem:[%s411 + $0x380] sm:$0xff] %v2400
        %2529 = vst [vmem:[%s411 + $0x388] sm:$0xff] %v2401
        %2530 = vst [vmem:[%s411 + $0x390] sm:$0xff] %v2402
        %2531 = vst [vmem:[%s411 + $0x398] sm:$0xff] %v2403
        %2532 = vst [vmem:[%s411 + $0x3a0] sm:$0xff] %v2404
        %2533 = vst [vmem:[%s411 + $0x3a8] sm:$0xff] %v2405
        %2534 = vst [vmem:[%s411 + $0x3b0] sm:$0xff] %v2406
        %2535 = vst [vmem:[%s411 + $0x3b8] sm:$0xff] %v2407
        %2536 = vst [vmem:[%s411 + $0x3c0] sm:$0xff] %v2408
        %2537 = vst [vmem:[%s411 + $0x3c8] sm:$0xff] %v2409
        %2538 = vst [vmem:[%s411 + $0x3d0] sm:$0xff] %v2410
        %2539 = vst [vmem:[%s411 + $0x3d8] sm:$0xff] %v2411
        %2540 = vst [vmem:[%s411 + $0x3e0] sm:$0xff] %v2412
        %2541 = vst [vmem:[%s411 + $0x3e8] sm:$0xff] %v2413
        %2542 = vst [vmem:[%s411 + $0x3f0] sm:$0xff] %v2414
        %2543 = vst [vmem:[%s411 + $0x3f8] sm:$0xff] %v2415
        %s2544 = sand.u32 %s68, 1
        %s2545 = sand.u32 %s68, 1
        %s2546 = smul.addr %s2545, 1024
        %s2547 = scalar_lea.vmem [#allocation3], %s2546
        // Predicated region
        $region52: #{ga_net_features_norm.1} parent=46 // pred_check
          %p2548 = pneg %p78
        $region53: #{ga_net_features_norm.1} parent=46 // pred_check_branch
          %2550 = sbr.rel (%p2548) target = $region55
        $region54: #{ga_net_features_norm.1} parent=46 // pred_region
          %s2551 = smul.u32 32, %s13
          %s2552 = smul.addr %s2551, 8
          %s2553 = scalar_lea.vmem %s2, %s2552
          // Predicated region
          $region56: #{ga_net_features_norm.1} parent=54 // pred_check
            _
          $region57: #{ga_net_features_norm.1} parent=54 // pred_check_branch
            %2555 = sbr.rel (0) target = $region59
          $region58: #{ga_net_features_norm.1} parent=54 // pred_region
            // Predicated region
            $region60: #{ga_net_features_norm.1} parent=58 // pred_check
              _
            $region61: #{ga_net_features_norm.1} parent=58 // pred_check_branch
              %2557 = sbr.rel (0) target = $region63
            $region62: #{ga_net_features_norm.1} parent=58 // pred_region
              loop: start=0, step=1, limit=1
              $region64: #{ga_net_features_norm.1} parent=62 // loop_pre_header
                _
              $region65: #{ga_net_features_norm.1} parent=62 // loop_header
                %s2559 = sphi 0, %s2563
                %p2560 = scmp.ge.s32.totalorder %s2559, 1
                %s2564 = sphi %s2547, %s2547
                %s2565 = sphi %s2553, %s2553
              $region66: #{ga_net_features_norm.1} parent=62 // loop_header_branch
                %2562 = sbr.rel (%p2560) target = $region70
              $region67: #{ga_net_features_norm.1} parent=62 // loop_body
                %v2566 = vld [vmem:[%s2564] sm:$0xff]
                %2567 = vst [vmem:[%s2565] sm:$0xff] %v2566
                %v2568 = vld [vmem:[%s2564 + $0x8] sm:$0xff]
                %2569 = vst [vmem:[%s2565 + $0x8] sm:$0xff] %v2568
                %v2570 = vld [vmem:[%s2564 + $0x10] sm:$0xff]
                %2571 = vst [vmem:[%s2565 + $0x10] sm:$0xff] %v2570
                %v2572 = vld [vmem:[%s2564 + $0x18] sm:$0xff]
                %2573 = vst [vmem:[%s2565 + $0x18] sm:$0xff] %v2572
                %v2574 = vld [vmem:[%s2564 + $0x20] sm:$0xff]
                %2575 = vst [vmem:[%s2565 + $0x20] sm:$0xff] %v2574
                %v2576 = vld [vmem:[%s2564 + $0x28] sm:$0xff]
                %2577 = vst [vmem:[%s2565 + $0x28] sm:$0xff] %v2576
                %v2578 = vld [vmem:[%s2564 + $0x30] sm:$0xff]
                %2579 = vst [vmem:[%s2565 + $0x30] sm:$0xff] %v2578
                %v2580 = vld [vmem:[%s2564 + $0x38] sm:$0xff]
                %2581 = vst [vmem:[%s2565 + $0x38] sm:$0xff] %v2580
                %v2582 = vld [vmem:[%s2564 + $0x40] sm:$0xff]
                %2583 = vst [vmem:[%s2565 + $0x40] sm:$0xff] %v2582
                %v2584 = vld [vmem:[%s2564 + $0x48] sm:$0xff]
                %2585 = vst [vmem:[%s2565 + $0x48] sm:$0xff] %v2584
                %v2586 = vld [vmem:[%s2564 + $0x50] sm:$0xff]
                %2587 = vst [vmem:[%s2565 + $0x50] sm:$0xff] %v2586
                %v2588 = vld [vmem:[%s2564 + $0x58] sm:$0xff]
                %2589 = vst [vmem:[%s2565 + $0x58] sm:$0xff] %v2588
                %v2590 = vld [vmem:[%s2564 + $0x60] sm:$0xff]
                %2591 = vst [vmem:[%s2565 + $0x60] sm:$0xff] %v2590
                %v2592 = vld [vmem:[%s2564 + $0x68] sm:$0xff]
                %2593 = vst [vmem:[%s2565 + $0x68] sm:$0xff] %v2592
                %v2594 = vld [vmem:[%s2564 + $0x70] sm:$0xff]
                %2595 = vst [vmem:[%s2565 + $0x70] sm:$0xff] %v2594
                %v2596 = vld [vmem:[%s2564 + $0x78] sm:$0xff]
                %2597 = vst [vmem:[%s2565 + $0x78] sm:$0xff] %v2596
                %v2598 = vld [vmem:[%s2564 + $0x80] sm:$0xff]
                %2599 = vst [vmem:[%s2565 + $0x80] sm:$0xff] %v2598
                %v2600 = vld [vmem:[%s2564 + $0x88] sm:$0xff]
                %2601 = vst [vmem:[%s2565 + $0x88] sm:$0xff] %v2600
                %v2602 = vld [vmem:[%s2564 + $0x90] sm:$0xff]
                %2603 = vst [vmem:[%s2565 + $0x90] sm:$0xff] %v2602
                %v2604 = vld [vmem:[%s2564 + $0x98] sm:$0xff]
                %2605 = vst [vmem:[%s2565 + $0x98] sm:$0xff] %v2604
                %v2606 = vld [vmem:[%s2564 + $0xa0] sm:$0xff]
                %2607 = vst [vmem:[%s2565 + $0xa0] sm:$0xff] %v2606
                %v2608 = vld [vmem:[%s2564 + $0xa8] sm:$0xff]
                %2609 = vst [vmem:[%s2565 + $0xa8] sm:$0xff] %v2608
                %v2610 = vld [vmem:[%s2564 + $0xb0] sm:$0xff]
                %2611 = vst [vmem:[%s2565 + $0xb0] sm:$0xff] %v2610
                %v2612 = vld [vmem:[%s2564 + $0xb8] sm:$0xff]
                %2613 = vst [vmem:[%s2565 + $0xb8] sm:$0xff] %v2612
                %v2614 = vld [vmem:[%s2564 + $0xc0] sm:$0xff]
                %2615 = vst [vmem:[%s2565 + $0xc0] sm:$0xff] %v2614
                %v2616 = vld [vmem:[%s2564 + $0xc8] sm:$0xff]
                %2617 = vst [vmem:[%s2565 + $0xc8] sm:$0xff] %v2616
                %v2618 = vld [vmem:[%s2564 + $0xd0] sm:$0xff]
                %2619 = vst [vmem:[%s2565 + $0xd0] sm:$0xff] %v2618
                %v2620 = vld [vmem:[%s2564 + $0xd8] sm:$0xff]
                %2621 = vst [vmem:[%s2565 + $0xd8] sm:$0xff] %v2620
                %v2622 = vld [vmem:[%s2564 + $0xe0] sm:$0xff]
                %2623 = vst [vmem:[%s2565 + $0xe0] sm:$0xff] %v2622
                %v2624 = vld [vmem:[%s2564 + $0xe8] sm:$0xff]
                %2625 = vst [vmem:[%s2565 + $0xe8] sm:$0xff] %v2624
                %v2626 = vld [vmem:[%s2564 + $0xf0] sm:$0xff]
                %2627 = vst [vmem:[%s2565 + $0xf0] sm:$0xff] %v2626
                %v2628 = vld [vmem:[%s2564 + $0xf8] sm:$0xff]
                %2629 = vst [vmem:[%s2565 + $0xf8] sm:$0xff] %v2628
                %v2630 = vld [vmem:[%s2564 + $0x100] sm:$0xff]
                %2631 = vst [vmem:[%s2565 + $0x400] sm:$0xff] %v2630
                %v2632 = vld [vmem:[%s2564 + $0x108] sm:$0xff]
                %2633 = vst [vmem:[%s2565 + $0x408] sm:$0xff] %v2632
                %v2634 = vld [vmem:[%s2564 + $0x110] sm:$0xff]
                %2635 = vst [vmem:[%s2565 + $0x410] sm:$0xff] %v2634
                %v2636 = vld [vmem:[%s2564 + $0x118] sm:$0xff]
                %2637 = vst [vmem:[%s2565 + $0x418] sm:$0xff] %v2636
                %v2638 = vld [vmem:[%s2564 + $0x120] sm:$0xff]
                %2639 = vst [vmem:[%s2565 + $0x420] sm:$0xff] %v2638
                %v2640 = vld [vmem:[%s2564 + $0x128] sm:$0xff]
                %2641 = vst [vmem:[%s2565 + $0x428] sm:$0xff] %v2640
                %v2642 = vld [vmem:[%s2564 + $0x130] sm:$0xff]
                %2643 = vst [vmem:[%s2565 + $0x430] sm:$0xff] %v2642
                %v2644 = vld [vmem:[%s2564 + $0x138] sm:$0xff]
                %2645 = vst [vmem:[%s2565 + $0x438] sm:$0xff] %v2644
                %v2646 = vld [vmem:[%s2564 + $0x140] sm:$0xff]
                %2647 = vst [vmem:[%s2565 + $0x440] sm:$0xff] %v2646
                %v2648 = vld [vmem:[%s2564 + $0x148] sm:$0xff]
                %2649 = vst [vmem:[%s2565 + $0x448] sm:$0xff] %v2648
                %v2650 = vld [vmem:[%s2564 + $0x150] sm:$0xff]
                %2651 = vst [vmem:[%s2565 + $0x450] sm:$0xff] %v2650
                %v2652 = vld [vmem:[%s2564 + $0x158] sm:$0xff]
                %2653 = vst [vmem:[%s2565 + $0x458] sm:$0xff] %v2652
                %v2654 = vld [vmem:[%s2564 + $0x160] sm:$0xff]
                %2655 = vst [vmem:[%s2565 + $0x460] sm:$0xff] %v2654
                %v2656 = vld [vmem:[%s2564 + $0x168] sm:$0xff]
                %2657 = vst [vmem:[%s2565 + $0x468] sm:$0xff] %v2656
                %v2658 = vld [vmem:[%s2564 + $0x170] sm:$0xff]
                %2659 = vst [vmem:[%s2565 + $0x470] sm:$0xff] %v2658
                %v2660 = vld [vmem:[%s2564 + $0x178] sm:$0xff]
                %2661 = vst [vmem:[%s2565 + $0x478] sm:$0xff] %v2660
                %v2662 = vld [vmem:[%s2564 + $0x180] sm:$0xff]
                %2663 = vst [vmem:[%s2565 + $0x480] sm:$0xff] %v2662
                %v2664 = vld [vmem:[%s2564 + $0x188] sm:$0xff]
                %2665 = vst [vmem:[%s2565 + $0x488] sm:$0xff] %v2664
                %v2666 = vld [vmem:[%s2564 + $0x190] sm:$0xff]
                %2667 = vst [vmem:[%s2565 + $0x490] sm:$0xff] %v2666
                %v2668 = vld [vmem:[%s2564 + $0x198] sm:$0xff]
                %2669 = vst [vmem:[%s2565 + $0x498] sm:$0xff] %v2668
                %v2670 = vld [vmem:[%s2564 + $0x1a0] sm:$0xff]
                %2671 = vst [vmem:[%s2565 + $0x4a0] sm:$0xff] %v2670
                %v2672 = vld [vmem:[%s2564 + $0x1a8] sm:$0xff]
                %2673 = vst [vmem:[%s2565 + $0x4a8] sm:$0xff] %v2672
                %v2674 = vld [vmem:[%s2564 + $0x1b0] sm:$0xff]
                %2675 = vst [vmem:[%s2565 + $0x4b0] sm:$0xff] %v2674
                %v2676 = vld [vmem:[%s2564 + $0x1b8] sm:$0xff]
                %2677 = vst [vmem:[%s2565 + $0x4b8] sm:$0xff] %v2676
                %v2678 = vld [vmem:[%s2564 + $0x1c0] sm:$0xff]
                %2679 = vst [vmem:[%s2565 + $0x4c0] sm:$0xff] %v2678
                %v2680 = vld [vmem:[%s2564 + $0x1c8] sm:$0xff]
                %2681 = vst [vmem:[%s2565 + $0x4c8] sm:$0xff] %v2680
                %v2682 = vld [vmem:[%s2564 + $0x1d0] sm:$0xff]
                %2683 = vst [vmem:[%s2565 + $0x4d0] sm:$0xff] %v2682
                %v2684 = vld [vmem:[%s2564 + $0x1d8] sm:$0xff]
                %2685 = vst [vmem:[%s2565 + $0x4d8] sm:$0xff] %v2684
                %v2686 = vld [vmem:[%s2564 + $0x1e0] sm:$0xff]
                %2687 = vst [vmem:[%s2565 + $0x4e0] sm:$0xff] %v2686
                %v2688 = vld [vmem:[%s2564 + $0x1e8] sm:$0xff]
                %2689 = vst [vmem:[%s2565 + $0x4e8] sm:$0xff] %v2688
                %v2690 = vld [vmem:[%s2564 + $0x1f0] sm:$0xff]
                %2691 = vst [vmem:[%s2565 + $0x4f0] sm:$0xff] %v2690
                %v2692 = vld [vmem:[%s2564 + $0x1f8] sm:$0xff]
                %2693 = vst [vmem:[%s2565 + $0x4f8] sm:$0xff] %v2692
                %v2694 = vld [vmem:[%s2564 + $0x200] sm:$0xff]
                %2695 = vst [vmem:[%s2565 + $0x800] sm:$0xff] %v2694
                %v2696 = vld [vmem:[%s2564 + $0x208] sm:$0xff]
                %2697 = vst [vmem:[%s2565 + $0x808] sm:$0xff] %v2696
                %v2698 = vld [vmem:[%s2564 + $0x210] sm:$0xff]
                %2699 = vst [vmem:[%s2565 + $0x810] sm:$0xff] %v2698
                %v2700 = vld [vmem:[%s2564 + $0x218] sm:$0xff]
                %2701 = vst [vmem:[%s2565 + $0x818] sm:$0xff] %v2700
                %v2702 = vld [vmem:[%s2564 + $0x220] sm:$0xff]
                %2703 = vst [vmem:[%s2565 + $0x820] sm:$0xff] %v2702
                %v2704 = vld [vmem:[%s2564 + $0x228] sm:$0xff]
                %2705 = vst [vmem:[%s2565 + $0x828] sm:$0xff] %v2704
                %v2706 = vld [vmem:[%s2564 + $0x230] sm:$0xff]
                %2707 = vst [vmem:[%s2565 + $0x830] sm:$0xff] %v2706
                %v2708 = vld [vmem:[%s2564 + $0x238] sm:$0xff]
                %2709 = vst [vmem:[%s2565 + $0x838] sm:$0xff] %v2708
                %v2710 = vld [vmem:[%s2564 + $0x240] sm:$0xff]
                %2711 = vst [vmem:[%s2565 + $0x840] sm:$0xff] %v2710
                %v2712 = vld [vmem:[%s2564 + $0x248] sm:$0xff]
                %2713 = vst [vmem:[%s2565 + $0x848] sm:$0xff] %v2712
                %v2714 = vld [vmem:[%s2564 + $0x250] sm:$0xff]
                %2715 = vst [vmem:[%s2565 + $0x850] sm:$0xff] %v2714
                %v2716 = vld [vmem:[%s2564 + $0x258] sm:$0xff]
                %2717 = vst [vmem:[%s2565 + $0x858] sm:$0xff] %v2716
                %v2718 = vld [vmem:[%s2564 + $0x260] sm:$0xff]
                %2719 = vst [vmem:[%s2565 + $0x860] sm:$0xff] %v2718
                %v2720 = vld [vmem:[%s2564 + $0x268] sm:$0xff]
                %2721 = vst [vmem:[%s2565 + $0x868] sm:$0xff] %v2720
                %v2722 = vld [vmem:[%s2564 + $0x270] sm:$0xff]
                %2723 = vst [vmem:[%s2565 + $0x870] sm:$0xff] %v2722
                %v2724 = vld [vmem:[%s2564 + $0x278] sm:$0xff]
                %2725 = vst [vmem:[%s2565 + $0x878] sm:$0xff] %v2724
                %v2726 = vld [vmem:[%s2564 + $0x280] sm:$0xff]
                %2727 = vst [vmem:[%s2565 + $0x880] sm:$0xff] %v2726
                %v2728 = vld [vmem:[%s2564 + $0x288] sm:$0xff]
                %2729 = vst [vmem:[%s2565 + $0x888] sm:$0xff] %v2728
                %v2730 = vld [vmem:[%s2564 + $0x290] sm:$0xff]
                %2731 = vst [vmem:[%s2565 + $0x890] sm:$0xff] %v2730
                %v2732 = vld [vmem:[%s2564 + $0x298] sm:$0xff]
                %2733 = vst [vmem:[%s2565 + $0x898] sm:$0xff] %v2732
                %v2734 = vld [vmem:[%s2564 + $0x2a0] sm:$0xff]
                %2735 = vst [vmem:[%s2565 + $0x8a0] sm:$0xff] %v2734
                %v2736 = vld [vmem:[%s2564 + $0x2a8] sm:$0xff]
                %2737 = vst [vmem:[%s2565 + $0x8a8] sm:$0xff] %v2736
                %v2738 = vld [vmem:[%s2564 + $0x2b0] sm:$0xff]
                %2739 = vst [vmem:[%s2565 + $0x8b0] sm:$0xff] %v2738
                %v2740 = vld [vmem:[%s2564 + $0x2b8] sm:$0xff]
                %2741 = vst [vmem:[%s2565 + $0x8b8] sm:$0xff] %v2740
                %v2742 = vld [vmem:[%s2564 + $0x2c0] sm:$0xff]
                %2743 = vst [vmem:[%s2565 + $0x8c0] sm:$0xff] %v2742
                %v2744 = vld [vmem:[%s2564 + $0x2c8] sm:$0xff]
                %2745 = vst [vmem:[%s2565 + $0x8c8] sm:$0xff] %v2744
                %v2746 = vld [vmem:[%s2564 + $0x2d0] sm:$0xff]
                %2747 = vst [vmem:[%s2565 + $0x8d0] sm:$0xff] %v2746
                %v2748 = vld [vmem:[%s2564 + $0x2d8] sm:$0xff]
                %2749 = vst [vmem:[%s2565 + $0x8d8] sm:$0xff] %v2748
                %v2750 = vld [vmem:[%s2564 + $0x2e0] sm:$0xff]
                %2751 = vst [vmem:[%s2565 + $0x8e0] sm:$0xff] %v2750
                %v2752 = vld [vmem:[%s2564 + $0x2e8] sm:$0xff]
                %2753 = vst [vmem:[%s2565 + $0x8e8] sm:$0xff] %v2752
                %v2754 = vld [vmem:[%s2564 + $0x2f0] sm:$0xff]
                %2755 = vst [vmem:[%s2565 + $0x8f0] sm:$0xff] %v2754
                %v2756 = vld [vmem:[%s2564 + $0x2f8] sm:$0xff]
                %2757 = vst [vmem:[%s2565 + $0x8f8] sm:$0xff] %v2756
                %v2758 = vld [vmem:[%s2564 + $0x300] sm:$0xff]
                %2759 = vst [vmem:[%s2565 + $0xc00] sm:$0xff] %v2758
                %v2760 = vld [vmem:[%s2564 + $0x308] sm:$0xff]
                %2761 = vst [vmem:[%s2565 + $0xc08] sm:$0xff] %v2760
                %v2762 = vld [vmem:[%s2564 + $0x310] sm:$0xff]
                %2763 = vst [vmem:[%s2565 + $0xc10] sm:$0xff] %v2762
                %v2764 = vld [vmem:[%s2564 + $0x318] sm:$0xff]
                %2765 = vst [vmem:[%s2565 + $0xc18] sm:$0xff] %v2764
                %v2766 = vld [vmem:[%s2564 + $0x320] sm:$0xff]
                %2767 = vst [vmem:[%s2565 + $0xc20] sm:$0xff] %v2766
                %v2768 = vld [vmem:[%s2564 + $0x328] sm:$0xff]
                %2769 = vst [vmem:[%s2565 + $0xc28] sm:$0xff] %v2768
                %v2770 = vld [vmem:[%s2564 + $0x330] sm:$0xff]
                %2771 = vst [vmem:[%s2565 + $0xc30] sm:$0xff] %v2770
                %v2772 = vld [vmem:[%s2564 + $0x338] sm:$0xff]
                %2773 = vst [vmem:[%s2565 + $0xc38] sm:$0xff] %v2772
                %v2774 = vld [vmem:[%s2564 + $0x340] sm:$0xff]
                %2775 = vst [vmem:[%s2565 + $0xc40] sm:$0xff] %v2774
                %v2776 = vld [vmem:[%s2564 + $0x348] sm:$0xff]
                %2777 = vst [vmem:[%s2565 + $0xc48] sm:$0xff] %v2776
                %v2778 = vld [vmem:[%s2564 + $0x350] sm:$0xff]
                %2779 = vst [vmem:[%s2565 + $0xc50] sm:$0xff] %v2778
                %v2780 = vld [vmem:[%s2564 + $0x358] sm:$0xff]
                %2781 = vst [vmem:[%s2565 + $0xc58] sm:$0xff] %v2780
                %v2782 = vld [vmem:[%s2564 + $0x360] sm:$0xff]
                %2783 = vst [vmem:[%s2565 + $0xc60] sm:$0xff] %v2782
                %v2784 = vld [vmem:[%s2564 + $0x368] sm:$0xff]
                %2785 = vst [vmem:[%s2565 + $0xc68] sm:$0xff] %v2784
                %v2786 = vld [vmem:[%s2564 + $0x370] sm:$0xff]
                %2787 = vst [vmem:[%s2565 + $0xc70] sm:$0xff] %v2786
                %v2788 = vld [vmem:[%s2564 + $0x378] sm:$0xff]
                %2789 = vst [vmem:[%s2565 + $0xc78] sm:$0xff] %v2788
                %v2790 = vld [vmem:[%s2564 + $0x380] sm:$0xff]
                %2791 = vst [vmem:[%s2565 + $0xc80] sm:$0xff] %v2790
                %v2792 = vld [vmem:[%s2564 + $0x388] sm:$0xff]
                %2793 = vst [vmem:[%s2565 + $0xc88] sm:$0xff] %v2792
                %v2794 = vld [vmem:[%s2564 + $0x390] sm:$0xff]
                %2795 = vst [vmem:[%s2565 + $0xc90] sm:$0xff] %v2794
                %v2796 = vld [vmem:[%s2564 + $0x398] sm:$0xff]
                %2797 = vst [vmem:[%s2565 + $0xc98] sm:$0xff] %v2796
                %v2798 = vld [vmem:[%s2564 + $0x3a0] sm:$0xff]
                %2799 = vst [vmem:[%s2565 + $0xca0] sm:$0xff] %v2798
                %v2800 = vld [vmem:[%s2564 + $0x3a8] sm:$0xff]
                %2801 = vst [vmem:[%s2565 + $0xca8] sm:$0xff] %v2800
                %v2802 = vld [vmem:[%s2564 + $0x3b0] sm:$0xff]
                %2803 = vst [vmem:[%s2565 + $0xcb0] sm:$0xff] %v2802
                %v2804 = vld [vmem:[%s2564 + $0x3b8] sm:$0xff]
                %2805 = vst [vmem:[%s2565 + $0xcb8] sm:$0xff] %v2804
                %v2806 = vld [vmem:[%s2564 + $0x3c0] sm:$0xff]
                %2807 = vst [vmem:[%s2565 + $0xcc0] sm:$0xff] %v2806
                %v2808 = vld [vmem:[%s2564 + $0x3c8] sm:$0xff]
                %2809 = vst [vmem:[%s2565 + $0xcc8] sm:$0xff] %v2808
                %v2810 = vld [vmem:[%s2564 + $0x3d0] sm:$0xff]
                %2811 = vst [vmem:[%s2565 + $0xcd0] sm:$0xff] %v2810
                %v2812 = vld [vmem:[%s2564 + $0x3d8] sm:$0xff]
                %2813 = vst [vmem:[%s2565 + $0xcd8] sm:$0xff] %v2812
                %v2814 = vld [vmem:[%s2564 + $0x3e0] sm:$0xff]
                %2815 = vst [vmem:[%s2565 + $0xce0] sm:$0xff] %v2814
                %v2816 = vld [vmem:[%s2564 + $0x3e8] sm:$0xff]
                %2817 = vst [vmem:[%s2565 + $0xce8] sm:$0xff] %v2816
                %v2818 = vld [vmem:[%s2564 + $0x3f0] sm:$0xff]
                %2819 = vst [vmem:[%s2565 + $0xcf0] sm:$0xff] %v2818
                %v2820 = vld [vmem:[%s2564 + $0x3f8] sm:$0xff]
                %2821 = vst [vmem:[%s2565 + $0xcf8] sm:$0xff] %v2820
              $region68: #{ga_net_features_norm.1} parent=62 // loop_footer
                %s2563 = sadd.s32 1, %s2559
              $region69: #{ga_net_features_norm.1} parent=62 // loop_footer_branch
                %2558 = sbr.rel target = $region65
              $region70: #{ga_net_features_norm.1} parent=62 // loop_exit
                _
            $region63: #{ga_net_features_norm.1} parent=58 // pred_fallthru
              _
            // Predicated region
            $region71: #{ga_net_features_norm.1} parent=58 // pred_check
              _
            $region72: #{ga_net_features_norm.1} parent=58 // pred_check_branch
              %2823 = sbr.rel target = $region74
            $region73: #{ga_net_features_norm.1} parent=58 // pred_region
              _
            $region74: #{ga_net_features_norm.1} parent=58 // pred_fallthru
              _
          $region59: #{ga_net_features_norm.1} parent=54 // pred_fallthru
            _
          %2824 = vnop
        $region55: #{ga_net_features_norm.1} parent=46 // pred_fallthru
          _
      $region47: #{ga_net_features_norm.1} parent=5 // pred_fallthru
        _
      %p2825 = scmp.le.s32.totalorder 2, %s8
      // Predicated region
      $region75: #{ga_net_features_norm.1} parent=5 // pred_check
        %p2826 = pneg %p2825
      $region76: #{ga_net_features_norm.1} parent=5 // pred_check_branch
        %2828 = sbr.rel (%p2826) target = $region78
      $region77: #{ga_net_features_norm.1} parent=5 // pred_region
        %s2829 = ssub.s32 %s8, 2
        // Predicated region
        $region79: #{ga_net_features_norm.1} parent=77 // pred_check
          %p2830 = pneg %p84
        $region80: #{ga_net_features_norm.1} parent=77 // pred_check_branch
          %2832 = sbr.rel (%p2830) target = $region82
        $region81: #{ga_net_features_norm.1} parent=77 // pred_region
          %s2833 = sand.u32 %s69, 1
          %s2834 = sand.u32 %s69, 1
          %s2835 = smul.addr %s2834, 1024
          %s2836 = scalar_lea.vmem [#allocation3], %s2835
        $region82: #{ga_net_features_norm.1} parent=77 // pred_fallthru
          _
      $region78: #{ga_net_features_norm.1} parent=5 // pred_fallthru
        _
    $region6: #{ga_net_features_norm.1} parent=1 // loop_footer
      %s12 = sadd.s32 1, %s8
    $region7: #{ga_net_features_norm.1} parent=1 // loop_footer_branch
      %7 = sbr.rel target = $region3
    $region8: #{ga_net_features_norm.1} parent=1 // loop_exit
      _

</llo_original>
